<compile_context>
chip_gen: v7x
topology: tpu7x:2x2x1
jax: 0.10.0
libtpu: 0.0.40
codegen_flags: <defaults>
</compile_context>

<pallas_src>
import functools
import math

import jax
import jax.numpy as jnp
from jax.experimental import pallas as pl
from jax.experimental.pallas import tpu as pltpu


# ----------------------------------------------------------------------------
# Shared per-direction GRU math (pure function of jnp values + weight refs).
#
#   h : (A0, A1, Ch) f32      x : (A0, A1, Ci) bf16
#   w_ref  : (5, Cin, 3*Ch) bf16   columns = [z | r | q(x-part, h rows zeroed)]
#   wq_ref : (5, Ch, Ch)    bf16   q gate's h-part, applied to (r*h)
#   b_ref  : (1, 3*Ch)      f32    [bz | br | bq]
#
# The 5-tap conv along `conv_axis` is done as 5 shifted-LHS matmuls (tap k
# reads input at offset k-2, zero padded), accumulated in f32.
# ----------------------------------------------------------------------------
def _gru_update(h, x, w_ref, wq_ref, b_ref, *, conv_axis, ch):
    a0, a1, _ = h.shape
    rows = a0 * a1

    def taps(a):
        # zero-pad by 2 on each side of the conv axis, then take the 5
        # shifted views; each tap is reshaped to a (rows, C) matmul LHS.
        pad_shape = list(a.shape)
        pad_shape[conv_axis] = 2
        z = jnp.zeros(pad_shape, a.dtype)
        ap = jnp.concatenate([z, a, z], axis=conv_axis)
        length = a.shape[conv_axis]
        return [jax.lax.slice_in_dim(ap, k, k + length, axis=conv_axis)
                .reshape(rows, -1) for k in range(5)]

    # ---- z / r / q_x pre-activations: 5 matmuls, K = Cin, N = 3*Ch --------
    hx = jnp.concatenate([h.astype(jnp.bfloat16), x], axis=-1)   # (A0,A1,Cin)
    hx_taps = taps(hx)
    pre = jnp.zeros((rows, 3 * ch), jnp.float32)
    for k in range(5):
        pre = pre + jnp.dot(hx_taps[k], w_ref[k],
                            preferred_element_type=jnp.float32)
    pre = pre + b_ref[...]                                        # (1,3Ch)

    z = jax.nn.sigmoid(pre[:, :ch])
    r = jax.nn.sigmoid(pre[:, ch:2 * ch])
    qx = pre[:, 2 * ch:]                                          # has bq

    # ---- q gate h-part: unfold(r*h) @ Wq_h, 5 matmuls, K = Ch, N = Ch -----
    h2 = h.reshape(rows, ch)
    rh = (r * h2).astype(jnp.bfloat16).reshape(a0, a1, ch)
    rh_taps = taps(rh)
    qh = jnp.zeros((rows, ch), jnp.float32)
    for k in range(5):
        qh = qh + jnp.dot(rh_taps[k], wq_ref[k],
                          preferred_element_type=jnp.float32)
    q = jnp.tanh(qh + qx)

    h_new = (1.0 - z) * h2 + z * q
    return h_new.reshape(a0, a1, ch)


# ----------------------------------------------------------------------------
# Fused kernel: both directional passes on one whole (H, W, C) image.
# ----------------------------------------------------------------------------
def _gru2d_fused_kernel(h_ref, x_ref,
                        w1_ref, wq1_ref, b1_ref,
                        w2_ref, wq2_ref, b2_ref,
                        o_ref, *, hidden_dim):
    h = h_ref[0]                       # (H, W, Ch) f32
    x = x_ref[0]                       # (H, W, Ci) bf16
    # pass 1: torch conv (1,5)  -> conv along W (axis 1)
    h = _gru_update(h, x, w1_ref, wq1_ref, b1_ref, conv_axis=1, ch=hidden_dim)
    # pass 2: torch conv (5,1)  -> conv along H (axis 0)
    h = _gru_update(h, x, w2_ref, wq2_ref, b2_ref, conv_axis=0, ch=hidden_dim)
    o_ref[0] = jnp.nan_to_num(h).astype(o_ref.dtype)


# ----------------------------------------------------------------------------
# Per-direction kernel (fallback path for images too large for one block).
# ----------------------------------------------------------------------------
def _gru_pass_kernel(h_ref, x_ref, w_ref, wq_ref, b_ref, o_ref, *,
                     conv_axis, hidden_dim, final):
    h_new = _gru_update(h_ref[0], x_ref[0], w_ref, wq_ref, b_ref,
                        conv_axis=conv_axis, ch=hidden_dim)
    if final:
        h_new = jnp.nan_to_num(h_new)
    o_ref[0] = h_new.astype(o_ref.dtype)


# ----------------------------------------------------------------------------
# VMEM budgeting (generation aware).
# ----------------------------------------------------------------------------
def _ceil_to(v, m):
    return -(-v // m) * m


def _vmem_block_bytes(a0, a1, c, itemsize):
    # a (1, a0, a1, c) block in VMEM: minor dim padded to 128 lanes, second
    # minor to 8 sublanes.
    return a0 * _ceil_to(a1, 8) * _ceil_to(c, 128) * itemsize


def _footprint_bytes(a0, a1, ch, ci, *, fused):
    """Estimated VMEM footprint of one grid step for a (1, a0, a1, C) block."""
    cin = ch + ci
    rows = a0 * a1
    b = 2 * _vmem_block_bytes(a0, a1, ch, 4)        # h input (f32), x2 buffers
    b += 2 * _vmem_block_bytes(a0, a1, ci, 2)       # x input (bf16)
    b += 2 * _vmem_block_bytes(a0, a1, ch, 4)       # output  (f32)
    wsets = 2 if fused else 1                       # weight sets resident
    b += wsets * 2 * (5 * cin * _ceil_to(3 * ch, 128) * 2
                      + 5 * ch * _ceil_to(ch, 128) * 2
                      + _ceil_to(3 * ch, 128) * 4)
    # in-kernel temporaries (tap slices, pre-activations, gates) — generous.
    b += rows * (5 * _ceil_to(cin, 128) * 2         # hx taps (bf16)
                 + 5 * _ceil_to(ch, 128) * 2        # (r*h) taps (bf16)
                 + 2 * _ceil_to(3 * ch, 128) * 4    # pre / padded operands
                 + 8 * _ceil_to(ch, 128) * 4)       # z, r, q, qh, blend
    return b


def _vmem_limit_bytes():
    cap = 64 * 1024 * 1024                          # conservative default
    try:
        cap = int(pltpu.get_tpu_info().vmem_capacity_bytes)
    except Exception:
        pass
    # ~3/4 of physical, capped: ~96 MiB on 128 MiB parts (v5e/v6e),
    # ~48 MiB on 64 MiB parts (v7x).
    return int(min(cap - cap // 4, 100 * 1024 * 1024))


def _num_tensorcores():
    try:
        return max(1, int(getattr(jax.devices()[0], "num_cores", 1)))
    except Exception:
        return 1


def _pick_tile(extent, footprint_fn, budget, *, other_blocks, min_parallel,
               align8):
    """Largest divisor of `extent` whose true footprint fits `budget`.
    Only shrinks further (to feed >=min_parallel parallel blocks) if a
    fitting divisor achieves it.  Raises if nothing fits (no silent OOM)."""
    divs = [d for d in range(extent, 0, -1) if extent % d == 0]
    if align8:
        pref = [d for d in divs if d % 8 == 0 or d == extent]
        if any(footprint_fn(d) <= budget for d in pref):
            divs = pref
    fitting = [d for d in divs if footprint_fn(d) <= budget]
    if not fitting:
        raise ValueError(
            "GRU2d Pallas: no block of the conv-orthogonal axis fits the VMEM "
            "budget (the conv axis must fit entirely in VMEM; no halo support).")
    if min_parallel > 1:
        for d in fitting:                       # largest-first
            if other_blocks * (extent // d) >= min_parallel:
                return d
    return fitting[0]


# ----------------------------------------------------------------------------
# pallas_call wrappers.
# ----------------------------------------------------------------------------
def _const_spec(shape, grid_ndim):
    zeros = (0,) * len(shape)
    if grid_ndim == 1:
        return pl.BlockSpec(shape, lambda b: zeros)
    return pl.BlockSpec(shape, lambda b, i: zeros)


def _gru2d_fused(h, x, p1, p2, *, vmem_limit):
    B, H, W, Ch = h.shape
    Ci = x.shape[-1]
    w1, wq1, b1 = p1
    w2, wq2, b2 = p2
    hblock, xblock = (1, H, W, Ch), (1, H, W, Ci)
    imap = lambda b: (b, 0, 0, 0)
    kernel = functools.partial(_gru2d_fused_kernel, hidden_dim=Ch)
    return pl.pallas_call(
        kernel,
        out_shape=jax.ShapeDtypeStruct(h.shape, h.dtype),
        grid_spec=pltpu.PrefetchScalarGridSpec(
            num_scalar_prefetch=0,
            grid=(B,),
            in_specs=[pl.BlockSpec(hblock, imap),
                      pl.BlockSpec(xblock, imap),
                      _const_spec(w1.shape, 1), _const_spec(wq1.shape, 1),
                      _const_spec(b1.shape, 1),
                      _const_spec(w2.shape, 1), _const_spec(wq2.shape, 1),
                      _const_spec(b2.shape, 1)],
            out_specs=pl.BlockSpec(hblock, imap)),
        input_output_aliases={0: 0},            # h is dead after the call
        compiler_params=pltpu.CompilerParams(
            dimension_semantics=("parallel",),
            vmem_limit_bytes=vmem_limit),
    )(h, x, w1, wq1, b1, w2, wq2, b2)


def _gru_pass(h, x, packed, *, pass_axis, final, vmem_limit):
    """Fallback: one directional pass, tiled along the non-conv spatial axis."""
    B, H, W, Ch = h.shape
    Ci = x.shape[-1]
    w_all, wq_h, b_all = packed
    budget = int(0.9 * vmem_limit)
    ncores = _num_tensorcores()

    if pass_axis == "w":                        # conv along W, tile H
        fp = lambda t: _footprint_bytes(t, W, Ch, Ci, fused=False)
        tile = _pick_tile(H, fp, budget, other_blocks=B,
                          min_parallel=ncores, align8=False)
        grid = (B, H // tile)
        hblock, xblock = (1, tile, W, Ch), (1, tile, W, Ci)
        imap = lambda b, i: (b, i, 0, 0)
        conv_axis = 1
    else:                                       # conv along H, tile W
        fp = lambda t: _footprint_bytes(H, t, Ch, Ci, fused=False)
        tile = _pick_tile(W, fp, budget, other_blocks=B,
                          min_parallel=ncores, align8=True)
        grid = (B, W // tile)
        hblock, xblock = (1, H, tile, Ch), (1, H, tile, Ci)
        imap = lambda b, j: (b, 0, j, 0)
        conv_axis = 0

    kernel = functools.partial(_gru_pass_kernel, conv_axis=conv_axis,
                               hidden_dim=Ch, final=final)
    return pl.pallas_call(
        kernel,
        out_shape=jax.ShapeDtypeStruct(h.shape, h.dtype),
        grid_spec=pltpu.PrefetchScalarGridSpec(
            num_scalar_prefetch=0,
            grid=grid,
            in_specs=[pl.BlockSpec(hblock, imap),
                      pl.BlockSpec(xblock, imap),
                      _const_spec(w_all.shape, 2), _const_spec(wq_h.shape, 2),
                      _const_spec(b_all.shape, 2)],
            out_specs=pl.BlockSpec(hblock, imap)),
        input_output_aliases={0: 0},
        compiler_params=pltpu.CompilerParams(
            dimension_semantics=("parallel", "parallel"),
            vmem_limit_bytes=vmem_limit),
    )(h, x, w_all, wq_h, b_all)


def gru2d_pallas_nhwc(x, h, params):
    """GRU2d forward on channels-last tensors: x (B,H,W,Ci), h (B,H,W,Ch)."""
    x = x.astype(jnp.bfloat16)        # consumed only as a bf16 MXU operand
    h = h.astype(jnp.float32)
    B, H, W, Ch = h.shape
    Ci = x.shape[-1]
    limit = _vmem_limit_bytes()

    if _footprint_bytes(H, W, Ch, Ci, fused=True) <= int(0.8 * limit):
        # Fused path: both passes in one kernel, h never touches HBM between
        # them, x read once.
        return _gru2d_fused(h, x, params["pass1"], params["pass2"],
                            vmem_limit=limit)

    # Fallback: two tiled directional calls (h round-trips HBM once).
    h = _gru_pass(h, x, params["pass1"], pass_axis="w", final=False,
                  vmem_limit=limit)
    h = _gru_pass(h, x, params["pass2"], pass_axis="h", final=True,
                  vmem_limit=limit)
    return h


def gru2d_pallas(x_nchw, h_nchw, params):
    # The PyTorch interface is NCHW; keep the surrounding model NHWC
    # end-to-end if at all possible to drop these two full-tensor transposes.
    x = jnp.transpose(x_nchw, (0, 2, 3, 1))
    h = jnp.transpose(h_nchw, (0, 2, 3, 1))
    out = gru2d_pallas_nhwc(x, h, params)
    return jnp.transpose(out, (0, 3, 1, 2))


# ----------------------------------------------------------------------------
# Host-side weight packing.
#   wz/wr/wq: (5, Cin, Ch) with Cin = Ch + Ci (input order [h, x]); b*: (Ch,)
#   W_all (5, Cin, 3*Ch): columns = [z | r | q(x-part only, h rows zeroed)]
#   Wq_h  (5, Ch, Ch)   : q gate's h-part (applied to r*h in the kernel)
#   b_all (1, 3*Ch)     : [bz | br | bq]
# ----------------------------------------------------------------------------
def _pack_pass(wz, bz, wr, br, wq, bq, hidden_dim):
    ch = hidden_dim
    wq_x_only = wq.at[:, :ch, :].set(0.0)
    w_all = jnp.concatenate([wz, wr, wq_x_only], axis=-1).astype(jnp.bfloat16)
    wq_h = wq[:, :ch, :].astype(jnp.bfloat16)
    b_all = jnp.concatenate([bz, br, bq]).reshape(1, 3 * ch).astype(jnp.float32)
    return (w_all, wq_h, b_all)


def init_params(key, hidden_dim, input_dim):
    cin = hidden_dim + input_dim
    bound = 1.0 / math.sqrt(cin * 5)
    names = ["z1", "r1", "q1", "z2", "r2", "q2"]
    raw = {}
    keys = jax.random.split(key, 2 * len(names))
    for i, n in enumerate(names):
        raw["w" + n] = jax.random.uniform(keys[2 * i], (5, cin, hidden_dim),
                                          jnp.float32, -bound, bound)
        raw["b" + n] = jax.random.uniform(keys[2 * i + 1], (hidden_dim,),
                                          jnp.float32, -bound, bound)
    params = {
        "pass1": _pack_pass(raw["wz1"], raw["bz1"], raw["wr1"], raw["br1"],
                            raw["wq1"], raw["bq1"], hidden_dim),
        "pass2": _pack_pass(raw["wz2"], raw["bz2"], raw["wr2"], raw["br2"],
                            raw["wq2"], raw["bq2"], hidden_dim),
    }
    return params, raw


# ----------------------------------------------------------------------------
# Pure-JAX reference (mirrors the PyTorch forward, NCHW) for verification.
# ----------------------------------------------------------------------------
def _ref_conv(inp, w5, b, horizontal):
    w = jnp.transpose(w5, (2, 1, 0))                      # (Cout, Cin, 5)
    if horizontal:
        w4, pad = w[:, :, None, :], ((0, 0), (2, 2))      # kernel (1,5)
    else:
        w4, pad = w[:, :, :, None], ((2, 2), (0, 0))      # kernel (5,1)
    out = jax.lax.conv_general_dilated(
        inp, w4, (1, 1), pad,
        dimension_numbers=("NCHW", "OIHW", "NCHW"),
        precision=jax.lax.Precision.HIGHEST)
    return out + b.reshape(1, -1, 1, 1)


def gru2d_reference(x, h, raw):
    def step(h, x, wz, bz, wr, br, wq, bq, horizontal):
        hx = jnp.concatenate([h, x], axis=1)
        z = jax.nn.sigmoid(_ref_conv(hx, wz, bz, horizontal))
        r = jax.nn.sigmoid(_ref_conv(hx, wr, br, horizontal))
        q = jnp.tanh(_ref_conv(jnp.concatenate([r * h, x], axis=1),
                               wq, bq, horizontal))
        return (1.0 - z) * h + z * q

    h = step(h, x, raw["wz1"], raw["bz1"], raw["wr1"], raw["br1"],
             raw["wq1"], raw["bq1"], True)
    h = step(h, x, raw["wz2"], raw["bz2"], raw["wr2"], raw["br2"],
             raw["wq2"], raw["bq2"], False)
    return jnp.nan_to_num(h)


if __name__ == "__main__":
    B, HIDDEN, INPUT, H, W = 2, 32, 32, 8, 16

    key = jax.random.PRNGKey(0)
    kx, kh, kp = jax.random.split(key, 3)
    x = jax.random.normal(kx, (B, INPUT, H, W), jnp.float32)   # NCHW like torch
    h = jax.random.normal(kh, (B, HIDDEN, H, W), jnp.float32)

    params, raw = init_params(kp, HIDDEN, INPUT)

    out = jax.block_until_ready(jax.jit(gru2d_pallas)(x, h, params))
    ref = jax.block_until_ready(gru2d_reference(x, h, raw))

    assert out.shape == (B, HIDDEN, H, W)
    max_err = float(jnp.max(jnp.abs(out - ref)))
    # bf16 MXU operands (f32 accumulate) vs f32-HIGHEST reference -> relaxed tol.
    assert jnp.allclose(out, ref, atol=5e-2, rtol=5e-2), max_err
    print("KERNEL_OK")
</pallas_src>

<mosaic_0001>
module attributes {stable_mosaic.version = 11 : i64} {
  func.func @_gru2d_fused_kernel(%arg0: i32, %arg1: memref<1x8x16x32xf32, #tpu.memory_space<vmem>>, %arg2: memref<1x8x16x32xbf16, #tpu.memory_space<vmem>>, %arg3: memref<5x64x96xbf16, #tpu.memory_space<vmem>>, %arg4: memref<5x32x32xbf16, #tpu.memory_space<vmem>>, %arg5: memref<1x96xf32, #tpu.memory_space<vmem>>, %arg6: memref<5x64x96xbf16, #tpu.memory_space<vmem>>, %arg7: memref<5x32x32xbf16, #tpu.memory_space<vmem>>, %arg8: memref<1x96xf32, #tpu.memory_space<vmem>>, %arg9: memref<1x8x16x32xf32, #tpu.memory_space<vmem>>) attributes {dimension_semantics = [#tpu.dimension_semantics<parallel>], iteration_bounds = array<i64: 2>, scalar_prefetch = 0 : i64, scratch_operands = 0 : i64, tpu.core_type = #tpu.core_type<tc>, window_params = [{transform_indices = @transform_0, window_bounds = array<i64: 1, 8, 16, 32>}, {transform_indices = @transform_1, window_bounds = array<i64: 1, 8, 16, 32>}, {pipeline_mode = #tpu.pipeline_mode<synchronous>, transform_indices = @transform_2, window_bounds = array<i64: 5, 64, 96>}, {pipeline_mode = #tpu.pipeline_mode<synchronous>, transform_indices = @transform_3, window_bounds = array<i64: 5, 32, 32>}, {pipeline_mode = #tpu.pipeline_mode<synchronous>, transform_indices = @transform_4, window_bounds = array<i64: 1, 96>}, {pipeline_mode = #tpu.pipeline_mode<synchronous>, transform_indices = @transform_5, window_bounds = array<i64: 5, 64, 96>}, {pipeline_mode = #tpu.pipeline_mode<synchronous>, transform_indices = @transform_6, window_bounds = array<i64: 5, 32, 32>}, {pipeline_mode = #tpu.pipeline_mode<synchronous>, transform_indices = @transform_7, window_bounds = array<i64: 1, 96>}, {transform_indices = @transform_8, window_bounds = array<i64: 1, 8, 16, 32>}]} {
    %c0 = arith.constant 0 : index
    %c0_0 = arith.constant 0 : index
    %c0_1 = arith.constant 0 : index
    %c0_2 = arith.constant 0 : index
    %0 = vector.load %arg1[%c0, %c0_0, %c0_1, %c0_2] : memref<1x8x16x32xf32, #tpu.memory_space<vmem>>, vector<1x8x16x32xf32>
    %1 = vector.shape_cast %0 : vector<1x8x16x32xf32> to vector<8x16x32xf32>
    %c0_3 = arith.constant 0 : index
    %c0_4 = arith.constant 0 : index
    %c0_5 = arith.constant 0 : index
    %c0_6 = arith.constant 0 : index
    %2 = vector.load %arg2[%c0_3, %c0_4, %c0_5, %c0_6] : memref<1x8x16x32xbf16, #tpu.memory_space<vmem>>, vector<1x8x16x32xbf16>
    %3 = vector.shape_cast %2 : vector<1x8x16x32xbf16> to vector<8x16x32xbf16>
    %4 = arith.truncf %1 : vector<8x16x32xf32> to vector<8x16x32xbf16>
    %5 = tpu.concatenate %4, %3 in 2 : vector<8x16x32xbf16>, vector<8x16x32xbf16> -> vector<8x16x64xbf16>
    %cst = arith.constant 0.000000e+00 : bf16
    %6 = vector.broadcast %cst : bf16 to vector<8x2x64xbf16>
    %7 = tpu.concatenate %6, %5, %6 in 1 : vector<8x2x64xbf16>, vector<8x16x64xbf16>, vector<8x2x64xbf16> -> vector<8x20x64xbf16>
    %8 = vector.extract_strided_slice %7 {offsets = [0, 0, 0], sizes = [8, 16, 64], strides = [1, 1, 1]} : vector<8x20x64xbf16> to vector<8x16x64xbf16>
    %9 = vector.shape_cast %8 : vector<8x16x64xbf16> to vector<128x64xbf16>
    %10 = vector.extract_strided_slice %7 {offsets = [0, 1, 0], sizes = [8, 16, 64], strides = [1, 1, 1]} : vector<8x20x64xbf16> to vector<8x16x64xbf16>
    %11 = vector.shape_cast %10 : vector<8x16x64xbf16> to vector<128x64xbf16>
    %12 = vector.extract_strided_slice %7 {offsets = [0, 2, 0], sizes = [8, 16, 64], strides = [1, 1, 1]} : vector<8x20x64xbf16> to vector<8x16x64xbf16>
    %13 = vector.shape_cast %12 : vector<8x16x64xbf16> to vector<128x64xbf16>
    %14 = vector.extract_strided_slice %7 {offsets = [0, 3, 0], sizes = [8, 16, 64], strides = [1, 1, 1]} : vector<8x20x64xbf16> to vector<8x16x64xbf16>
    %15 = vector.shape_cast %14 : vector<8x16x64xbf16> to vector<128x64xbf16>
    %16 = vector.extract_strided_slice %7 {offsets = [0, 4, 0], sizes = [8, 16, 64], strides = [1, 1, 1]} : vector<8x20x64xbf16> to vector<8x16x64xbf16>
    %17 = vector.shape_cast %16 : vector<8x16x64xbf16> to vector<128x64xbf16>
    %cst_7 = arith.constant 0.000000e+00 : f32
    %18 = vector.broadcast %cst_7 : f32 to vector<128x96xf32>
    %c0_8 = arith.constant 0 : index
    %c0_9 = arith.constant 0 : index
    %c0_10 = arith.constant 0 : index
    %19 = vector.load %arg3[%c0_8, %c0_9, %c0_10] : memref<5x64x96xbf16, #tpu.memory_space<vmem>>, vector<1x64x96xbf16>
    %20 = vector.shape_cast %19 : vector<1x64x96xbf16> to vector<64x96xbf16>
    %cst_11 = arith.constant dense<0.000000e+00> : vector<128x96xf32>
    %21 = tpu.matmul %9, %20, %cst_11 {dimension_numbers = #tpu.dot_dimension_numbers<[1], [0], [0], [1], [0, 0, 1, 1], [], []>} : vector<128x64xbf16>, vector<64x96xbf16>, vector<128x96xf32> -> vector<128x96xf32>
    %22 = arith.addf %18, %21 : vector<128x96xf32>
    %c1 = arith.constant 1 : index
    %c0_12 = arith.constant 0 : index
    %c0_13 = arith.constant 0 : index
    %23 = vector.load %arg3[%c1, %c0_12, %c0_13] : memref<5x64x96xbf16, #tpu.memory_space<vmem>>, vector<1x64x96xbf16>
    %24 = vector.shape_cast %23 : vector<1x64x96xbf16> to vector<64x96xbf16>
    %cst_14 = arith.constant dense<0.000000e+00> : vector<128x96xf32>
    %25 = tpu.matmul %11, %24, %cst_14 {dimension_numbers = #tpu.dot_dimension_numbers<[1], [0], [0], [1], [0, 0, 1, 1], [], []>} : vector<128x64xbf16>, vector<64x96xbf16>, vector<128x96xf32> -> vector<128x96xf32>
    %26 = arith.addf %22, %25 : vector<128x96xf32>
    %c2 = arith.constant 2 : index
    %c0_15 = arith.constant 0 : index
    %c0_16 = arith.constant 0 : index
    %27 = vector.load %arg3[%c2, %c0_15, %c0_16] : memref<5x64x96xbf16, #tpu.memory_space<vmem>>, vector<1x64x96xbf16>
    %28 = vector.shape_cast %27 : vector<1x64x96xbf16> to vector<64x96xbf16>
    %cst_17 = arith.constant dense<0.000000e+00> : vector<128x96xf32>
    %29 = tpu.matmul %13, %28, %cst_17 {dimension_numbers = #tpu.dot_dimension_numbers<[1], [0], [0], [1], [0, 0, 1, 1], [], []>} : vector<128x64xbf16>, vector<64x96xbf16>, vector<128x96xf32> -> vector<128x96xf32>
    %30 = arith.addf %26, %29 : vector<128x96xf32>
    %c3 = arith.constant 3 : index
    %c0_18 = arith.constant 0 : index
    %c0_19 = arith.constant 0 : index
    %31 = vector.load %arg3[%c3, %c0_18, %c0_19] : memref<5x64x96xbf16, #tpu.memory_space<vmem>>, vector<1x64x96xbf16>
    %32 = vector.shape_cast %31 : vector<1x64x96xbf16> to vector<64x96xbf16>
    %cst_20 = arith.constant dense<0.000000e+00> : vector<128x96xf32>
    %33 = tpu.matmul %15, %32, %cst_20 {dimension_numbers = #tpu.dot_dimension_numbers<[1], [0], [0], [1], [0, 0, 1, 1], [], []>} : vector<128x64xbf16>, vector<64x96xbf16>, vector<128x96xf32> -> vector<128x96xf32>
    %34 = arith.addf %30, %33 : vector<128x96xf32>
    %c4 = arith.constant 4 : index
    %c0_21 = arith.constant 0 : index
    %c0_22 = arith.constant 0 : index
    %35 = vector.load %arg3[%c4, %c0_21, %c0_22] : memref<5x64x96xbf16, #tpu.memory_space<vmem>>, vector<1x64x96xbf16>
    %36 = vector.shape_cast %35 : vector<1x64x96xbf16> to vector<64x96xbf16>
    %cst_23 = arith.constant dense<0.000000e+00> : vector<128x96xf32>
    %37 = tpu.matmul %17, %36, %cst_23 {dimension_numbers = #tpu.dot_dimension_numbers<[1], [0], [0], [1], [0, 0, 1, 1], [], []>} : vector<128x64xbf16>, vector<64x96xbf16>, vector<128x96xf32> -> vector<128x96xf32>
    %38 = arith.addf %34, %37 : vector<128x96xf32>
    %c0_24 = arith.constant 0 : index
    %c0_25 = arith.constant 0 : index
    %39 = vector.load %arg5[%c0_24, %c0_25] : memref<1x96xf32, #tpu.memory_space<vmem>>, vector<1x96xf32>
    %40 = vector.broadcast %39 : vector<1x96xf32> to vector<128x96xf32>
    %41 = arith.addf %38, %40 : vector<128x96xf32>
    %42 = vector.extract_strided_slice %41 {offsets = [0, 0], sizes = [128, 32], strides = [1, 1]} : vector<128x96xf32> to vector<128x32xf32>
    %43 = arith.negf %42 : vector<128x32xf32>
    %44 = math.exp %43 : vector<128x32xf32>
    %cst_26 = arith.constant 1.000000e+00 : f32
    %45 = vector.broadcast %cst_26 : f32 to vector<128x32xf32>
    %46 = arith.addf %45, %44 : vector<128x32xf32>
    %47 = arith.divf %45, %46 : vector<128x32xf32>
    %48 = vector.extract_strided_slice %41 {offsets = [0, 32], sizes = [128, 32], strides = [1, 1]} : vector<128x96xf32> to vector<128x32xf32>
    %49 = arith.negf %48 : vector<128x32xf32>
    %50 = math.exp %49 : vector<128x32xf32>
    %cst_27 = arith.constant 1.000000e+00 : f32
    %51 = vector.broadcast %cst_27 : f32 to vector<128x32xf32>
    %52 = arith.addf %51, %50 : vector<128x32xf32>
    %53 = arith.divf %51, %52 : vector<128x32xf32>
    %54 = vector.extract_strided_slice %41 {offsets = [0, 64], sizes = [128, 32], strides = [1, 1]} : vector<128x96xf32> to vector<128x32xf32>
    %55 = vector.shape_cast %1 : vector<8x16x32xf32> to vector<128x32xf32>
    %56 = arith.mulf %53, %55 : vector<128x32xf32>
    %57 = arith.truncf %56 : vector<128x32xf32> to vector<128x32xbf16>
    %58 = vector.shape_cast %57 : vector<128x32xbf16> to vector<8x16x32xbf16>
    %cst_28 = arith.constant 0.000000e+00 : bf16
    %59 = vector.broadcast %cst_28 : bf16 to vector<8x2x32xbf16>
    %60 = tpu.concatenate %59, %58, %59 in 1 : vector<8x2x32xbf16>, vector<8x16x32xbf16>, vector<8x2x32xbf16> -> vector<8x20x32xbf16>
    %61 = vector.extract_strided_slice %60 {offsets = [0, 0, 0], sizes = [8, 16, 32], strides = [1, 1, 1]} : vector<8x20x32xbf16> to vector<8x16x32xbf16>
    %62 = vector.shape_cast %61 : vector<8x16x32xbf16> to vector<128x32xbf16>
    %63 = vector.extract_strided_slice %60 {offsets = [0, 1, 0], sizes = [8, 16, 32], strides = [1, 1, 1]} : vector<8x20x32xbf16> to vector<8x16x32xbf16>
    %64 = vector.shape_cast %63 : vector<8x16x32xbf16> to vector<128x32xbf16>
    %65 = vector.extract_strided_slice %60 {offsets = [0, 2, 0], sizes = [8, 16, 32], strides = [1, 1, 1]} : vector<8x20x32xbf16> to vector<8x16x32xbf16>
    %66 = vector.shape_cast %65 : vector<8x16x32xbf16> to vector<128x32xbf16>
    %67 = vector.extract_strided_slice %60 {offsets = [0, 3, 0], sizes = [8, 16, 32], strides = [1, 1, 1]} : vector<8x20x32xbf16> to vector<8x16x32xbf16>
    %68 = vector.shape_cast %67 : vector<8x16x32xbf16> to vector<128x32xbf16>
    %69 = vector.extract_strided_slice %60 {offsets = [0, 4, 0], sizes = [8, 16, 32], strides = [1, 1, 1]} : vector<8x20x32xbf16> to vector<8x16x32xbf16>
    %70 = vector.shape_cast %69 : vector<8x16x32xbf16> to vector<128x32xbf16>
    %cst_29 = arith.constant 0.000000e+00 : f32
    %71 = vector.broadcast %cst_29 : f32 to vector<128x32xf32>
    %c0_30 = arith.constant 0 : index
    %c0_31 = arith.constant 0 : index
    %c0_32 = arith.constant 0 : index
    %72 = vector.load %arg4[%c0_30, %c0_31, %c0_32] : memref<5x32x32xbf16, #tpu.memory_space<vmem>>, vector<1x32x32xbf16>
    %73 = vector.shape_cast %72 : vector<1x32x32xbf16> to vector<32x32xbf16>
    %cst_33 = arith.constant dense<0.000000e+00> : vector<128x32xf32>
    %74 = tpu.matmul %62, %73, %cst_33 {dimension_numbers = #tpu.dot_dimension_numbers<[1], [0], [0], [1], [0, 0, 1, 1], [], []>} : vector<128x32xbf16>, vector<32x32xbf16>, vector<128x32xf32> -> vector<128x32xf32>
    %75 = arith.addf %71, %74 : vector<128x32xf32>
    %c1_34 = arith.constant 1 : index
    %c0_35 = arith.constant 0 : index
    %c0_36 = arith.constant 0 : index
    %76 = vector.load %arg4[%c1_34, %c0_35, %c0_36] : memref<5x32x32xbf16, #tpu.memory_space<vmem>>, vector<1x32x32xbf16>
    %77 = vector.shape_cast %76 : vector<1x32x32xbf16> to vector<32x32xbf16>
    %cst_37 = arith.constant dense<0.000000e+00> : vector<128x32xf32>
    %78 = tpu.matmul %64, %77, %cst_37 {dimension_numbers = #tpu.dot_dimension_numbers<[1], [0], [0], [1], [0, 0, 1, 1], [], []>} : vector<128x32xbf16>, vector<32x32xbf16>, vector<128x32xf32> -> vector<128x32xf32>
    %79 = arith.addf %75, %78 : vector<128x32xf32>
    %c2_38 = arith.constant 2 : index
    %c0_39 = arith.constant 0 : index
    %c0_40 = arith.constant 0 : index
    %80 = vector.load %arg4[%c2_38, %c0_39, %c0_40] : memref<5x32x32xbf16, #tpu.memory_space<vmem>>, vector<1x32x32xbf16>
    %81 = vector.shape_cast %80 : vector<1x32x32xbf16> to vector<32x32xbf16>
    %cst_41 = arith.constant dense<0.000000e+00> : vector<128x32xf32>
    %82 = tpu.matmul %66, %81, %cst_41 {dimension_numbers = #tpu.dot_dimension_numbers<[1], [0], [0], [1], [0, 0, 1, 1], [], []>} : vector<128x32xbf16>, vector<32x32xbf16>, vector<128x32xf32> -> vector<128x32xf32>
    %83 = arith.addf %79, %82 : vector<128x32xf32>
    %c3_42 = arith.constant 3 : index
    %c0_43 = arith.constant 0 : index
    %c0_44 = arith.constant 0 : index
    %84 = vector.load %arg4[%c3_42, %c0_43, %c0_44] : memref<5x32x32xbf16, #tpu.memory_space<vmem>>, vector<1x32x32xbf16>
    %85 = vector.shape_cast %84 : vector<1x32x32xbf16> to vector<32x32xbf16>
    %cst_45 = arith.constant dense<0.000000e+00> : vector<128x32xf32>
    %86 = tpu.matmul %68, %85, %cst_45 {dimension_numbers = #tpu.dot_dimension_numbers<[1], [0], [0], [1], [0, 0, 1, 1], [], []>} : vector<128x32xbf16>, vector<32x32xbf16>, vector<128x32xf32> -> vector<128x32xf32>
    %87 = arith.addf %83, %86 : vector<128x32xf32>
    %c4_46 = arith.constant 4 : index
    %c0_47 = arith.constant 0 : index
    %c0_48 = arith.constant 0 : index
    %88 = vector.load %arg4[%c4_46, %c0_47, %c0_48] : memref<5x32x32xbf16, #tpu.memory_space<vmem>>, vector<1x32x32xbf16>
    %89 = vector.shape_cast %88 : vector<1x32x32xbf16> to vector<32x32xbf16>
    %cst_49 = arith.constant dense<0.000000e+00> : vector<128x32xf32>
    %90 = tpu.matmul %70, %89, %cst_49 {dimension_numbers = #tpu.dot_dimension_numbers<[1], [0], [0], [1], [0, 0, 1, 1], [], []>} : vector<128x32xbf16>, vector<32x32xbf16>, vector<128x32xf32> -> vector<128x32xf32>
    %91 = arith.addf %87, %90 : vector<128x32xf32>
    %92 = arith.addf %91, %54 : vector<128x32xf32>
    %93 = math.tanh %92 : vector<128x32xf32>
    %cst_50 = arith.constant 1.000000e+00 : f32
    %94 = vector.broadcast %cst_50 : f32 to vector<128x32xf32>
    %95 = arith.subf %94, %47 : vector<128x32xf32>
    %96 = arith.mulf %95, %55 : vector<128x32xf32>
    %97 = arith.mulf %47, %93 : vector<128x32xf32>
    %98 = arith.addf %96, %97 : vector<128x32xf32>
    %99 = vector.shape_cast %98 : vector<128x32xf32> to vector<8x16x32xf32>
    %100 = arith.truncf %99 : vector<8x16x32xf32> to vector<8x16x32xbf16>
    %101 = tpu.concatenate %100, %3 in 2 : vector<8x16x32xbf16>, vector<8x16x32xbf16> -> vector<8x16x64xbf16>
    %cst_51 = arith.constant 0.000000e+00 : bf16
    %102 = vector.broadcast %cst_51 : bf16 to vector<2x16x64xbf16>
    %103 = tpu.concatenate %102, %101, %102 in 0 : vector<2x16x64xbf16>, vector<8x16x64xbf16>, vector<2x16x64xbf16> -> vector<12x16x64xbf16>
    %104 = vector.extract_strided_slice %103 {offsets = [0, 0, 0], sizes = [8, 16, 64], strides = [1, 1, 1]} : vector<12x16x64xbf16> to vector<8x16x64xbf16>
    %105 = vector.shape_cast %104 : vector<8x16x64xbf16> to vector<128x64xbf16>
    %106 = vector.extract_strided_slice %103 {offsets = [1, 0, 0], sizes = [8, 16, 64], strides = [1, 1, 1]} : vector<12x16x64xbf16> to vector<8x16x64xbf16>
    %107 = vector.shape_cast %106 : vector<8x16x64xbf16> to vector<128x64xbf16>
    %108 = vector.extract_strided_slice %103 {offsets = [2, 0, 0], sizes = [8, 16, 64], strides = [1, 1, 1]} : vector<12x16x64xbf16> to vector<8x16x64xbf16>
    %109 = vector.shape_cast %108 : vector<8x16x64xbf16> to vector<128x64xbf16>
    %110 = vector.extract_strided_slice %103 {offsets = [3, 0, 0], sizes = [8, 16, 64], strides = [1, 1, 1]} : vector<12x16x64xbf16> to vector<8x16x64xbf16>
    %111 = vector.shape_cast %110 : vector<8x16x64xbf16> to vector<128x64xbf16>
    %112 = vector.extract_strided_slice %103 {offsets = [4, 0, 0], sizes = [8, 16, 64], strides = [1, 1, 1]} : vector<12x16x64xbf16> to vector<8x16x64xbf16>
    %113 = vector.shape_cast %112 : vector<8x16x64xbf16> to vector<128x64xbf16>
    %cst_52 = arith.constant 0.000000e+00 : f32
    %114 = vector.broadcast %cst_52 : f32 to vector<128x96xf32>
    %c0_53 = arith.constant 0 : index
    %c0_54 = arith.constant 0 : index
    %c0_55 = arith.constant 0 : index
    %115 = vector.load %arg6[%c0_53, %c0_54, %c0_55] : memref<5x64x96xbf16, #tpu.memory_space<vmem>>, vector<1x64x96xbf16>
    %116 = vector.shape_cast %115 : vector<1x64x96xbf16> to vector<64x96xbf16>
    %cst_56 = arith.constant dense<0.000000e+00> : vector<128x96xf32>
    %117 = tpu.matmul %105, %116, %cst_56 {dimension_numbers = #tpu.dot_dimension_numbers<[1], [0], [0], [1], [0, 0, 1, 1], [], []>} : vector<128x64xbf16>, vector<64x96xbf16>, vector<128x96xf32> -> vector<128x96xf32>
    %118 = arith.addf %114, %117 : vector<128x96xf32>
    %c1_57 = arith.constant 1 : index
    %c0_58 = arith.constant 0 : index
    %c0_59 = arith.constant 0 : index
    %119 = vector.load %arg6[%c1_57, %c0_58, %c0_59] : memref<5x64x96xbf16, #tpu.memory_space<vmem>>, vector<1x64x96xbf16>
    %120 = vector.shape_cast %119 : vector<1x64x96xbf16> to vector<64x96xbf16>
    %cst_60 = arith.constant dense<0.000000e+00> : vector<128x96xf32>
    %121 = tpu.matmul %107, %120, %cst_60 {dimension_numbers = #tpu.dot_dimension_numbers<[1], [0], [0], [1], [0, 0, 1, 1], [], []>} : vector<128x64xbf16>, vector<64x96xbf16>, vector<128x96xf32> -> vector<128x96xf32>
    %122 = arith.addf %118, %121 : vector<128x96xf32>
    %c2_61 = arith.constant 2 : index
    %c0_62 = arith.constant 0 : index
    %c0_63 = arith.constant 0 : index
    %123 = vector.load %arg6[%c2_61, %c0_62, %c0_63] : memref<5x64x96xbf16, #tpu.memory_space<vmem>>, vector<1x64x96xbf16>
    %124 = vector.shape_cast %123 : vector<1x64x96xbf16> to vector<64x96xbf16>
    %cst_64 = arith.constant dense<0.000000e+00> : vector<128x96xf32>
    %125 = tpu.matmul %109, %124, %cst_64 {dimension_numbers = #tpu.dot_dimension_numbers<[1], [0], [0], [1], [0, 0, 1, 1], [], []>} : vector<128x64xbf16>, vector<64x96xbf16>, vector<128x96xf32> -> vector<128x96xf32>
    %126 = arith.addf %122, %125 : vector<128x96xf32>
    %c3_65 = arith.constant 3 : index
    %c0_66 = arith.constant 0 : index
    %c0_67 = arith.constant 0 : index
    %127 = vector.load %arg6[%c3_65, %c0_66, %c0_67] : memref<5x64x96xbf16, #tpu.memory_space<vmem>>, vector<1x64x96xbf16>
    %128 = vector.shape_cast %127 : vector<1x64x96xbf16> to vector<64x96xbf16>
    %cst_68 = arith.constant dense<0.000000e+00> : vector<128x96xf32>
    %129 = tpu.matmul %111, %128, %cst_68 {dimension_numbers = #tpu.dot_dimension_numbers<[1], [0], [0], [1], [0, 0, 1, 1], [], []>} : vector<128x64xbf16>, vector<64x96xbf16>, vector<128x96xf32> -> vector<128x96xf32>
    %130 = arith.addf %126, %129 : vector<128x96xf32>
    %c4_69 = arith.constant 4 : index
    %c0_70 = arith.constant 0 : index
    %c0_71 = arith.constant 0 : index
    %131 = vector.load %arg6[%c4_69, %c0_70, %c0_71] : memref<5x64x96xbf16, #tpu.memory_space<vmem>>, vector<1x64x96xbf16>
    %132 = vector.shape_cast %131 : vector<1x64x96xbf16> to vector<64x96xbf16>
    %cst_72 = arith.constant dense<0.000000e+00> : vector<128x96xf32>
    %133 = tpu.matmul %113, %132, %cst_72 {dimension_numbers = #tpu.dot_dimension_numbers<[1], [0], [0], [1], [0, 0, 1, 1], [], []>} : vector<128x64xbf16>, vector<64x96xbf16>, vector<128x96xf32> -> vector<128x96xf32>
    %134 = arith.addf %130, %133 : vector<128x96xf32>
    %c0_73 = arith.constant 0 : index
    %c0_74 = arith.constant 0 : index
    %135 = vector.load %arg8[%c0_73, %c0_74] : memref<1x96xf32, #tpu.memory_space<vmem>>, vector<1x96xf32>
    %136 = vector.broadcast %135 : vector<1x96xf32> to vector<128x96xf32>
    %137 = arith.addf %134, %136 : vector<128x96xf32>
    %138 = vector.extract_strided_slice %137 {offsets = [0, 0], sizes = [128, 32], strides = [1, 1]} : vector<128x96xf32> to vector<128x32xf32>
    %139 = arith.negf %138 : vector<128x32xf32>
    %140 = math.exp %139 : vector<128x32xf32>
    %cst_75 = arith.constant 1.000000e+00 : f32
    %141 = vector.broadcast %cst_75 : f32 to vector<128x32xf32>
    %142 = arith.addf %141, %140 : vector<128x32xf32>
    %143 = arith.divf %141, %142 : vector<128x32xf32>
    %144 = vector.extract_strided_slice %137 {offsets = [0, 32], sizes = [128, 32], strides = [1, 1]} : vector<128x96xf32> to vector<128x32xf32>
    %145 = arith.negf %144 : vector<128x32xf32>
    %146 = math.exp %145 : vector<128x32xf32>
    %cst_76 = arith.constant 1.000000e+00 : f32
    %147 = vector.broadcast %cst_76 : f32 to vector<128x32xf32>
    %148 = arith.addf %147, %146 : vector<128x32xf32>
    %149 = arith.divf %147, %148 : vector<128x32xf32>
    %150 = vector.extract_strided_slice %137 {offsets = [0, 64], sizes = [128, 32], strides = [1, 1]} : vector<128x96xf32> to vector<128x32xf32>
    %151 = vector.shape_cast %99 : vector<8x16x32xf32> to vector<128x32xf32>
    %152 = arith.mulf %149, %151 : vector<128x32xf32>
    %153 = arith.truncf %152 : vector<128x32xf32> to vector<128x32xbf16>
    %154 = vector.shape_cast %153 : vector<128x32xbf16> to vector<8x16x32xbf16>
    %cst_77 = arith.constant 0.000000e+00 : bf16
    %155 = vector.broadcast %cst_77 : bf16 to vector<2x16x32xbf16>
    %156 = tpu.concatenate %155, %154, %155 in 0 : vector<2x16x32xbf16>, vector<8x16x32xbf16>, vector<2x16x32xbf16> -> vector<12x16x32xbf16>
    %157 = vector.extract_strided_slice %156 {offsets = [0, 0, 0], sizes = [8, 16, 32], strides = [1, 1, 1]} : vector<12x16x32xbf16> to vector<8x16x32xbf16>
    %158 = vector.shape_cast %157 : vector<8x16x32xbf16> to vector<128x32xbf16>
    %159 = vector.extract_strided_slice %156 {offsets = [1, 0, 0], sizes = [8, 16, 32], strides = [1, 1, 1]} : vector<12x16x32xbf16> to vector<8x16x32xbf16>
    %160 = vector.shape_cast %159 : vector<8x16x32xbf16> to vector<128x32xbf16>
    %161 = vector.extract_strided_slice %156 {offsets = [2, 0, 0], sizes = [8, 16, 32], strides = [1, 1, 1]} : vector<12x16x32xbf16> to vector<8x16x32xbf16>
    %162 = vector.shape_cast %161 : vector<8x16x32xbf16> to vector<128x32xbf16>
    %163 = vector.extract_strided_slice %156 {offsets = [3, 0, 0], sizes = [8, 16, 32], strides = [1, 1, 1]} : vector<12x16x32xbf16> to vector<8x16x32xbf16>
    %164 = vector.shape_cast %163 : vector<8x16x32xbf16> to vector<128x32xbf16>
    %165 = vector.extract_strided_slice %156 {offsets = [4, 0, 0], sizes = [8, 16, 32], strides = [1, 1, 1]} : vector<12x16x32xbf16> to vector<8x16x32xbf16>
    %166 = vector.shape_cast %165 : vector<8x16x32xbf16> to vector<128x32xbf16>
    %cst_78 = arith.constant 0.000000e+00 : f32
    %167 = vector.broadcast %cst_78 : f32 to vector<128x32xf32>
    %c0_79 = arith.constant 0 : index
    %c0_80 = arith.constant 0 : index
    %c0_81 = arith.constant 0 : index
    %168 = vector.load %arg7[%c0_79, %c0_80, %c0_81] : memref<5x32x32xbf16, #tpu.memory_space<vmem>>, vector<1x32x32xbf16>
    %169 = vector.shape_cast %168 : vector<1x32x32xbf16> to vector<32x32xbf16>
    %cst_82 = arith.constant dense<0.000000e+00> : vector<128x32xf32>
    %170 = tpu.matmul %158, %169, %cst_82 {dimension_numbers = #tpu.dot_dimension_numbers<[1], [0], [0], [1], [0, 0, 1, 1], [], []>} : vector<128x32xbf16>, vector<32x32xbf16>, vector<128x32xf32> -> vector<128x32xf32>
    %171 = arith.addf %167, %170 : vector<128x32xf32>
    %c1_83 = arith.constant 1 : index
    %c0_84 = arith.constant 0 : index
    %c0_85 = arith.constant 0 : index
    %172 = vector.load %arg7[%c1_83, %c0_84, %c0_85] : memref<5x32x32xbf16, #tpu.memory_space<vmem>>, vector<1x32x32xbf16>
    %173 = vector.shape_cast %172 : vector<1x32x32xbf16> to vector<32x32xbf16>
    %cst_86 = arith.constant dense<0.000000e+00> : vector<128x32xf32>
    %174 = tpu.matmul %160, %173, %cst_86 {dimension_numbers = #tpu.dot_dimension_numbers<[1], [0], [0], [1], [0, 0, 1, 1], [], []>} : vector<128x32xbf16>, vector<32x32xbf16>, vector<128x32xf32> -> vector<128x32xf32>
    %175 = arith.addf %171, %174 : vector<128x32xf32>
    %c2_87 = arith.constant 2 : index
    %c0_88 = arith.constant 0 : index
    %c0_89 = arith.constant 0 : index
    %176 = vector.load %arg7[%c2_87, %c0_88, %c0_89] : memref<5x32x32xbf16, #tpu.memory_space<vmem>>, vector<1x32x32xbf16>
    %177 = vector.shape_cast %176 : vector<1x32x32xbf16> to vector<32x32xbf16>
    %cst_90 = arith.constant dense<0.000000e+00> : vector<128x32xf32>
    %178 = tpu.matmul %162, %177, %cst_90 {dimension_numbers = #tpu.dot_dimension_numbers<[1], [0], [0], [1], [0, 0, 1, 1], [], []>} : vector<128x32xbf16>, vector<32x32xbf16>, vector<128x32xf32> -> vector<128x32xf32>
    %179 = arith.addf %175, %178 : vector<128x32xf32>
    %c3_91 = arith.constant 3 : index
    %c0_92 = arith.constant 0 : index
    %c0_93 = arith.constant 0 : index
    %180 = vector.load %arg7[%c3_91, %c0_92, %c0_93] : memref<5x32x32xbf16, #tpu.memory_space<vmem>>, vector<1x32x32xbf16>
    %181 = vector.shape_cast %180 : vector<1x32x32xbf16> to vector<32x32xbf16>
    %cst_94 = arith.constant dense<0.000000e+00> : vector<128x32xf32>
    %182 = tpu.matmul %164, %181, %cst_94 {dimension_numbers = #tpu.dot_dimension_numbers<[1], [0], [0], [1], [0, 0, 1, 1], [], []>} : vector<128x32xbf16>, vector<32x32xbf16>, vector<128x32xf32> -> vector<128x32xf32>
    %183 = arith.addf %179, %182 : vector<128x32xf32>
    %c4_95 = arith.constant 4 : index
    %c0_96 = arith.constant 0 : index
    %c0_97 = arith.constant 0 : index
    %184 = vector.load %arg7[%c4_95, %c0_96, %c0_97] : memref<5x32x32xbf16, #tpu.memory_space<vmem>>, vector<1x32x32xbf16>
    %185 = vector.shape_cast %184 : vector<1x32x32xbf16> to vector<32x32xbf16>
    %cst_98 = arith.constant dense<0.000000e+00> : vector<128x32xf32>
    %186 = tpu.matmul %166, %185, %cst_98 {dimension_numbers = #tpu.dot_dimension_numbers<[1], [0], [0], [1], [0, 0, 1, 1], [], []>} : vector<128x32xbf16>, vector<32x32xbf16>, vector<128x32xf32> -> vector<128x32xf32>
    %187 = arith.addf %183, %186 : vector<128x32xf32>
    %188 = arith.addf %187, %150 : vector<128x32xf32>
    %189 = math.tanh %188 : vector<128x32xf32>
    %cst_99 = arith.constant 1.000000e+00 : f32
    %190 = vector.broadcast %cst_99 : f32 to vector<128x32xf32>
    %191 = arith.subf %190, %143 : vector<128x32xf32>
    %192 = arith.mulf %191, %151 : vector<128x32xf32>
    %193 = arith.mulf %143, %189 : vector<128x32xf32>
    %194 = arith.addf %192, %193 : vector<128x32xf32>
    %195 = vector.shape_cast %194 : vector<128x32xf32> to vector<8x16x32xf32>
    %196 = arith.cmpf one, %195, %195 : vector<8x16x32xf32>
    %cst_100 = arith.constant 0.000000e+00 : f32
    %197 = vector.broadcast %cst_100 : f32 to vector<8x16x32xf32>
    %198 = arith.select %196, %197, %195 : vector<8x16x32xi1>, vector<8x16x32xf32>
    %cst_101 = arith.constant 0x7F800000 : f32
    %199 = vector.broadcast %cst_101 : f32 to vector<8x16x32xf32>
    %200 = arith.cmpf oeq, %198, %199 : vector<8x16x32xf32>
    %cst_102 = arith.constant 3.40282347E+38 : f32
    %201 = vector.broadcast %cst_102 : f32 to vector<8x16x32xf32>
    %202 = arith.select %200, %201, %198 : vector<8x16x32xi1>, vector<8x16x32xf32>
    %cst_103 = arith.constant 0xFF800000 : f32
    %203 = vector.broadcast %cst_103 : f32 to vector<8x16x32xf32>
    %204 = arith.cmpf oeq, %202, %203 : vector<8x16x32xf32>
    %cst_104 = arith.constant -3.40282347E+38 : f32
    %205 = vector.broadcast %cst_104 : f32 to vector<8x16x32xf32>
    %206 = arith.select %204, %205, %202 : vector<8x16x32xi1>, vector<8x16x32xf32>
    %c0_105 = arith.constant 0 : index
    %c0_106 = arith.constant 0 : index
    %c0_107 = arith.constant 0 : index
    %c0_108 = arith.constant 0 : index
    %207 = vector.load %arg9[%c0_105, %c0_106, %c0_107, %c0_108] : memref<1x8x16x32xf32, #tpu.memory_space<vmem>>, vector<1x8x16x32xf32>
    %208 = vector.shape_cast %207 : vector<1x8x16x32xf32> to vector<8x16x32xf32>
    %209 = vector.shape_cast %206 : vector<8x16x32xf32> to vector<1x8x16x32xf32>
    tpu.vector_store %arg9[%c0_105, %c0_106, %c0_107, %c0_108], %209 {strides = array<i32>} : memref<1x8x16x32xf32, #tpu.memory_space<vmem>>, vector<1x8x16x32xf32>,
    return
  }
  func.func @transform_0(%arg0: i32) -> (i32, i32, i32, i32) {
    %c0_i32 = arith.constant 0 : i32
    %c0_i32_0 = arith.constant 0 : i32
    %c0_i32_1 = arith.constant 0 : i32
    %c0_i32_2 = arith.constant 0 : i32
    return %arg0, %c0_i32, %c0_i32_0, %c0_i32_1 : i32, i32, i32, i32
  }
  func.func @transform_1(%arg0: i32) -> (i32, i32, i32, i32) {
    %c0_i32 = arith.constant 0 : i32
    %c0_i32_0 = arith.constant 0 : i32
    %c0_i32_1 = arith.constant 0 : i32
    %c0_i32_2 = arith.constant 0 : i32
    return %arg0, %c0_i32, %c0_i32_0, %c0_i32_1 : i32, i32, i32, i32
  }
  func.func @transform_2(%arg0: i32) -> (i32, i32, i32) {
    %c0_i32 = arith.constant 0 : i32
    %c0_i32_0 = arith.constant 0 : i32
    %c0_i32_1 = arith.constant 0 : i32
    %c0_i32_2 = arith.constant 0 : i32
    return %c0_i32, %c0_i32_0, %c0_i32_1 : i32, i32, i32
  }
  func.func @transform_3(%arg0: i32) -> (i32, i32, i32) {
    %c0_i32 = arith.constant 0 : i32
    %c0_i32_0 = arith.constant 0 : i32
    %c0_i32_1 = arith.constant 0 : i32
    %c0_i32_2 = arith.constant 0 : i32
    return %c0_i32, %c0_i32_0, %c0_i32_1 : i32, i32, i32
  }
  func.func @transform_4(%arg0: i32) -> (i32, i32) {
    %c0_i32 = arith.constant 0 : i32
    %c0_i32_0 = arith.constant 0 : i32
    %c0_i32_1 = arith.constant 0 : i32
    return %c0_i32, %c0_i32_0 : i32, i32
  }
  func.func @transform_5(%arg0: i32) -> (i32, i32, i32) {
    %c0_i32 = arith.constant 0 : i32
    %c0_i32_0 = arith.constant 0 : i32
    %c0_i32_1 = arith.constant 0 : i32
    %c0_i32_2 = arith.constant 0 : i32
    return %c0_i32, %c0_i32_0, %c0_i32_1 : i32, i32, i32
  }
  func.func @transform_6(%arg0: i32) -> (i32, i32, i32) {
    %c0_i32 = arith.constant 0 : i32
    %c0_i32_0 = arith.constant 0 : i32
    %c0_i32_1 = arith.constant 0 : i32
    %c0_i32_2 = arith.constant 0 : i32
    return %c0_i32, %c0_i32_0, %c0_i32_1 : i32, i32, i32
  }
  func.func @transform_7(%arg0: i32) -> (i32, i32) {
    %c0_i32 = arith.constant 0 : i32
    %c0_i32_0 = arith.constant 0 : i32
    %c0_i32_1 = arith.constant 0 : i32
    return %c0_i32, %c0_i32_0 : i32, i32
  }
  func.func @transform_8(%arg0: i32) -> (i32, i32, i32, i32) {
    %c0_i32 = arith.constant 0 : i32
    %c0_i32_0 = arith.constant 0 : i32
    %c0_i32_1 = arith.constant 0 : i32
    %c0_i32_2 = arith.constant 0 : i32
    return %arg0, %c0_i32, %c0_i32_0, %c0_i32_1 : i32, i32, i32, i32
  }
}

</mosaic_0001>

<llo_original>
// kernel: gru2d_pallas.1
$region0: #{gru2d_pallas.1}
  #allocation0 [shape = 'u32[]', space=smem, size = 0x4, offset = 0x4, fixed_abs, tag = 'smem constant byte address 0x4 - core index']
  #allocation1 [shape = 'u32[144,128]{1,0:T(1,128)}', space=vmem, size = 0x12000, scoped, tag = 'internal scratch']
  %s0 = inlined_call_operand.vmem [shape: f32[2,8,16,32], index: 0, kind: input, shape index: {}, may-alias: {0,8}]
  %s1 = inlined_call_operand.vmem [shape: bf16[2,8,16,32], index: 1, kind: input, shape index: {}]
  %s2 = inlined_call_operand.vmem [shape: bf16[5,64,96], index: 2, kind: input, shape index: {}]
  %s3 = inlined_call_operand.hbm [shape: bf16[5,32,32], index: 3, kind: input, shape index: {}]
  %s4 = inlined_call_operand.vmem [shape: f32[1,96], index: 4, kind: input, shape index: {}]
  %s5 = inlined_call_operand.vmem [shape: bf16[5,64,96], index: 5, kind: input, shape index: {}]
  %s6 = inlined_call_operand.hbm [shape: bf16[5,32,32], index: 6, kind: input, shape index: {}]
  %s7 = inlined_call_operand.vmem [shape: f32[1,96], index: 7, kind: input, shape index: {}]
  %s8 = inlined_call_operand.vmem [shape: f32[2,8,16,32], index: 8, kind: output, shape index: {}, may-alias: {0,8}]
  %s9 = sld [smem:[#allocation0]]
  $region73: #{gru2d_pallas.1} parent=0
    _
  %s11 = ssub.s32 1, %s9
  %s12 = scalar_select 0, %s11, %s9
  $region1: #{gru2d_pallas.1} parent=0
    #allocation2 [shape = 'u8[40960]{0}', space=vmem, size = 0xa000, scoped, tag = 'input window, operand 3, single buffered']
    #allocation3 [shape = 's32[2]{0}', space=sflag, size = 0x8, scoped, tag = 'scoped memory for gru2d_pallas.1']
    #allocation4 [shape = 'u8[40960]{0}', space=vmem, size = 0xa000, scoped, tag = 'input window, operand 6, single buffered']
    #allocation5 [shape = 's32[1]{0}', space=sflag, size = 0x4, scoped, tag = 'scoped memory for gru2d_pallas.1']
    %13 = vsyncpa [#allocation3], 0
    %14 = vsyncpa [#allocation5], 0
    loop: start=0, step=1, limit=4
    $region2: #{gru2d_pallas.1} parent=1 // loop_pre_header
      _
    $region3: #{gru2d_pallas.1} parent=1 // loop_header
      %s16 = sphi 0, %s20
      %p17 = scmp.ge.s32.totalorder %s16, 4
      %s26 = sphi 0, %s28
      %s29 = sphi 0, %s26
      %s30 = sphi 0, %s29
      %s46 = sphi 0, %s30
      %s52 = sphi 0, %s54
      %s55 = sphi 0, %s52
      %s56 = sphi 0, %s55
      %s72 = sphi 0, %s56
      %s76 = sphi 0, %s76
      %s78 = sphi 0, %s76
      %s79 = sphi 0, %s78
      %s93 = sphi 0, %s79
      %s97 = sphi 0, %s97
      %s99 = sphi 0, %s97
      %s100 = sphi 0, %s99
      %s114 = sphi 0, %s100
      %s118 = sphi 0, %s118
      %s120 = sphi 0, %s118
      %s121 = sphi 0, %s120
      %s135 = sphi 0, %s121
      %s139 = sphi 0, %s139
      %s141 = sphi 0, %s139
      %s142 = sphi 0, %s141
      %s156 = sphi 0, %s142
      %s160 = sphi 0, %s160
      %s162 = sphi 0, %s160
      %s163 = sphi 0, %s162
      %s177 = sphi 0, %s163
      %s181 = sphi 0, %s181
      %s183 = sphi 0, %s181
      %s184 = sphi 0, %s183
      %s198 = sphi 0, %s184
      %s204 = sphi 0, %s206
      %s207 = sphi 0, %s204
      %s208 = sphi 0, %s207
      %s224 = sphi 0, %s208
    $region4: #{gru2d_pallas.1} parent=1 // loop_header_branch
      %19 = sbr.rel (%p17) target = $region8
    $region5: #{gru2d_pallas.1} parent=1 // loop_body
      %s21 = ssub.s32 %s16, 1
      %s22 = ssub.s32 %s16, 2
      %s23 = sadd.s32 %s16, 1
      %s24 = ssub.s32 %s16, %s23
      %p25 = scmp.eq.s32.totalorder %s24, 0
      %s27 = sadd.s32 %s26, 1
      %s28 = scalar_select %p25, %s26, %s27
      %p31 = pneg %p25
      %p32 = scmp.eq.s32.totalorder %s16, 1
      %p33 = por %p31, %p32
      %p34 = scmp.ne.s32.totalorder %s26, %s29
      %p35 = scmp.eq.s32.totalorder %s16, 0
      %p36 = por %p34, %p35
      %p37 = scmp.ne.s32.totalorder %s26, %s29
      %p38 = scmp.eq.s32.totalorder %s21, 1
      %p39 = por %p37, %p38
      %p40 = scmp.ne.s32.totalorder %s29, %s30
      %p41 = scmp.eq.s32.totalorder %s21, 0
      %p42 = por %p40, %p41
      %p43 = scmp.ne.s32.totalorder %s29, %s30
      %p44 = scmp.eq.s32.totalorder %s22, 1
      %p45 = por %p43, %p44
      %p47 = scmp.ne.s32.totalorder %s30, %s46
      %p48 = scmp.eq.s32.totalorder %s22, 0
      %p49 = por %p47, %p48
      %s50 = ssub.s32 %s16, %s23
      %p51 = scmp.eq.s32.totalorder %s50, 0
      %s53 = sadd.s32 %s52, 1
      %s54 = scalar_select %p51, %s52, %s53
      %p57 = pneg %p51
      %p58 = scmp.eq.s32.totalorder %s16, 1
      %p59 = por %p57, %p58
      %p60 = scmp.ne.s32.totalorder %s52, %s55
      %p61 = scmp.eq.s32.totalorder %s16, 0
      %p62 = por %p60, %p61
      %p63 = scmp.ne.s32.totalorder %s52, %s55
      %p64 = scmp.eq.s32.totalorder %s21, 1
      %p65 = por %p63, %p64
      %p66 = scmp.ne.s32.totalorder %s55, %s56
      %p67 = scmp.eq.s32.totalorder %s21, 0
      %p68 = por %p66, %p67
      %p69 = scmp.ne.s32.totalorder %s55, %s56
      %p70 = scmp.eq.s32.totalorder %s22, 1
      %p71 = por %p69, %p70
      %p73 = scmp.ne.s32.totalorder %s56, %s72
      %p74 = scmp.eq.s32.totalorder %s22, 0
      %p75 = por %p73, %p74
      %s77 = sadd.s32 %s76, 1
      %p80 = scmp.eq.s32.totalorder %s16, 1
      %p81 = scmp.ne.s32.totalorder %s76, %s78
      %p82 = scmp.eq.s32.totalorder %s16, 0
      %p83 = por %p81, %p82
      %p84 = scmp.ne.s32.totalorder %s76, %s78
      %p85 = scmp.eq.s32.totalorder %s21, 1
      %p86 = por %p84, %p85
      %p87 = scmp.ne.s32.totalorder %s78, %s79
      %p88 = scmp.eq.s32.totalorder %s21, 0
      %p89 = por %p87, %p88
      %p90 = scmp.ne.s32.totalorder %s78, %s79
      %p91 = scmp.eq.s32.totalorder %s22, 1
      %p92 = por %p90, %p91
      %p94 = scmp.ne.s32.totalorder %s79, %s93
      %p95 = scmp.eq.s32.totalorder %s22, 0
      %p96 = por %p94, %p95
      %s98 = sadd.s32 %s97, 1
      %p101 = scmp.eq.s32.totalorder %s16, 1
      %p102 = scmp.ne.s32.totalorder %s97, %s99
      %p103 = scmp.eq.s32.totalorder %s16, 0
      %p104 = por %p102, %p103
      %p105 = scmp.ne.s32.totalorder %s97, %s99
      %p106 = scmp.eq.s32.totalorder %s21, 1
      %p107 = por %p105, %p106
      %p108 = scmp.ne.s32.totalorder %s99, %s100
      %p109 = scmp.eq.s32.totalorder %s21, 0
      %p110 = por %p108, %p109
      %p111 = scmp.ne.s32.totalorder %s99, %s100
      %p112 = scmp.eq.s32.totalorder %s22, 1
      %p113 = por %p111, %p112
      %p115 = scmp.ne.s32.totalorder %s100, %s114
      %p116 = scmp.eq.s32.totalorder %s22, 0
      %p117 = por %p115, %p116
      %s119 = sadd.s32 %s118, 1
      %p122 = scmp.eq.s32.totalorder %s16, 1
      %p123 = scmp.ne.s32.totalorder %s118, %s120
      %p124 = scmp.eq.s32.totalorder %s16, 0
      %p125 = por %p123, %p124
      %p126 = scmp.ne.s32.totalorder %s118, %s120
      %p127 = scmp.eq.s32.totalorder %s21, 1
      %p128 = por %p126, %p127
      %p129 = scmp.ne.s32.totalorder %s120, %s121
      %p130 = scmp.eq.s32.totalorder %s21, 0
      %p131 = por %p129, %p130
      %p132 = scmp.ne.s32.totalorder %s120, %s121
      %p133 = scmp.eq.s32.totalorder %s22, 1
      %p134 = por %p132, %p133
      %p136 = scmp.ne.s32.totalorder %s121, %s135
      %p137 = scmp.eq.s32.totalorder %s22, 0
      %p138 = por %p136, %p137
      %s140 = sadd.s32 %s139, 1
      %p143 = scmp.eq.s32.totalorder %s16, 1
      %p144 = scmp.ne.s32.totalorder %s139, %s141
      %p145 = scmp.eq.s32.totalorder %s16, 0
      %p146 = por %p144, %p145
      %p147 = scmp.ne.s32.totalorder %s139, %s141
      %p148 = scmp.eq.s32.totalorder %s21, 1
      %p149 = por %p147, %p148
      %p150 = scmp.ne.s32.totalorder %s141, %s142
      %p151 = scmp.eq.s32.totalorder %s21, 0
      %p152 = por %p150, %p151
      %p153 = scmp.ne.s32.totalorder %s141, %s142
      %p154 = scmp.eq.s32.totalorder %s22, 1
      %p155 = por %p153, %p154
      %p157 = scmp.ne.s32.totalorder %s142, %s156
      %p158 = scmp.eq.s32.totalorder %s22, 0
      %p159 = por %p157, %p158
      %s161 = sadd.s32 %s160, 1
      %p164 = scmp.eq.s32.totalorder %s16, 1
      %p165 = scmp.ne.s32.totalorder %s160, %s162
      %p166 = scmp.eq.s32.totalorder %s16, 0
      %p167 = por %p165, %p166
      %p168 = scmp.ne.s32.totalorder %s160, %s162
      %p169 = scmp.eq.s32.totalorder %s21, 1
      %p170 = por %p168, %p169
      %p171 = scmp.ne.s32.totalorder %s162, %s163
      %p172 = scmp.eq.s32.totalorder %s21, 0
      %p173 = por %p171, %p172
      %p174 = scmp.ne.s32.totalorder %s162, %s163
      %p175 = scmp.eq.s32.totalorder %s22, 1
      %p176 = por %p174, %p175
      %p178 = scmp.ne.s32.totalorder %s163, %s177
      %p179 = scmp.eq.s32.totalorder %s22, 0
      %p180 = por %p178, %p179
      %s182 = sadd.s32 %s181, 1
      %p185 = scmp.eq.s32.totalorder %s16, 1
      %p186 = scmp.ne.s32.totalorder %s181, %s183
      %p187 = scmp.eq.s32.totalorder %s16, 0
      %p188 = por %p186, %p187
      %p189 = scmp.ne.s32.totalorder %s181, %s183
      %p190 = scmp.eq.s32.totalorder %s21, 1
      %p191 = por %p189, %p190
      %p192 = scmp.ne.s32.totalorder %s183, %s184
      %p193 = scmp.eq.s32.totalorder %s21, 0
      %p194 = por %p192, %p193
      %p195 = scmp.ne.s32.totalorder %s183, %s184
      %p196 = scmp.eq.s32.totalorder %s22, 1
      %p197 = por %p195, %p196
      %p199 = scmp.ne.s32.totalorder %s184, %s198
      %p200 = scmp.eq.s32.totalorder %s22, 0
      %p201 = por %p199, %p200
      %s202 = ssub.s32 %s16, %s23
      %p203 = scmp.eq.s32.totalorder %s202, 0
      %s205 = sadd.s32 %s204, 1
      %s206 = scalar_select %p203, %s204, %s205
      %p209 = pneg %p203
      %p210 = scmp.eq.s32.totalorder %s16, 1
      %p211 = por %p209, %p210
      %p212 = scmp.ne.s32.totalorder %s204, %s207
      %p213 = scmp.eq.s32.totalorder %s16, 0
      %p214 = por %p212, %p213
      %p215 = scmp.ne.s32.totalorder %s204, %s207
      %p216 = scmp.eq.s32.totalorder %s21, 1
      %p217 = por %p215, %p216
      %p218 = scmp.ne.s32.totalorder %s207, %s208
      %p219 = scmp.eq.s32.totalorder %s21, 0
      %p220 = por %p218, %p219
      %p221 = scmp.ne.s32.totalorder %s207, %s208
      %p222 = scmp.eq.s32.totalorder %s22, 1
      %p223 = por %p221, %p222
      %p225 = scmp.ne.s32.totalorder %s208, %s224
      %p226 = scmp.eq.s32.totalorder %s22, 0
      %p227 = por %p225, %p226
      %p228 = scmp.le.s32.totalorder 1, %s16
      %p229 = scmp.lt.s32.totalorder %s16, 3
      %p230 = pnand %p228, %p229
      %p231 = pneg %p230
      // Predicated region
      $region9: #{gru2d_pallas.1} parent=5 // pred_check
        _
      $region10: #{gru2d_pallas.1} parent=5 // pred_check_branch
        %233 = sbr.rel (%p230) target = $region12
      $region11: #{gru2d_pallas.1} parent=5 // pred_region
        %s234 = ssub.s32 %s16, 1
        // Predicated region
        $region13: #{gru2d_pallas.1} parent=11 // pred_check
          %p235 = pneg %p89
        $region14: #{gru2d_pallas.1} parent=11 // pred_check_branch
          %237 = sbr.rel (%p235) target = $region16
        $region15: #{gru2d_pallas.1} parent=11 // pred_region
          _
        $region16: #{gru2d_pallas.1} parent=11 // pred_fallthru
          _
        // Predicated region
        $region17: #{gru2d_pallas.1} parent=11 // pred_check
          %p238 = pneg %p110
        $region18: #{gru2d_pallas.1} parent=11 // pred_check_branch
          %240 = sbr.rel (%p238) target = $region20
        $region19: #{gru2d_pallas.1} parent=11 // pred_region
          %s242 = ssub.s32 1280, 1280
          %243 = vsyncadd [#allocation3], %s242
          %s244 = sshll.u32 [#allocation2], 4
          %s245 = int_to_ptr.vmem [resolvable:$true] %s244
          %250 = dma.hbm_to_vmem [thread:$0]  %s3, 1280, %s245, [#allocation3], 64, 64, 4
        $region20: #{gru2d_pallas.1} parent=11 // pred_fallthru
          _
        // Predicated region
        $region21: #{gru2d_pallas.1} parent=11 // pred_check
          %p251 = pneg %p131
        $region22: #{gru2d_pallas.1} parent=11 // pred_check_branch
          %253 = sbr.rel (%p251) target = $region24
        $region23: #{gru2d_pallas.1} parent=11 // pred_region
          _
        $region24: #{gru2d_pallas.1} parent=11 // pred_fallthru
          _
        // Predicated region
        $region25: #{gru2d_pallas.1} parent=11 // pred_check
          %p254 = pneg %p152
        $region26: #{gru2d_pallas.1} parent=11 // pred_check_branch
          %256 = sbr.rel (%p254) target = $region28
        $region27: #{gru2d_pallas.1} parent=11 // pred_region
          _
        $region28: #{gru2d_pallas.1} parent=11 // pred_fallthru
          _
        // Predicated region
        $region29: #{gru2d_pallas.1} parent=11 // pred_check
          %p257 = pneg %p173
        $region30: #{gru2d_pallas.1} parent=11 // pred_check_branch
          %259 = sbr.rel (%p257) target = $region32
        $region31: #{gru2d_pallas.1} parent=11 // pred_region
          %s261 = ssub.s32 1280, 1280
          %262 = vsyncadd [#allocation5], %s261
          %s263 = sshll.u32 [#allocation4], 4
          %s264 = int_to_ptr.vmem [resolvable:$true] %s263
          %269 = dma.hbm_to_vmem [thread:$0]  %s6, 1280, %s264, [#allocation5], 64, 64, 4
        $region32: #{gru2d_pallas.1} parent=11 // pred_fallthru
          _
        // Predicated region
        $region33: #{gru2d_pallas.1} parent=11 // pred_check
          %p270 = pneg %p194
        $region34: #{gru2d_pallas.1} parent=11 // pred_check_branch
          %272 = sbr.rel (%p270) target = $region36
        $region35: #{gru2d_pallas.1} parent=11 // pred_region
          _
        $region36: #{gru2d_pallas.1} parent=11 // pred_fallthru
          _
      $region12: #{gru2d_pallas.1} parent=5 // pred_fallthru
        _
      %p273 = scmp.lt.s32.totalorder %s16, 2
      // Predicated region
      $region37: #{gru2d_pallas.1} parent=5 // pred_check
        %p274 = pneg %p273
      $region38: #{gru2d_pallas.1} parent=5 // pred_check_branch
        %276 = sbr.rel (%p274) target = $region40
      $region39: #{gru2d_pallas.1} parent=5 // pred_region
        // Predicated region
        $region41: #{gru2d_pallas.1} parent=39 // pred_check
          %p277 = pneg %p36
        $region42: #{gru2d_pallas.1} parent=39 // pred_check_branch
          %279 = sbr.rel (%p277) target = $region44
        $region43: #{gru2d_pallas.1} parent=39 // pred_region
          %p280 = scmp.lt.s32.totalorder %s16, 1
          %s281 = scalar_select %p280, %s16, 1
          %s282 = smul.addr %s281, 16
          %s283 = smul.addr %s282, 8
          %s284 = scalar_lea.vmem %s0, %s283
        $region44: #{gru2d_pallas.1} parent=39 // pred_fallthru
          _
        // Predicated region
        $region45: #{gru2d_pallas.1} parent=39 // pred_check
          %p285 = pneg %p62
        $region46: #{gru2d_pallas.1} parent=39 // pred_check_branch
          %287 = sbr.rel (%p285) target = $region48
        $region47: #{gru2d_pallas.1} parent=39 // pred_region
          %p288 = scmp.lt.s32.totalorder %s16, 1
          %s289 = scalar_select %p288, %s16, 1
          %s290 = smul.addr %s289, 16
          %s291 = smul.addr %s290, 4
          %s292 = scalar_lea.vmem %s1, %s291
        $region48: #{gru2d_pallas.1} parent=39 // pred_fallthru
          _
      $region40: #{gru2d_pallas.1} parent=5 // pred_fallthru
        _
      %p293 = scmp.le.s32.totalorder 1, %s16
      %p294 = scmp.lt.s32.totalorder %s16, 3
      %p295 = pnand %p293, %p294
      %p296 = pneg %p295
      // Predicated region
      $region49: #{gru2d_pallas.1} parent=5 // pred_check
        _
      $region50: #{gru2d_pallas.1} parent=5 // pred_check_branch
        %298 = sbr.rel (%p295) target = $region52
      $region51: #{gru2d_pallas.1} parent=5 // pred_region
        %s299 = ssub.s32 %s16, 1
        // Predicated region
        $region53: #{gru2d_pallas.1} parent=51 // pred_check
          %p300 = pneg %p110
        $region54: #{gru2d_pallas.1} parent=51 // pred_check_branch
          %302 = sbr.rel (%p300) target = $region56
        $region55: #{gru2d_pallas.1} parent=51 // pred_region
          %303 = dma.done [#allocation3], 1280
        $region56: #{gru2d_pallas.1} parent=51 // pred_fallthru
          _
        // Predicated region
        $region57: #{gru2d_pallas.1} parent=51 // pred_check
          %p304 = pneg %p173
        $region58: #{gru2d_pallas.1} parent=51 // pred_check_branch
          %306 = sbr.rel (%p304) target = $region60
        $region59: #{gru2d_pallas.1} parent=51 // pred_region
          %307 = dma.done [#allocation5], 1280
        $region60: #{gru2d_pallas.1} parent=51 // pred_fallthru
          _
        %p308 = scmp.lt.s32.totalorder %s21, 1
        %s309 = scalar_select %p308, %s21, 1
        %s310 = smul.addr %s309, 16
        %s311 = smul.addr %s310, 8
        %s312 = scalar_lea.vmem %s0, %s311
        %p313 = pneg %p42
        %p314 = pneg %p39
        %p315 = scmp.lt.s32.totalorder %s21, 1
        %s316 = scalar_select %p315, %s21, 1
        %s317 = smul.addr %s316, 16
        %s318 = smul.addr %s317, 4
        %s319 = scalar_lea.vmem %s1, %s318
        %p320 = pneg %p68
        %p321 = pneg %p65
        %p322 = pneg %p89
        %p323 = pneg %p86
        %p324 = pneg %p110
        %p325 = pneg %p107
        %p326 = pneg %p131
        %p327 = pneg %p128
        %p328 = pneg %p152
        %p329 = pneg %p149
        %p330 = pneg %p173
        %p331 = pneg %p170
        %p332 = pneg %p194
        %p333 = pneg %p191
        %p334 = pneg %p220
        %p335 = pneg %p217
        %p336 = scmp.lt.s32.totalorder %s21, 1
        %s337 = scalar_select %p336, %s21, 1
        %s338 = smul.addr %s337, 16
        %s339 = smul.addr %s338, 8
        %s340 = scalar_lea.vmem %s8, %s339
        %p341 = scmp.lt.s32.totalorder %s21, 1
        %s342 = scalar_select %p341, %s21, 1
        %s343 = smul.addr %s342, 16
        %s344 = smul.addr %s343, 8
        %s345 = scalar_lea.vmem %s0, %s344
        %p346 = scmp.lt.s32.totalorder %s21, 1
        %s347 = scalar_select %p346, %s21, 1
        %s348 = smul.addr %s347, 16
        %s349 = smul.addr %s348, 4
        %s350 = scalar_lea.vmem %s1, %s349
        %p351 = scmp.lt.s32.totalorder %s21, 1
        %s352 = scalar_select %p351, %s21, 1
        %s353 = smul.addr %s352, 16
        %s354 = smul.addr %s353, 8
        %s355 = scalar_lea.vmem %s8, %s354
        %v357 = vld [vmem:[%s345] sm:$0xff]
        %v358 = vld [vmem:[%s345 + $0x8] sm:$0xff]
        %v359 = vld [vmem:[%s345 + $0x10] sm:$0xff]
        %v360 = vld [vmem:[%s345 + $0x18] sm:$0xff]
        %v361 = vld [vmem:[%s345 + $0x20] sm:$0xff]
        %v362 = vld [vmem:[%s345 + $0x28] sm:$0xff]
        %v363 = vld [vmem:[%s345 + $0x30] sm:$0xff]
        %v364 = vld [vmem:[%s345 + $0x38] sm:$0xff]
        %v365 = vld [vmem:[%s345 + $0x40] sm:$0xff]
        %v366 = vld [vmem:[%s345 + $0x48] sm:$0xff]
        %v367 = vld [vmem:[%s345 + $0x50] sm:$0xff]
        %v368 = vld [vmem:[%s345 + $0x58] sm:$0xff]
        %v369 = vld [vmem:[%s345 + $0x60] sm:$0xff]
        %v370 = vld [vmem:[%s345 + $0x68] sm:$0xff]
        %v371 = vld [vmem:[%s345 + $0x70] sm:$0xff]
        %v372 = vld [vmem:[%s345 + $0x78] sm:$0xff]
        %v373 = vld [vmem:[%s350] sm:$0xf]
        %v374 = vld [vmem:[%s350 + $0x4] sm:$0xf]
        %v375 = vld [vmem:[%s350 + $0x8] sm:$0xf]
        %v376 = vld [vmem:[%s350 + $0xc] sm:$0xf]
        %v377 = vld [vmem:[%s350 + $0x10] sm:$0xf]
        %v378 = vld [vmem:[%s350 + $0x14] sm:$0xf]
        %v379 = vld [vmem:[%s350 + $0x18] sm:$0xf]
        %v380 = vld [vmem:[%s350 + $0x1c] sm:$0xf]
        %v381 = vld [vmem:[%s350 + $0x20] sm:$0xf]
        %v382 = vld [vmem:[%s350 + $0x24] sm:$0xf]
        %v383 = vld [vmem:[%s350 + $0x28] sm:$0xf]
        %v384 = vld [vmem:[%s350 + $0x2c] sm:$0xf]
        %v385 = vld [vmem:[%s350 + $0x30] sm:$0xf]
        %v386 = vld [vmem:[%s350 + $0x34] sm:$0xf]
        %v387 = vld [vmem:[%s350 + $0x38] sm:$0xf]
        %v388 = vld [vmem:[%s350 + $0x3c] sm:$0xf]
        %v389 = vpack.c.bf16 %v358, %v357
        %v390 = vpack.c.bf16 %v360, %v359
        %v391 = vpack.c.bf16 %v362, %v361
        %v392 = vpack.c.bf16 %v364, %v363
        %v393 = vpack.c.bf16 %v366, %v365
        %v394 = vpack.c.bf16 %v368, %v367
        %v395 = vpack.c.bf16 %v370, %v369
        %v396 = vpack.c.bf16 %v372, %v371
        %v413 = vunpack.c.l.b16 %v373
        %v414 = vunpack.c.l.b16 %v374
        %v415 = vunpack.c.l.b16 %v375
        %v416 = vunpack.c.l.b16 %v376
        %v417 = vunpack.c.l.b16 %v377
        %v418 = vunpack.c.l.b16 %v378
        %v419 = vunpack.c.l.b16 %v379
        %v420 = vunpack.c.l.b16 %v380
        %v421 = vunpack.c.l.b16 %v381
        %v422 = vunpack.c.l.b16 %v382
        %v423 = vunpack.c.l.b16 %v383
        %v424 = vunpack.c.l.b16 %v384
        %v425 = vunpack.c.l.b16 %v385
        %v426 = vunpack.c.l.b16 %v386
        %v427 = vunpack.c.l.b16 %v387
        %v428 = vunpack.c.l.b16 %v388
        %v429 = vpack.c.b16 %v414, %v413
        %v430 = vpack.c.b16 %v416, %v415
        %v431 = vpack.c.b16 %v418, %v417
        %v432 = vpack.c.b16 %v420, %v419
        %v433 = vpack.c.b16 %v422, %v421
        %v434 = vpack.c.b16 %v424, %v423
        %v435 = vpack.c.b16 %v426, %v425
        %v436 = vpack.c.b16 %v428, %v427
        %437 = vrot.lane.b32.xlu0 %v429, 32
        %v438 = vpop.permute.xlu0 %437
        %439 = vrot.lane.b32.xlu0 %v430, 32
        %v440 = vpop.permute.xlu0 %439
        %441 = vrot.lane.b32.xlu0 %v431, 32
        %v442 = vpop.permute.xlu0 %441
        %443 = vrot.lane.b32.xlu0 %v432, 32
        %v444 = vpop.permute.xlu0 %443
        %445 = vrot.lane.b32.xlu0 %v433, 32
        %v446 = vpop.permute.xlu0 %445
        %447 = vrot.lane.b32.xlu0 %v434, 32
        %v448 = vpop.permute.xlu0 %447
        %449 = vrot.lane.b32.xlu0 %v435, 32
        %v450 = vpop.permute.xlu0 %449
        %451 = vrot.lane.b32.xlu0 %v436, 32
        %v452 = vpop.permute.xlu0 %451
        %vm453 = vcmask 261120
        %v456 = vsel %vm453, %v389, %v438
        %v459 = vsel %vm453, %v390, %v440
        %v462 = vsel %vm453, %v391, %v442
        %v465 = vsel %vm453, %v392, %v444
        %v468 = vsel %vm453, %v393, %v446
        %v471 = vsel %vm453, %v394, %v448
        %v474 = vsel %vm453, %v395, %v450
        %v477 = vsel %vm453, %v396, %v452
        %v486 = vrot.slane %v456, 7
        %v487 = vrot.slane %v459, 7
        %v488 = vrot.slane %v462, 7
        %v489 = vrot.slane %v465, 7
        %v490 = vrot.slane %v468, 7
        %v491 = vrot.slane %v471, 7
        %v492 = vrot.slane %v474, 7
        %v493 = vrot.slane %v477, 7
        %vm494 = vcmask 1040384
        %v497 = vsel %vm494, 0, %v486
        %v499 = vsel %vm494, 0, %v487
        %v501 = vsel %vm494, 0, %v488
        %v503 = vsel %vm494, 0, %v489
        %v505 = vsel %vm494, 0, %v490
        %v507 = vsel %vm494, 0, %v491
        %v509 = vsel %vm494, 0, %v492
        %v511 = vsel %vm494, 0, %v493
        %v512 = vsel %vm494, %v486, 0
        %v513 = vsel %vm494, %v487, 0
        %v514 = vsel %vm494, %v488, 0
        %v515 = vsel %vm494, %v489, 0
        %v516 = vsel %vm494, %v490, 0
        %v517 = vsel %vm494, %v491, 0
        %v518 = vsel %vm494, %v492, 0
        %v519 = vsel %vm494, %v493, 0
        %vm520 = vsmask.f32 7424
        %v521 = vshrl.u32 %v497, 16
        %v523 = vshll.u32 %v497, 16
        %v525 = vrot.slane %v523, 1
        %v526 = vor.u32 %v521, %v525
        %v527 = vshll.u32 %v512, 16
        %v529 = vrot.slane %v527, 1
        %v530 = vsel %vm520, %v526, %v529
        %v531 = vshrl.u32 %v499, 16
        %v533 = vshll.u32 %v499, 16
        %v535 = vrot.slane %v533, 1
        %v536 = vor.u32 %v531, %v535
        %v537 = vshll.u32 %v513, 16
        %v539 = vrot.slane %v537, 1
        %v540 = vsel %vm520, %v536, %v539
        %v541 = vshrl.u32 %v501, 16
        %v543 = vshll.u32 %v501, 16
        %v545 = vrot.slane %v543, 1
        %v546 = vor.u32 %v541, %v545
        %v547 = vshll.u32 %v514, 16
        %v549 = vrot.slane %v547, 1
        %v550 = vsel %vm520, %v546, %v549
        %v551 = vshrl.u32 %v503, 16
        %v553 = vshll.u32 %v503, 16
        %v555 = vrot.slane %v553, 1
        %v556 = vor.u32 %v551, %v555
        %v557 = vshll.u32 %v515, 16
        %v559 = vrot.slane %v557, 1
        %v560 = vsel %vm520, %v556, %v559
        %v561 = vshrl.u32 %v505, 16
        %v563 = vshll.u32 %v505, 16
        %v565 = vrot.slane %v563, 1
        %v566 = vor.u32 %v561, %v565
        %v567 = vshll.u32 %v516, 16
        %v569 = vrot.slane %v567, 1
        %v570 = vsel %vm520, %v566, %v569
        %v571 = vshrl.u32 %v507, 16
        %v573 = vshll.u32 %v507, 16
        %v575 = vrot.slane %v573, 1
        %v576 = vor.u32 %v571, %v575
        %v577 = vshll.u32 %v517, 16
        %v579 = vrot.slane %v577, 1
        %v580 = vsel %vm520, %v576, %v579
        %v581 = vshrl.u32 %v509, 16
        %v583 = vshll.u32 %v509, 16
        %v585 = vrot.slane %v583, 1
        %v586 = vor.u32 %v581, %v585
        %v587 = vshll.u32 %v518, 16
        %v589 = vrot.slane %v587, 1
        %v590 = vsel %vm520, %v586, %v589
        %v591 = vshrl.u32 %v511, 16
        %v593 = vshll.u32 %v511, 16
        %v595 = vrot.slane %v593, 1
        %v596 = vor.u32 %v591, %v595
        %v597 = vshll.u32 %v519, 16
        %v599 = vrot.slane %v597, 1
        %v600 = vsel %vm520, %v596, %v599
        %vm617 = vcmask 1046528
        %v618 = vrot.slane %v497, 1
        %v619 = vrot.slane %v512, 1
        %v620 = vsel %vm617, %v618, %v619
        %v621 = vrot.slane %v499, 1
        %v622 = vrot.slane %v513, 1
        %v623 = vsel %vm617, %v621, %v622
        %v624 = vrot.slane %v501, 1
        %v625 = vrot.slane %v514, 1
        %v626 = vsel %vm617, %v624, %v625
        %v627 = vrot.slane %v503, 1
        %v628 = vrot.slane %v515, 1
        %v629 = vsel %vm617, %v627, %v628
        %v630 = vrot.slane %v505, 1
        %v631 = vrot.slane %v516, 1
        %v632 = vsel %vm617, %v630, %v631
        %v633 = vrot.slane %v507, 1
        %v634 = vrot.slane %v517, 1
        %v635 = vsel %vm617, %v633, %v634
        %v636 = vrot.slane %v509, 1
        %v637 = vrot.slane %v518, 1
        %v638 = vsel %vm617, %v636, %v637
        %v639 = vrot.slane %v511, 1
        %v640 = vrot.slane %v519, 1
        %v641 = vsel %vm617, %v639, %v640
        %vm642 = vsmask.f32 6400
        %v643 = vrot.slane %v521, 1
        %v644 = vrot.slane %v523, 2
        %v645 = vor.u32 %v643, %v644
        %v646 = vshrl.u32 %v512, 16
        %v648 = vrot.slane %v646, 1
        %v649 = vrot.slane %v527, 2
        %v650 = vor.u32 %v648, %v649
        %v651 = vsel %vm642, %v645, %v650
        %v652 = vrot.slane %v531, 1
        %v653 = vrot.slane %v533, 2
        %v654 = vor.u32 %v652, %v653
        %v655 = vshrl.u32 %v513, 16
        %v657 = vrot.slane %v655, 1
        %v658 = vrot.slane %v537, 2
        %v659 = vor.u32 %v657, %v658
        %v660 = vsel %vm642, %v654, %v659
        %v661 = vrot.slane %v541, 1
        %v662 = vrot.slane %v543, 2
        %v663 = vor.u32 %v661, %v662
        %v664 = vshrl.u32 %v514, 16
        %v666 = vrot.slane %v664, 1
        %v667 = vrot.slane %v547, 2
        %v668 = vor.u32 %v666, %v667
        %v669 = vsel %vm642, %v663, %v668
        %v670 = vrot.slane %v551, 1
        %v671 = vrot.slane %v553, 2
        %v672 = vor.u32 %v670, %v671
        %v673 = vshrl.u32 %v515, 16
        %v675 = vrot.slane %v673, 1
        %v676 = vrot.slane %v557, 2
        %v677 = vor.u32 %v675, %v676
        %v678 = vsel %vm642, %v672, %v677
        %v679 = vrot.slane %v561, 1
        %v680 = vrot.slane %v563, 2
        %v681 = vor.u32 %v679, %v680
        %v682 = vshrl.u32 %v516, 16
        %v684 = vrot.slane %v682, 1
        %v685 = vrot.slane %v567, 2
        %v686 = vor.u32 %v684, %v685
        %v687 = vsel %vm642, %v681, %v686
        %v688 = vrot.slane %v571, 1
        %v689 = vrot.slane %v573, 2
        %v690 = vor.u32 %v688, %v689
        %v691 = vshrl.u32 %v517, 16
        %v693 = vrot.slane %v691, 1
        %v694 = vrot.slane %v577, 2
        %v695 = vor.u32 %v693, %v694
        %v696 = vsel %vm642, %v690, %v695
        %v697 = vrot.slane %v581, 1
        %v698 = vrot.slane %v583, 2
        %v699 = vor.u32 %v697, %v698
        %v700 = vshrl.u32 %v518, 16
        %v702 = vrot.slane %v700, 1
        %v703 = vrot.slane %v587, 2
        %v704 = vor.u32 %v702, %v703
        %v705 = vsel %vm642, %v699, %v704
        %v706 = vrot.slane %v591, 1
        %v707 = vrot.slane %v593, 2
        %v708 = vor.u32 %v706, %v707
        %v709 = vshrl.u32 %v519, 16
        %v711 = vrot.slane %v709, 1
        %v712 = vrot.slane %v597, 2
        %v713 = vor.u32 %v711, %v712
        %v714 = vsel %vm642, %v708, %v713
        %vm715 = vcmask 1045504
        %v716 = vrot.slane %v497, 2
        %v717 = vrot.slane %v512, 2
        %v718 = vsel %vm715, %v716, %v717
        %v719 = vrot.slane %v499, 2
        %v720 = vrot.slane %v513, 2
        %v721 = vsel %vm715, %v719, %v720
        %v722 = vrot.slane %v501, 2
        %v723 = vrot.slane %v514, 2
        %v724 = vsel %vm715, %v722, %v723
        %v725 = vrot.slane %v503, 2
        %v726 = vrot.slane %v515, 2
        %v727 = vsel %vm715, %v725, %v726
        %v728 = vrot.slane %v505, 2
        %v729 = vrot.slane %v516, 2
        %v730 = vsel %vm715, %v728, %v729
        %v731 = vrot.slane %v507, 2
        %v732 = vrot.slane %v517, 2
        %v733 = vsel %vm715, %v731, %v732
        %v734 = vrot.slane %v509, 2
        %v735 = vrot.slane %v518, 2
        %v736 = vsel %vm715, %v734, %v735
        %v737 = vrot.slane %v511, 2
        %v738 = vrot.slane %v519, 2
        %v739 = vsel %vm715, %v737, %v738
        %v740 = vld [vmem:[%s2] sm:$0xf]
        %v741 = vld [vmem:[%s2 + $0x4] sm:$0xf]
        %v742 = vld [vmem:[%s2 + $0x8] sm:$0xf]
        %v743 = vld [vmem:[%s2 + $0xc] sm:$0xf]
        %v744 = vld [vmem:[%s2 + $0x10] sm:$0xf]
        %v745 = vld [vmem:[%s2 + $0x14] sm:$0xf]
        %v746 = vld [vmem:[%s2 + $0x18] sm:$0xf]
        %v747 = vld [vmem:[%s2 + $0x1c] sm:$0xf]
        %s748 = scalar_lea.vmem %s2, 32
        %v749 = vld [vmem:[%s748] sm:$0xf]
        %v750 = vld [vmem:[%s748 + $0x4] sm:$0xf]
        %v751 = vld [vmem:[%s748 + $0x8] sm:$0xf]
        %v752 = vld [vmem:[%s748 + $0xc] sm:$0xf]
        %v753 = vld [vmem:[%s748 + $0x10] sm:$0xf]
        %v754 = vld [vmem:[%s748 + $0x14] sm:$0xf]
        %v755 = vld [vmem:[%s748 + $0x18] sm:$0xf]
        %v756 = vld [vmem:[%s748 + $0x1c] sm:$0xf]
        %v765 = vunpack.c.l.b16 %v749
        %v766 = vunpack.c.l.b16 %v750
        %v767 = vunpack.c.l.b16 %v751
        %v768 = vunpack.c.l.b16 %v752
        %v769 = vunpack.c.l.b16 %v753
        %v770 = vunpack.c.l.b16 %v754
        %v771 = vunpack.c.l.b16 %v755
        %v772 = vunpack.c.l.b16 %v756
        %v773 = vpack.c.b16 %v766, %v765
        %v774 = vpack.c.b16 %v768, %v767
        %v775 = vpack.c.b16 %v770, %v769
        %v776 = vpack.c.b16 %v772, %v771
        %vm781 = vcmask 523264
        %v783 = vsel %vm781, %v530, 0
        %v786 = vsel %vm781, %v540, 0
        %v789 = vsel %vm781, %v550, 0
        %v792 = vsel %vm781, %v560, 0
        %v795 = vsel %vm781, %v570, 0
        %v798 = vsel %vm781, %v580, 0
        %v801 = vsel %vm781, %v590, 0
        %v804 = vsel %vm781, %v600, 0
        %806 = vmatprep.subr.bf16.mxu0 0
        %807 = vmatpush1.bf16.msra.mxu0 %v773
        %808 = vmatprep.subr.bf16.mxu0 0
        %809 = vmatpush1.bf16.msra.mxu0 %v774
        %810 = vmatprep.subr.bf16.mxu0 0
        %811 = vmatpush1.bf16.msra.mxu0 %v775
        %812 = vmatprep.subr.bf16.mxu0 0
        %813 = vmatpush1.bf16.msra.mxu0 %v776
        %814 = vmatprep.subr.bf16.mxu0 0
        %815 = vmatpush1.bf16.msra.mxu0 0
        %816 = vmatprep.subr.bf16.mxu0 0
        %817 = vmatpush1.bf16.msra.mxu0 0
        %818 = vmatprep.subr.bf16.mxu0 0
        %819 = vmatpush1.bf16.msra.mxu0 0
        %820 = vmatprep.subr.bf16.mxu0 0
        %821 = vmatpush1.bf16.msra.mxu0 0
        %822 = vmatprep.subr.bf16.mxu0 0
        %823 = vmatpush1.bf16.msra.mxu0 0
        %824 = vmatprep.subr.bf16.mxu0 0
        %825 = vmatpush1.bf16.msra.mxu0 0
        %826 = vmatprep.subr.bf16.mxu0 0
        %827 = vmatpush1.bf16.msra.mxu0 0
        %828 = vmatprep.subr.bf16.mxu0 0
        %829 = vmatpush1.bf16.msra.mxu0 0
        %830 = vmatprep.subr.bf16.mxu0 0
        %831 = vmatpush1.bf16.msra.mxu0 0
        %832 = vmatprep.subr.bf16.mxu0 0
        %833 = vmatpush1.bf16.msra.mxu0 0
        %834 = vmatprep.subr.bf16.mxu0 0
        %835 = vmatpush1.bf16.msra.mxu0 0
        %836 = vmatprep.subr.bf16.mxu0 0
        %837 = vmatpush1.bf16.msra.mxu0 0
        %838 = vmatprep.mubr.bf16.mxu0 0
        %839 = vmatmul.mubr.bf16.gmra.mrb[0].mxu0 %v783
        %v840 = vpop.f32.mrb[0].mxu0
        %v841 = vadd.f32 0.0, %v840
        %v842 = vpop.f32.mrb[0].mxu0
        %v843 = vpop.f32.mrb[0].mxu0
        %v844 = vadd.f32 0.0, %v843
        %v845 = vpop.f32.mrb[0].mxu0
        %846 = vmatprep.mubr.bf16.mxu0 0
        %847 = vmatmul.mubr.bf16.gmra.mrb[0].mxu0 %v786
        %v848 = vpop.f32.mrb[0].mxu0
        %v849 = vadd.f32 0.0, %v848
        %v850 = vpop.f32.mrb[0].mxu0
        %v851 = vpop.f32.mrb[0].mxu0
        %v852 = vadd.f32 0.0, %v851
        %v853 = vpop.f32.mrb[0].mxu0
        %854 = vmatprep.mubr.bf16.mxu0 0
        %855 = vmatmul.mubr.bf16.gmra.mrb[0].mxu0 %v789
        %v856 = vpop.f32.mrb[0].mxu0
        %v857 = vadd.f32 0.0, %v856
        %v858 = vpop.f32.mrb[0].mxu0
        %v859 = vpop.f32.mrb[0].mxu0
        %v860 = vadd.f32 0.0, %v859
        %v861 = vpop.f32.mrb[0].mxu0
        %862 = vmatprep.mubr.bf16.mxu0 0
        %863 = vmatmul.mubr.bf16.gmra.mrb[0].mxu0 %v792
        %v864 = vpop.f32.mrb[0].mxu0
        %v865 = vadd.f32 0.0, %v864
        %v866 = vpop.f32.mrb[0].mxu0
        %v867 = vpop.f32.mrb[0].mxu0
        %v868 = vadd.f32 0.0, %v867
        %v869 = vpop.f32.mrb[0].mxu0
        %870 = vmatprep.mubr.bf16.mxu0 0
        %871 = vmatmul.mubr.bf16.gmra.mrb[0].mxu0 %v795
        %v872 = vpop.f32.mrb[0].mxu0
        %v873 = vadd.f32 0.0, %v872
        %v874 = vpop.f32.mrb[0].mxu0
        %v875 = vpop.f32.mrb[0].mxu0
        %v876 = vadd.f32 0.0, %v875
        %v877 = vpop.f32.mrb[0].mxu0
        %878 = vmatprep.mubr.bf16.mxu0 0
        %879 = vmatmul.mubr.bf16.gmra.mrb[0].mxu0 %v798
        %v880 = vpop.f32.mrb[0].mxu0
        %v881 = vadd.f32 0.0, %v880
        %v882 = vpop.f32.mrb[0].mxu0
        %v883 = vpop.f32.mrb[0].mxu0
        %v884 = vadd.f32 0.0, %v883
        %v885 = vpop.f32.mrb[0].mxu0
        %886 = vmatprep.mubr.bf16.mxu0 0
        %887 = vmatmul.mubr.bf16.gmra.mrb[0].mxu0 %v801
        %v888 = vpop.f32.mrb[0].mxu0
        %v889 = vadd.f32 0.0, %v888
        %v890 = vpop.f32.mrb[0].mxu0
        %v891 = vpop.f32.mrb[0].mxu0
        %v892 = vadd.f32 0.0, %v891
        %v893 = vpop.f32.mrb[0].mxu0
        %894 = vmatprep.mubr.bf16.mxu0 0
        %895 = vmatmul.mubr.bf16.gmra.mrb[0].mxu0 %v804
        %v896 = vpop.f32.mrb[0].mxu0
        %v897 = vadd.f32 0.0, %v896
        %v898 = vpop.f32.mrb[0].mxu0
        %v899 = vpop.f32.mrb[0].mxu0
        %v900 = vadd.f32 0.0, %v899
        %v901 = vpop.f32.mrb[0].mxu0
        %902 = vdwg.mxu0
        %v911 = vunpack.c.l.b16 %v740
        %v912 = vunpack.c.l.b16 %v741
        %v913 = vunpack.c.l.b16 %v742
        %v914 = vunpack.c.l.b16 %v743
        %v915 = vunpack.c.l.b16 %v744
        %v916 = vunpack.c.l.b16 %v745
        %v917 = vunpack.c.l.b16 %v746
        %v918 = vunpack.c.l.b16 %v747
        %v919 = vpack.c.b16 %v912, %v911
        %v920 = vpack.c.b16 %v914, %v913
        %v921 = vpack.c.b16 %v916, %v915
        %v922 = vpack.c.b16 %v918, %v917
        %v927 = vsel %vm781, %v497, 0
        %v929 = vsel %vm781, %v499, 0
        %v931 = vsel %vm781, %v501, 0
        %v933 = vsel %vm781, %v503, 0
        %v935 = vsel %vm781, %v505, 0
        %v937 = vsel %vm781, %v507, 0
        %v939 = vsel %vm781, %v509, 0
        %v941 = vsel %vm781, %v511, 0
        %943 = vmatprep.subr.bf16.mxu0 0
        %944 = vmatpush1.bf16.msra.mxu0 %v919
        %945 = vmatprep.subr.bf16.mxu0 0
        %946 = vmatpush1.bf16.msra.mxu0 %v920
        %947 = vmatprep.subr.bf16.mxu0 0
        %948 = vmatpush1.bf16.msra.mxu0 %v921
        %949 = vmatprep.subr.bf16.mxu0 0
        %950 = vmatpush1.bf16.msra.mxu0 %v922
        %951 = vmatprep.subr.bf16.mxu0 0
        %952 = vmatpush1.bf16.msra.mxu0 0
        %953 = vmatprep.subr.bf16.mxu0 0
        %954 = vmatpush1.bf16.msra.mxu0 0
        %955 = vmatprep.subr.bf16.mxu0 0
        %956 = vmatpush1.bf16.msra.mxu0 0
        %957 = vmatprep.subr.bf16.mxu0 0
        %958 = vmatpush1.bf16.msra.mxu0 0
        %959 = vmatprep.subr.bf16.mxu0 0
        %960 = vmatpush1.bf16.msra.mxu0 0
        %961 = vmatprep.subr.bf16.mxu0 0
        %962 = vmatpush1.bf16.msra.mxu0 0
        %963 = vmatprep.subr.bf16.mxu0 0
        %964 = vmatpush1.bf16.msra.mxu0 0
        %965 = vmatprep.subr.bf16.mxu0 0
        %966 = vmatpush1.bf16.msra.mxu0 0
        %967 = vmatprep.subr.bf16.mxu0 0
        %968 = vmatpush1.bf16.msra.mxu0 0
        %969 = vmatprep.subr.bf16.mxu0 0
        %970 = vmatpush1.bf16.msra.mxu0 0
        %971 = vmatprep.subr.bf16.mxu0 0
        %972 = vmatpush1.bf16.msra.mxu0 0
        %973 = vmatprep.subr.bf16.mxu0 0
        %974 = vmatpush1.bf16.msra.mxu0 0
        %975 = vmatprep.mubr.bf16.mxu0 0
        %976 = vmatmul.mubr.bf16.gmra.mrb[0].mxu0 %v927
        %v977 = vpop.f32.mrb[0].mxu0
        %v978 = vadd.f32 %v841, %v977
        %v979 = vpop.f32.mrb[0].mxu0
        %v980 = vpop.f32.mrb[0].mxu0
        %v981 = vadd.f32 %v844, %v980
        %v982 = vpop.f32.mrb[0].mxu0
        %983 = vmatprep.mubr.bf16.mxu0 0
        %984 = vmatmul.mubr.bf16.gmra.mrb[0].mxu0 %v929
        %v985 = vpop.f32.mrb[0].mxu0
        %v986 = vadd.f32 %v849, %v985
        %v987 = vpop.f32.mrb[0].mxu0
        %v988 = vpop.f32.mrb[0].mxu0
        %v989 = vadd.f32 %v852, %v988
        %v990 = vpop.f32.mrb[0].mxu0
        %991 = vmatprep.mubr.bf16.mxu0 0
        %992 = vmatmul.mubr.bf16.gmra.mrb[0].mxu0 %v931
        %v993 = vpop.f32.mrb[0].mxu0
        %v994 = vadd.f32 %v857, %v993
        %v995 = vpop.f32.mrb[0].mxu0
        %v996 = vpop.f32.mrb[0].mxu0
        %v997 = vadd.f32 %v860, %v996
        %v998 = vpop.f32.mrb[0].mxu0
        %999 = vmatprep.mubr.bf16.mxu0 0
        %1000 = vmatmul.mubr.bf16.gmra.mrb[0].mxu0 %v933
        %v1001 = vpop.f32.mrb[0].mxu0
        %v1002 = vadd.f32 %v865, %v1001
        %v1003 = vpop.f32.mrb[0].mxu0
        %v1004 = vpop.f32.mrb[0].mxu0
        %v1005 = vadd.f32 %v868, %v1004
        %v1006 = vpop.f32.mrb[0].mxu0
        %1007 = vmatprep.mubr.bf16.mxu0 0
        %1008 = vmatmul.mubr.bf16.gmra.mrb[0].mxu0 %v935
        %v1009 = vpop.f32.mrb[0].mxu0
        %v1010 = vadd.f32 %v873, %v1009
        %v1011 = vpop.f32.mrb[0].mxu0
        %v1012 = vpop.f32.mrb[0].mxu0
        %v1013 = vadd.f32 %v876, %v1012
        %v1014 = vpop.f32.mrb[0].mxu0
        %1015 = vmatprep.mubr.bf16.mxu0 0
        %1016 = vmatmul.mubr.bf16.gmra.mrb[0].mxu0 %v937
        %v1017 = vpop.f32.mrb[0].mxu0
        %v1018 = vadd.f32 %v881, %v1017
        %v1019 = vpop.f32.mrb[0].mxu0
        %v1020 = vpop.f32.mrb[0].mxu0
        %v1021 = vadd.f32 %v884, %v1020
        %v1022 = vpop.f32.mrb[0].mxu0
        %1023 = vmatprep.mubr.bf16.mxu0 0
        %1024 = vmatmul.mubr.bf16.gmra.mrb[0].mxu0 %v939
        %v1025 = vpop.f32.mrb[0].mxu0
        %v1026 = vadd.f32 %v889, %v1025
        %v1027 = vpop.f32.mrb[0].mxu0
        %v1028 = vpop.f32.mrb[0].mxu0
        %v1029 = vadd.f32 %v892, %v1028
        %v1030 = vpop.f32.mrb[0].mxu0
        %1031 = vmatprep.mubr.bf16.mxu0 0
        %1032 = vmatmul.mubr.bf16.gmra.mrb[0].mxu0 %v941
        %v1033 = vpop.f32.mrb[0].mxu0
        %v1034 = vadd.f32 %v897, %v1033
        %v1035 = vpop.f32.mrb[0].mxu0
        %v1036 = vpop.f32.mrb[0].mxu0
        %v1037 = vadd.f32 %v900, %v1036
        %v1038 = vpop.f32.mrb[0].mxu0
        %1039 = vdwg.mxu0
        %s1040 = scalar_lea.vmem %s2, 64
        %v1041 = vld [vmem:[%s1040] sm:$0xf]
        %v1042 = vld [vmem:[%s1040 + $0x4] sm:$0xf]
        %v1043 = vld [vmem:[%s1040 + $0x8] sm:$0xf]
        %v1044 = vld [vmem:[%s1040 + $0xc] sm:$0xf]
        %v1045 = vld [vmem:[%s1040 + $0x10] sm:$0xf]
        %v1046 = vld [vmem:[%s1040 + $0x14] sm:$0xf]
        %v1047 = vld [vmem:[%s1040 + $0x18] sm:$0xf]
        %v1048 = vld [vmem:[%s1040 + $0x1c] sm:$0xf]
        %v1057 = vunpack.c.l.b16 %v1041
        %v1058 = vunpack.c.l.b16 %v1042
        %v1059 = vunpack.c.l.b16 %v1043
        %v1060 = vunpack.c.l.b16 %v1044
        %v1061 = vunpack.c.l.b16 %v1045
        %v1062 = vunpack.c.l.b16 %v1046
        %v1063 = vunpack.c.l.b16 %v1047
        %v1064 = vunpack.c.l.b16 %v1048
        %v1065 = vpack.c.b16 %v1058, %v1057
        %v1066 = vpack.c.b16 %v1060, %v1059
        %v1067 = vpack.c.b16 %v1062, %v1061
        %v1068 = vpack.c.b16 %v1064, %v1063
        %v1074 = vsel %vm781, %v620, 0
        %v1077 = vsel %vm781, %v623, 0
        %v1080 = vsel %vm781, %v626, 0
        %v1083 = vsel %vm781, %v629, 0
        %v1086 = vsel %vm781, %v632, 0
        %v1089 = vsel %vm781, %v635, 0
        %v1092 = vsel %vm781, %v638, 0
        %v1095 = vsel %vm781, %v641, 0
        %1097 = vmatprep.subr.bf16.mxu0 0
        %1098 = vmatpush1.bf16.msra.mxu0 %v1065
        %1099 = vmatprep.subr.bf16.mxu0 0
        %1100 = vmatpush1.bf16.msra.mxu0 %v1066
        %1101 = vmatprep.subr.bf16.mxu0 0
        %1102 = vmatpush1.bf16.msra.mxu0 %v1067
        %1103 = vmatprep.subr.bf16.mxu0 0
        %1104 = vmatpush1.bf16.msra.mxu0 %v1068
        %1105 = vmatprep.subr.bf16.mxu0 0
        %1106 = vmatpush1.bf16.msra.mxu0 0
        %1107 = vmatprep.subr.bf16.mxu0 0
        %1108 = vmatpush1.bf16.msra.mxu0 0
        %1109 = vmatprep.subr.bf16.mxu0 0
        %1110 = vmatpush1.bf16.msra.mxu0 0
        %1111 = vmatprep.subr.bf16.mxu0 0
        %1112 = vmatpush1.bf16.msra.mxu0 0
        %1113 = vmatprep.subr.bf16.mxu0 0
        %1114 = vmatpush1.bf16.msra.mxu0 0
        %1115 = vmatprep.subr.bf16.mxu0 0
        %1116 = vmatpush1.bf16.msra.mxu0 0
        %1117 = vmatprep.subr.bf16.mxu0 0
        %1118 = vmatpush1.bf16.msra.mxu0 0
        %1119 = vmatprep.subr.bf16.mxu0 0
        %1120 = vmatpush1.bf16.msra.mxu0 0
        %1121 = vmatprep.subr.bf16.mxu0 0
        %1122 = vmatpush1.bf16.msra.mxu0 0
        %1123 = vmatprep.subr.bf16.mxu0 0
        %1124 = vmatpush1.bf16.msra.mxu0 0
        %1125 = vmatprep.subr.bf16.mxu0 0
        %1126 = vmatpush1.bf16.msra.mxu0 0
        %1127 = vmatprep.subr.bf16.mxu0 0
        %1128 = vmatpush1.bf16.msra.mxu0 0
        %1129 = vmatprep.mubr.bf16.mxu0 0
        %1130 = vmatmul.mubr.bf16.gmra.mrb[0].mxu0 %v1074
        %v1131 = vpop.f32.mrb[0].mxu0
        %v1132 = vadd.f32 0.0, %v1131
        %v1133 = vpop.f32.mrb[0].mxu0
        %v1134 = vpop.f32.mrb[0].mxu0
        %v1135 = vadd.f32 0.0, %v1134
        %v1136 = vpop.f32.mrb[0].mxu0
        %1137 = vmatprep.mubr.bf16.mxu0 0
        %1138 = vmatmul.mubr.bf16.gmra.mrb[0].mxu0 %v1077
        %v1139 = vpop.f32.mrb[0].mxu0
        %v1140 = vadd.f32 0.0, %v1139
        %v1141 = vpop.f32.mrb[0].mxu0
        %v1142 = vpop.f32.mrb[0].mxu0
        %v1143 = vadd.f32 0.0, %v1142
        %v1144 = vpop.f32.mrb[0].mxu0
        %1145 = vmatprep.mubr.bf16.mxu0 0
        %1146 = vmatmul.mubr.bf16.gmra.mrb[0].mxu0 %v1080
        %v1147 = vpop.f32.mrb[0].mxu0
        %v1148 = vadd.f32 0.0, %v1147
        %v1149 = vpop.f32.mrb[0].mxu0
        %v1150 = vpop.f32.mrb[0].mxu0
        %v1151 = vadd.f32 0.0, %v1150
        %v1152 = vpop.f32.mrb[0].mxu0
        %1153 = vmatprep.mubr.bf16.mxu0 0
        %1154 = vmatmul.mubr.bf16.gmra.mrb[0].mxu0 %v1083
        %v1155 = vpop.f32.mrb[0].mxu0
        %v1156 = vadd.f32 0.0, %v1155
        %v1157 = vpop.f32.mrb[0].mxu0
        %v1158 = vpop.f32.mrb[0].mxu0
        %v1159 = vadd.f32 0.0, %v1158
        %v1160 = vpop.f32.mrb[0].mxu0
        %1161 = vmatprep.mubr.bf16.mxu0 0
        %1162 = vmatmul.mubr.bf16.gmra.mrb[0].mxu0 %v1086
        %v1163 = vpop.f32.mrb[0].mxu0
        %v1164 = vadd.f32 0.0, %v1163
        %v1165 = vpop.f32.mrb[0].mxu0
        %v1166 = vpop.f32.mrb[0].mxu0
        %v1167 = vadd.f32 0.0, %v1166
        %v1168 = vpop.f32.mrb[0].mxu0
        %1169 = vmatprep.mubr.bf16.mxu0 0
        %1170 = vmatmul.mubr.bf16.gmra.mrb[0].mxu0 %v1089
        %v1171 = vpop.f32.mrb[0].mxu0
        %v1172 = vadd.f32 0.0, %v1171
        %v1173 = vpop.f32.mrb[0].mxu0
        %v1174 = vpop.f32.mrb[0].mxu0
        %v1175 = vadd.f32 0.0, %v1174
        %v1176 = vpop.f32.mrb[0].mxu0
        %1177 = vmatprep.mubr.bf16.mxu0 0
        %1178 = vmatmul.mubr.bf16.gmra.mrb[0].mxu0 %v1092
        %v1179 = vpop.f32.mrb[0].mxu0
        %v1180 = vadd.f32 0.0, %v1179
        %v1181 = vpop.f32.mrb[0].mxu0
        %v1182 = vpop.f32.mrb[0].mxu0
        %v1183 = vadd.f32 0.0, %v1182
        %v1184 = vpop.f32.mrb[0].mxu0
        %1185 = vmatprep.mubr.bf16.mxu0 0
        %1186 = vmatmul.mubr.bf16.gmra.mrb[0].mxu0 %v1095
        %v1187 = vpop.f32.mrb[0].mxu0
        %v1188 = vadd.f32 0.0, %v1187
        %v1189 = vpop.f32.mrb[0].mxu0
        %v1190 = vpop.f32.mrb[0].mxu0
        %v1191 = vadd.f32 0.0, %v1190
        %v1192 = vpop.f32.mrb[0].mxu0
        %1193 = vdwg.mxu0
        %v1194 = vadd.f32 %v978, %v1132
        %v1195 = vadd.f32 %v981, %v1135
        %v1196 = vadd.f32 %v986, %v1140
        %v1197 = vadd.f32 %v989, %v1143
        %v1198 = vadd.f32 %v994, %v1148
        %v1199 = vadd.f32 %v997, %v1151
        %v1200 = vadd.f32 %v1002, %v1156
        %v1201 = vadd.f32 %v1005, %v1159
        %v1202 = vadd.f32 %v1010, %v1164
        %v1203 = vadd.f32 %v1013, %v1167
        %v1204 = vadd.f32 %v1018, %v1172
        %v1205 = vadd.f32 %v1021, %v1175
        %v1206 = vadd.f32 %v1026, %v1180
        %v1207 = vadd.f32 %v1029, %v1183
        %v1208 = vadd.f32 %v1034, %v1188
        %v1209 = vadd.f32 %v1037, %v1191
        %s1210 = scalar_lea.vmem %s2, 96
        %v1211 = vld [vmem:[%s1210] sm:$0xf]
        %v1212 = vld [vmem:[%s1210 + $0x4] sm:$0xf]
        %v1213 = vld [vmem:[%s1210 + $0x8] sm:$0xf]
        %v1214 = vld [vmem:[%s1210 + $0xc] sm:$0xf]
        %v1215 = vld [vmem:[%s1210 + $0x10] sm:$0xf]
        %v1216 = vld [vmem:[%s1210 + $0x14] sm:$0xf]
        %v1217 = vld [vmem:[%s1210 + $0x18] sm:$0xf]
        %v1218 = vld [vmem:[%s1210 + $0x1c] sm:$0xf]
        %v1227 = vunpack.c.l.b16 %v1211
        %v1228 = vunpack.c.l.b16 %v1212
        %v1229 = vunpack.c.l.b16 %v1213
        %v1230 = vunpack.c.l.b16 %v1214
        %v1231 = vunpack.c.l.b16 %v1215
        %v1232 = vunpack.c.l.b16 %v1216
        %v1233 = vunpack.c.l.b16 %v1217
        %v1234 = vunpack.c.l.b16 %v1218
        %v1235 = vpack.c.b16 %v1228, %v1227
        %v1236 = vpack.c.b16 %v1230, %v1229
        %v1237 = vpack.c.b16 %v1232, %v1231
        %v1238 = vpack.c.b16 %v1234, %v1233
        %v1244 = vsel %vm781, %v651, 0
        %v1247 = vsel %vm781, %v660, 0
        %v1250 = vsel %vm781, %v669, 0
        %v1253 = vsel %vm781, %v678, 0
        %v1256 = vsel %vm781, %v687, 0
        %v1259 = vsel %vm781, %v696, 0
        %v1262 = vsel %vm781, %v705, 0
        %v1265 = vsel %vm781, %v714, 0
        %1267 = vmatprep.subr.bf16.mxu0 0
        %1268 = vmatpush1.bf16.msra.mxu0 %v1235
        %1269 = vmatprep.subr.bf16.mxu0 0
        %1270 = vmatpush1.bf16.msra.mxu0 %v1236
        %1271 = vmatprep.subr.bf16.mxu0 0
        %1272 = vmatpush1.bf16.msra.mxu0 %v1237
        %1273 = vmatprep.subr.bf16.mxu0 0
        %1274 = vmatpush1.bf16.msra.mxu0 %v1238
        %1275 = vmatprep.subr.bf16.mxu0 0
        %1276 = vmatpush1.bf16.msra.mxu0 0
        %1277 = vmatprep.subr.bf16.mxu0 0
        %1278 = vmatpush1.bf16.msra.mxu0 0
        %1279 = vmatprep.subr.bf16.mxu0 0
        %1280 = vmatpush1.bf16.msra.mxu0 0
        %1281 = vmatprep.subr.bf16.mxu0 0
        %1282 = vmatpush1.bf16.msra.mxu0 0
        %1283 = vmatprep.subr.bf16.mxu0 0
        %1284 = vmatpush1.bf16.msra.mxu0 0
        %1285 = vmatprep.subr.bf16.mxu0 0
        %1286 = vmatpush1.bf16.msra.mxu0 0
        %1287 = vmatprep.subr.bf16.mxu0 0
        %1288 = vmatpush1.bf16.msra.mxu0 0
        %1289 = vmatprep.subr.bf16.mxu0 0
        %1290 = vmatpush1.bf16.msra.mxu0 0
        %1291 = vmatprep.subr.bf16.mxu0 0
        %1292 = vmatpush1.bf16.msra.mxu0 0
        %1293 = vmatprep.subr.bf16.mxu0 0
        %1294 = vmatpush1.bf16.msra.mxu0 0
        %1295 = vmatprep.subr.bf16.mxu0 0
        %1296 = vmatpush1.bf16.msra.mxu0 0
        %1297 = vmatprep.subr.bf16.mxu0 0
        %1298 = vmatpush1.bf16.msra.mxu0 0
        %1299 = vmatprep.mubr.bf16.mxu0 0
        %1300 = vmatmul.mubr.bf16.gmra.mrb[0].mxu0 %v1244
        %v1301 = vpop.f32.mrb[0].mxu0
        %v1302 = vadd.f32 0.0, %v1301
        %v1303 = vpop.f32.mrb[0].mxu0
        %v1304 = vpop.f32.mrb[0].mxu0
        %v1305 = vadd.f32 0.0, %v1304
        %v1306 = vpop.f32.mrb[0].mxu0
        %1307 = vmatprep.mubr.bf16.mxu0 0
        %1308 = vmatmul.mubr.bf16.gmra.mrb[0].mxu0 %v1247
        %v1309 = vpop.f32.mrb[0].mxu0
        %v1310 = vadd.f32 0.0, %v1309
        %v1311 = vpop.f32.mrb[0].mxu0
        %v1312 = vpop.f32.mrb[0].mxu0
        %v1313 = vadd.f32 0.0, %v1312
        %v1314 = vpop.f32.mrb[0].mxu0
        %1315 = vmatprep.mubr.bf16.mxu0 0
        %1316 = vmatmul.mubr.bf16.gmra.mrb[0].mxu0 %v1250
        %v1317 = vpop.f32.mrb[0].mxu0
        %v1318 = vadd.f32 0.0, %v1317
        %v1319 = vpop.f32.mrb[0].mxu0
        %v1320 = vpop.f32.mrb[0].mxu0
        %v1321 = vadd.f32 0.0, %v1320
        %v1322 = vpop.f32.mrb[0].mxu0
        %1323 = vmatprep.mubr.bf16.mxu0 0
        %1324 = vmatmul.mubr.bf16.gmra.mrb[0].mxu0 %v1253
        %v1325 = vpop.f32.mrb[0].mxu0
        %v1326 = vadd.f32 0.0, %v1325
        %v1327 = vpop.f32.mrb[0].mxu0
        %v1328 = vpop.f32.mrb[0].mxu0
        %v1329 = vadd.f32 0.0, %v1328
        %v1330 = vpop.f32.mrb[0].mxu0
        %1331 = vmatprep.mubr.bf16.mxu0 0
        %1332 = vmatmul.mubr.bf16.gmra.mrb[0].mxu0 %v1256
        %v1333 = vpop.f32.mrb[0].mxu0
        %v1334 = vadd.f32 0.0, %v1333
        %v1335 = vpop.f32.mrb[0].mxu0
        %v1336 = vpop.f32.mrb[0].mxu0
        %v1337 = vadd.f32 0.0, %v1336
        %v1338 = vpop.f32.mrb[0].mxu0
        %1339 = vmatprep.mubr.bf16.mxu0 0
        %1340 = vmatmul.mubr.bf16.gmra.mrb[0].mxu0 %v1259
        %v1341 = vpop.f32.mrb[0].mxu0
        %v1342 = vadd.f32 0.0, %v1341
        %v1343 = vpop.f32.mrb[0].mxu0
        %v1344 = vpop.f32.mrb[0].mxu0
        %v1345 = vadd.f32 0.0, %v1344
        %v1346 = vpop.f32.mrb[0].mxu0
        %1347 = vmatprep.mubr.bf16.mxu0 0
        %1348 = vmatmul.mubr.bf16.gmra.mrb[0].mxu0 %v1262
        %v1349 = vpop.f32.mrb[0].mxu0
        %v1350 = vadd.f32 0.0, %v1349
        %v1351 = vpop.f32.mrb[0].mxu0
        %v1352 = vpop.f32.mrb[0].mxu0
        %v1353 = vadd.f32 0.0, %v1352
        %v1354 = vpop.f32.mrb[0].mxu0
        %1355 = vmatprep.mubr.bf16.mxu0 0
        %1356 = vmatmul.mubr.bf16.gmra.mrb[0].mxu0 %v1265
        %v1357 = vpop.f32.mrb[0].mxu0
        %v1358 = vadd.f32 0.0, %v1357
        %v1359 = vpop.f32.mrb[0].mxu0
        %v1360 = vpop.f32.mrb[0].mxu0
        %v1361 = vadd.f32 0.0, %v1360
        %v1362 = vpop.f32.mrb[0].mxu0
        %1363 = vdwg.mxu0
        %v1364 = vadd.f32 %v1194, %v1302
        %v1365 = vadd.f32 %v1195, %v1305
        %v1366 = vadd.f32 %v1196, %v1310
        %v1367 = vadd.f32 %v1197, %v1313
        %v1368 = vadd.f32 %v1198, %v1318
        %v1369 = vadd.f32 %v1199, %v1321
        %v1370 = vadd.f32 %v1200, %v1326
        %v1371 = vadd.f32 %v1201, %v1329
        %v1372 = vadd.f32 %v1202, %v1334
        %v1373 = vadd.f32 %v1203, %v1337
        %v1374 = vadd.f32 %v1204, %v1342
        %v1375 = vadd.f32 %v1205, %v1345
        %v1376 = vadd.f32 %v1206, %v1350
        %v1377 = vadd.f32 %v1207, %v1353
        %v1378 = vadd.f32 %v1208, %v1358
        %v1379 = vadd.f32 %v1209, %v1361
        %s1380 = scalar_lea.vmem %s2, 128
        %v1381 = vld [vmem:[%s1380] sm:$0xf]
        %v1382 = vld [vmem:[%s1380 + $0x4] sm:$0xf]
        %v1383 = vld [vmem:[%s1380 + $0x8] sm:$0xf]
        %v1384 = vld [vmem:[%s1380 + $0xc] sm:$0xf]
        %v1385 = vld [vmem:[%s1380 + $0x10] sm:$0xf]
        %v1386 = vld [vmem:[%s1380 + $0x14] sm:$0xf]
        %v1387 = vld [vmem:[%s1380 + $0x18] sm:$0xf]
        %v1388 = vld [vmem:[%s1380 + $0x1c] sm:$0xf]
        %v1397 = vunpack.c.l.b16 %v1381
        %v1398 = vunpack.c.l.b16 %v1382
        %v1399 = vunpack.c.l.b16 %v1383
        %v1400 = vunpack.c.l.b16 %v1384
        %v1401 = vunpack.c.l.b16 %v1385
        %v1402 = vunpack.c.l.b16 %v1386
        %v1403 = vunpack.c.l.b16 %v1387
        %v1404 = vunpack.c.l.b16 %v1388
        %v1405 = vpack.c.b16 %v1398, %v1397
        %v1406 = vpack.c.b16 %v1400, %v1399
        %v1407 = vpack.c.b16 %v1402, %v1401
        %v1408 = vpack.c.b16 %v1404, %v1403
        %v1414 = vsel %vm781, %v718, 0
        %v1417 = vsel %vm781, %v721, 0
        %v1420 = vsel %vm781, %v724, 0
        %v1423 = vsel %vm781, %v727, 0
        %v1426 = vsel %vm781, %v730, 0
        %v1429 = vsel %vm781, %v733, 0
        %v1432 = vsel %vm781, %v736, 0
        %v1435 = vsel %vm781, %v739, 0
        %1437 = vmatprep.subr.bf16.mxu0 0
        %1438 = vmatpush1.bf16.msra.mxu0 %v1405
        %1439 = vmatprep.subr.bf16.mxu0 0
        %1440 = vmatpush1.bf16.msra.mxu0 %v1406
        %1441 = vmatprep.subr.bf16.mxu0 0
        %1442 = vmatpush1.bf16.msra.mxu0 %v1407
        %1443 = vmatprep.subr.bf16.mxu0 0
        %1444 = vmatpush1.bf16.msra.mxu0 %v1408
        %1445 = vmatprep.subr.bf16.mxu0 0
        %1446 = vmatpush1.bf16.msra.mxu0 0
        %1447 = vmatprep.subr.bf16.mxu0 0
        %1448 = vmatpush1.bf16.msra.mxu0 0
        %1449 = vmatprep.subr.bf16.mxu0 0
        %1450 = vmatpush1.bf16.msra.mxu0 0
        %1451 = vmatprep.subr.bf16.mxu0 0
        %1452 = vmatpush1.bf16.msra.mxu0 0
        %1453 = vmatprep.subr.bf16.mxu0 0
        %1454 = vmatpush1.bf16.msra.mxu0 0
        %1455 = vmatprep.subr.bf16.mxu0 0
        %1456 = vmatpush1.bf16.msra.mxu0 0
        %1457 = vmatprep.subr.bf16.mxu0 0
        %1458 = vmatpush1.bf16.msra.mxu0 0
        %1459 = vmatprep.subr.bf16.mxu0 0
        %1460 = vmatpush1.bf16.msra.mxu0 0
        %1461 = vmatprep.subr.bf16.mxu0 0
        %1462 = vmatpush1.bf16.msra.mxu0 0
        %1463 = vmatprep.subr.bf16.mxu0 0
        %1464 = vmatpush1.bf16.msra.mxu0 0
        %1465 = vmatprep.subr.bf16.mxu0 0
        %1466 = vmatpush1.bf16.msra.mxu0 0
        %1467 = vmatprep.subr.bf16.mxu0 0
        %1468 = vmatpush1.bf16.msra.mxu0 0
        %1469 = vmatprep.mubr.bf16.mxu0 0
        %1470 = vmatmul.mubr.bf16.gmra.mrb[0].mxu0 %v1414
        %v1471 = vpop.f32.mrb[0].mxu0
        %v1472 = vadd.f32 0.0, %v1471
        %v1473 = vpop.f32.mrb[0].mxu0
        %v1474 = vpop.f32.mrb[0].mxu0
        %v1475 = vadd.f32 0.0, %v1474
        %v1476 = vpop.f32.mrb[0].mxu0
        %1477 = vmatprep.mubr.bf16.mxu0 0
        %1478 = vmatmul.mubr.bf16.gmra.mrb[0].mxu0 %v1417
        %v1479 = vpop.f32.mrb[0].mxu0
        %v1480 = vadd.f32 0.0, %v1479
        %v1481 = vpop.f32.mrb[0].mxu0
        %v1482 = vpop.f32.mrb[0].mxu0
        %v1483 = vadd.f32 0.0, %v1482
        %v1484 = vpop.f32.mrb[0].mxu0
        %1485 = vmatprep.mubr.bf16.mxu0 0
        %1486 = vmatmul.mubr.bf16.gmra.mrb[0].mxu0 %v1420
        %v1487 = vpop.f32.mrb[0].mxu0
        %v1488 = vadd.f32 0.0, %v1487
        %v1489 = vpop.f32.mrb[0].mxu0
        %v1490 = vpop.f32.mrb[0].mxu0
        %v1491 = vadd.f32 0.0, %v1490
        %v1492 = vpop.f32.mrb[0].mxu0
        %1493 = vmatprep.mubr.bf16.mxu0 0
        %1494 = vmatmul.mubr.bf16.gmra.mrb[0].mxu0 %v1423
        %v1495 = vpop.f32.mrb[0].mxu0
        %v1496 = vadd.f32 0.0, %v1495
        %v1497 = vpop.f32.mrb[0].mxu0
        %v1498 = vpop.f32.mrb[0].mxu0
        %v1499 = vadd.f32 0.0, %v1498
        %v1500 = vpop.f32.mrb[0].mxu0
        %1501 = vmatprep.mubr.bf16.mxu0 0
        %1502 = vmatmul.mubr.bf16.gmra.mrb[0].mxu0 %v1426
        %v1503 = vpop.f32.mrb[0].mxu0
        %v1504 = vadd.f32 0.0, %v1503
        %v1505 = vpop.f32.mrb[0].mxu0
        %v1506 = vpop.f32.mrb[0].mxu0
        %v1507 = vadd.f32 0.0, %v1506
        %v1508 = vpop.f32.mrb[0].mxu0
        %1509 = vmatprep.mubr.bf16.mxu0 0
        %1510 = vmatmul.mubr.bf16.gmra.mrb[0].mxu0 %v1429
        %v1511 = vpop.f32.mrb[0].mxu0
        %v1512 = vadd.f32 0.0, %v1511
        %v1513 = vpop.f32.mrb[0].mxu0
        %v1514 = vpop.f32.mrb[0].mxu0
        %v1515 = vadd.f32 0.0, %v1514
        %v1516 = vpop.f32.mrb[0].mxu0
        %1517 = vmatprep.mubr.bf16.mxu0 0
        %1518 = vmatmul.mubr.bf16.gmra.mrb[0].mxu0 %v1432
        %v1519 = vpop.f32.mrb[0].mxu0
        %v1520 = vadd.f32 0.0, %v1519
        %v1521 = vpop.f32.mrb[0].mxu0
        %v1522 = vpop.f32.mrb[0].mxu0
        %v1523 = vadd.f32 0.0, %v1522
        %v1524 = vpop.f32.mrb[0].mxu0
        %1525 = vmatprep.mubr.bf16.mxu0 0
        %1526 = vmatmul.mubr.bf16.gmra.mrb[0].mxu0 %v1435
        %v1527 = vpop.f32.mrb[0].mxu0
        %v1528 = vadd.f32 0.0, %v1527
        %v1529 = vpop.f32.mrb[0].mxu0
        %v1530 = vpop.f32.mrb[0].mxu0
        %v1531 = vadd.f32 0.0, %v1530
        %v1532 = vpop.f32.mrb[0].mxu0
        %1533 = vdwg.mxu0
        %v1534 = vadd.f32 %v1364, %v1472
        %v1535 = vadd.f32 %v1365, %v1475
        %v1536 = vadd.f32 %v1366, %v1480
        %v1537 = vadd.f32 %v1367, %v1483
        %v1538 = vadd.f32 %v1368, %v1488
        %v1539 = vadd.f32 %v1369, %v1491
        %v1540 = vadd.f32 %v1370, %v1496
        %v1541 = vadd.f32 %v1371, %v1499
        %v1542 = vadd.f32 %v1372, %v1504
        %v1543 = vadd.f32 %v1373, %v1507
        %v1544 = vadd.f32 %v1374, %v1512
        %v1545 = vadd.f32 %v1375, %v1515
        %v1546 = vadd.f32 %v1376, %v1520
        %v1547 = vadd.f32 %v1377, %v1523
        %v1548 = vadd.f32 %v1378, %v1528
        %v1549 = vadd.f32 %v1379, %v1531
        %v1550 = vld [vmem:[%s4] sm:$0x1]
        %v1552 = vlaneseq
        %v1553 = vshrl.u32 %v1552, 7
        %v1554 = vsub.s32 0, %v1553
        %v1555 = vrot.slane %v1550, %v1554
        %v1557 = vadd.f32 %v1534, %v1555
        %v1558 = vadd.f32 %v1535, %v1555
        %v1559 = vadd.f32 %v1536, %v1555
        %v1560 = vadd.f32 %v1537, %v1555
        %v1561 = vadd.f32 %v1538, %v1555
        %v1562 = vadd.f32 %v1539, %v1555
        %v1563 = vadd.f32 %v1540, %v1555
        %v1564 = vadd.f32 %v1541, %v1555
        %v1565 = vadd.f32 %v1542, %v1555
        %v1566 = vadd.f32 %v1543, %v1555
        %v1567 = vadd.f32 %v1544, %v1555
        %v1568 = vadd.f32 %v1545, %v1555
        %v1569 = vadd.f32 %v1546, %v1555
        %v1570 = vadd.f32 %v1547, %v1555
        %v1571 = vadd.f32 %v1548, %v1555
        %v1572 = vadd.f32 %v1549, %v1555
        %v1573 = vxor.u32 %v1557, 2147483648
        %v1574 = vxor.u32 %v1558, 2147483648
        %v1575 = vxor.u32 %v1559, 2147483648
        %v1576 = vxor.u32 %v1560, 2147483648
        %v1577 = vxor.u32 %v1561, 2147483648
        %v1578 = vxor.u32 %v1562, 2147483648
        %v1579 = vxor.u32 %v1563, 2147483648
        %v1580 = vxor.u32 %v1564, 2147483648
        %v1581 = vxor.u32 %v1565, 2147483648
        %v1582 = vxor.u32 %v1566, 2147483648
        %v1583 = vxor.u32 %v1567, 2147483648
        %v1584 = vxor.u32 %v1568, 2147483648
        %v1585 = vxor.u32 %v1569, 2147483648
        %v1586 = vxor.u32 %v1570, 2147483648
        %v1587 = vxor.u32 %v1571, 2147483648
        %v1588 = vxor.u32 %v1572, 2147483648
        %v1589 = vmul.f32 %v1573, 1.442695
        %v1590 = vpow.pop %v1589
        %v1591 = vmul.f32 %v1574, 1.442695
        %v1592 = vpow.pop %v1591
        %v1593 = vmul.f32 %v1575, 1.442695
        %v1594 = vpow.pop %v1593
        %v1595 = vmul.f32 %v1576, 1.442695
        %v1596 = vpow.pop %v1595
        %v1597 = vmul.f32 %v1577, 1.442695
        %v1598 = vpow.pop %v1597
        %v1599 = vmul.f32 %v1578, 1.442695
        %v1600 = vpow.pop %v1599
        %v1601 = vmul.f32 %v1579, 1.442695
        %v1602 = vpow.pop %v1601
        %v1603 = vmul.f32 %v1580, 1.442695
        %v1604 = vpow.pop %v1603
        %v1605 = vmul.f32 %v1581, 1.442695
        %v1606 = vpow.pop %v1605
        %v1607 = vmul.f32 %v1582, 1.442695
        %v1608 = vpow.pop %v1607
        %v1609 = vmul.f32 %v1583, 1.442695
        %v1610 = vpow.pop %v1609
        %v1611 = vmul.f32 %v1584, 1.442695
        %v1612 = vpow.pop %v1611
        %v1613 = vmul.f32 %v1585, 1.442695
        %v1614 = vpow.pop %v1613
        %v1615 = vmul.f32 %v1586, 1.442695
        %v1616 = vpow.pop %v1615
        %v1617 = vmul.f32 %v1587, 1.442695
        %v1618 = vpow.pop %v1617
        %v1619 = vmul.f32 %v1588, 1.442695
        %v1620 = vpow.pop %v1619
        %v1621 = vadd.f32 %v1590, 1.0
        %v1622 = vadd.f32 %v1592, 1.0
        %v1623 = vadd.f32 %v1594, 1.0
        %v1624 = vadd.f32 %v1596, 1.0
        %v1625 = vadd.f32 %v1598, 1.0
        %v1626 = vadd.f32 %v1600, 1.0
        %v1627 = vadd.f32 %v1602, 1.0
        %v1628 = vadd.f32 %v1604, 1.0
        %v1629 = vadd.f32 %v1606, 1.0
        %v1630 = vadd.f32 %v1608, 1.0
        %v1631 = vadd.f32 %v1610, 1.0
        %v1632 = vadd.f32 %v1612, 1.0
        %v1633 = vadd.f32 %v1614, 1.0
        %v1634 = vadd.f32 %v1616, 1.0
        %v1635 = vadd.f32 %v1618, 1.0
        %v1636 = vadd.f32 %v1620, 1.0
        %v1637 = vrcp.pop %v1621
        %v1638 = vmul.f32 1.0, %v1637
        %v1639 = vrcp.pop %v1622
        %v1640 = vmul.f32 1.0, %v1639
        %v1641 = vrcp.pop %v1623
        %v1642 = vmul.f32 1.0, %v1641
        %v1643 = vrcp.pop %v1624
        %v1644 = vmul.f32 1.0, %v1643
        %v1645 = vrcp.pop %v1625
        %v1646 = vmul.f32 1.0, %v1645
        %v1647 = vrcp.pop %v1626
        %v1648 = vmul.f32 1.0, %v1647
        %v1649 = vrcp.pop %v1627
        %v1650 = vmul.f32 1.0, %v1649
        %v1651 = vrcp.pop %v1628
        %v1652 = vmul.f32 1.0, %v1651
        %v1653 = vrcp.pop %v1629
        %v1654 = vmul.f32 1.0, %v1653
        %v1655 = vrcp.pop %v1630
        %v1656 = vmul.f32 1.0, %v1655
        %v1657 = vrcp.pop %v1631
        %v1658 = vmul.f32 1.0, %v1657
        %v1659 = vrcp.pop %v1632
        %v1660 = vmul.f32 1.0, %v1659
        %v1661 = vrcp.pop %v1633
        %v1662 = vmul.f32 1.0, %v1661
        %v1663 = vrcp.pop %v1634
        %v1664 = vmul.f32 1.0, %v1663
        %v1665 = vrcp.pop %v1635
        %v1666 = vmul.f32 1.0, %v1665
        %v1667 = vrcp.pop %v1636
        %v1668 = vmul.f32 1.0, %v1667
        %1685 = vrot.lane.b32.xlu0 %v357, 32
        %v1686 = vpop.permute.xlu0 %1685
        %1687 = vrot.lane.b32.xlu0 %v358, 32
        %v1688 = vpop.permute.xlu0 %1687
        %1689 = vrot.lane.b32.xlu0 %v359, 32
        %v1690 = vpop.permute.xlu0 %1689
        %1691 = vrot.lane.b32.xlu0 %v360, 32
        %v1692 = vpop.permute.xlu0 %1691
        %1693 = vrot.lane.b32.xlu0 %v361, 32
        %v1694 = vpop.permute.xlu0 %1693
        %1695 = vrot.lane.b32.xlu0 %v362, 32
        %v1696 = vpop.permute.xlu0 %1695
        %1697 = vrot.lane.b32.xlu0 %v363, 32
        %v1698 = vpop.permute.xlu0 %1697
        %1699 = vrot.lane.b32.xlu0 %v364, 32
        %v1700 = vpop.permute.xlu0 %1699
        %1701 = vrot.lane.b32.xlu0 %v365, 32
        %v1702 = vpop.permute.xlu0 %1701
        %1703 = vrot.lane.b32.xlu0 %v366, 32
        %v1704 = vpop.permute.xlu0 %1703
        %1705 = vrot.lane.b32.xlu0 %v367, 32
        %v1706 = vpop.permute.xlu0 %1705
        %1707 = vrot.lane.b32.xlu0 %v368, 32
        %v1708 = vpop.permute.xlu0 %1707
        %1709 = vrot.lane.b32.xlu0 %v369, 32
        %v1710 = vpop.permute.xlu0 %1709
        %1711 = vrot.lane.b32.xlu0 %v370, 32
        %v1712 = vpop.permute.xlu0 %1711
        %1713 = vrot.lane.b32.xlu0 %v371, 32
        %v1714 = vpop.permute.xlu0 %1713
        %1715 = vrot.lane.b32.xlu0 %v372, 32
        %v1716 = vpop.permute.xlu0 %1715
        %v1733 = vmul.f32 %v1638, %v1686
        %v1734 = vmul.f32 %v1640, %v1688
        %v1735 = vmul.f32 %v1642, %v1690
        %v1736 = vmul.f32 %v1644, %v1692
        %v1737 = vmul.f32 %v1646, %v1694
        %v1738 = vmul.f32 %v1648, %v1696
        %v1739 = vmul.f32 %v1650, %v1698
        %v1740 = vmul.f32 %v1652, %v1700
        %v1741 = vmul.f32 %v1654, %v1702
        %v1742 = vmul.f32 %v1656, %v1704
        %v1743 = vmul.f32 %v1658, %v1706
        %v1744 = vmul.f32 %v1660, %v1708
        %v1745 = vmul.f32 %v1662, %v1710
        %v1746 = vmul.f32 %v1664, %v1712
        %v1747 = vmul.f32 %v1666, %v1714
        %v1748 = vmul.f32 %v1668, %v1716
        %v1749 = vpack.c.bf16 %v1734, %v1733
        %v1750 = vpack.c.bf16 %v1736, %v1735
        %v1751 = vpack.c.bf16 %v1738, %v1737
        %v1752 = vpack.c.bf16 %v1740, %v1739
        %v1753 = vpack.c.bf16 %v1742, %v1741
        %v1754 = vpack.c.bf16 %v1744, %v1743
        %v1755 = vpack.c.bf16 %v1746, %v1745
        %v1756 = vpack.c.bf16 %v1748, %v1747
        %v1765 = vrot.slane %v1749, 7
        %v1766 = vrot.slane %v1750, 7
        %v1767 = vrot.slane %v1751, 7
        %v1768 = vrot.slane %v1752, 7
        %v1769 = vrot.slane %v1753, 7
        %v1770 = vrot.slane %v1754, 7
        %v1771 = vrot.slane %v1755, 7
        %v1772 = vrot.slane %v1756, 7
        %1773 = vrot.lane.b32.xlu0 %v1765, 96
        %v1774 = vpop.permute.xlu0 %1773
        %1775 = vrot.lane.b32.xlu0 %v1766, 96
        %v1776 = vpop.permute.xlu0 %1775
        %1777 = vrot.lane.b32.xlu0 %v1767, 96
        %v1778 = vpop.permute.xlu0 %1777
        %1779 = vrot.lane.b32.xlu0 %v1768, 96
        %v1780 = vpop.permute.xlu0 %1779
        %1781 = vrot.lane.b32.xlu0 %v1769, 96
        %v1782 = vpop.permute.xlu0 %1781
        %1783 = vrot.lane.b32.xlu0 %v1770, 96
        %v1784 = vpop.permute.xlu0 %1783
        %1785 = vrot.lane.b32.xlu0 %v1771, 96
        %v1786 = vpop.permute.xlu0 %1785
        %1787 = vrot.lane.b32.xlu0 %v1772, 96
        %v1788 = vpop.permute.xlu0 %1787
        %v1790 = vsel %vm494, 0, %v1774
        %v1792 = vsel %vm494, 0, %v1776
        %v1794 = vsel %vm494, 0, %v1778
        %v1796 = vsel %vm494, 0, %v1780
        %v1798 = vsel %vm494, 0, %v1782
        %v1800 = vsel %vm494, 0, %v1784
        %v1802 = vsel %vm494, 0, %v1786
        %v1804 = vsel %vm494, 0, %v1788
        %v1805 = vsel %vm494, %v1774, 0
        %v1806 = vsel %vm494, %v1776, 0
        %v1807 = vsel %vm494, %v1778, 0
        %v1808 = vsel %vm494, %v1780, 0
        %v1809 = vsel %vm494, %v1782, 0
        %v1810 = vsel %vm494, %v1784, 0
        %v1811 = vsel %vm494, %v1786, 0
        %v1812 = vsel %vm494, %v1788, 0
        %v1813 = vshrl.u32 %v1790, 16
        %v1815 = vshll.u32 %v1790, 16
        %v1817 = vrot.slane %v1815, 1
        %v1818 = vor.u32 %v1813, %v1817
        %v1819 = vshll.u32 %v1805, 16
        %v1821 = vrot.slane %v1819, 1
        %v1822 = vsel %vm520, %v1818, %v1821
        %v1823 = vshrl.u32 %v1792, 16
        %v1825 = vshll.u32 %v1792, 16
        %v1827 = vrot.slane %v1825, 1
        %v1828 = vor.u32 %v1823, %v1827
        %v1829 = vshll.u32 %v1806, 16
        %v1831 = vrot.slane %v1829, 1
        %v1832 = vsel %vm520, %v1828, %v1831
        %v1833 = vshrl.u32 %v1794, 16
        %v1835 = vshll.u32 %v1794, 16
        %v1837 = vrot.slane %v1835, 1
        %v1838 = vor.u32 %v1833, %v1837
        %v1839 = vshll.u32 %v1807, 16
        %v1841 = vrot.slane %v1839, 1
        %v1842 = vsel %vm520, %v1838, %v1841
        %v1843 = vshrl.u32 %v1796, 16
        %v1845 = vshll.u32 %v1796, 16
        %v1847 = vrot.slane %v1845, 1
        %v1848 = vor.u32 %v1843, %v1847
        %v1849 = vshll.u32 %v1808, 16
        %v1851 = vrot.slane %v1849, 1
        %v1852 = vsel %vm520, %v1848, %v1851
        %v1853 = vshrl.u32 %v1798, 16
        %v1855 = vshll.u32 %v1798, 16
        %v1857 = vrot.slane %v1855, 1
        %v1858 = vor.u32 %v1853, %v1857
        %v1859 = vshll.u32 %v1809, 16
        %v1861 = vrot.slane %v1859, 1
        %v1862 = vsel %vm520, %v1858, %v1861
        %v1863 = vshrl.u32 %v1800, 16
        %v1865 = vshll.u32 %v1800, 16
        %v1867 = vrot.slane %v1865, 1
        %v1868 = vor.u32 %v1863, %v1867
        %v1869 = vshll.u32 %v1810, 16
        %v1871 = vrot.slane %v1869, 1
        %v1872 = vsel %vm520, %v1868, %v1871
        %v1873 = vshrl.u32 %v1802, 16
        %v1875 = vshll.u32 %v1802, 16
        %v1877 = vrot.slane %v1875, 1
        %v1878 = vor.u32 %v1873, %v1877
        %v1879 = vshll.u32 %v1811, 16
        %v1881 = vrot.slane %v1879, 1
        %v1882 = vsel %vm520, %v1878, %v1881
        %v1883 = vshrl.u32 %v1804, 16
        %v1885 = vshll.u32 %v1804, 16
        %v1887 = vrot.slane %v1885, 1
        %v1888 = vor.u32 %v1883, %v1887
        %v1889 = vshll.u32 %v1812, 16
        %v1891 = vrot.slane %v1889, 1
        %v1892 = vsel %vm520, %v1888, %v1891
        %v1909 = vrot.slane %v1790, 1
        %v1910 = vrot.slane %v1805, 1
        %v1911 = vsel %vm617, %v1909, %v1910
        %v1912 = vrot.slane %v1792, 1
        %v1913 = vrot.slane %v1806, 1
        %v1914 = vsel %vm617, %v1912, %v1913
        %v1915 = vrot.slane %v1794, 1
        %v1916 = vrot.slane %v1807, 1
        %v1917 = vsel %vm617, %v1915, %v1916
        %v1918 = vrot.slane %v1796, 1
        %v1919 = vrot.slane %v1808, 1
        %v1920 = vsel %vm617, %v1918, %v1919
        %v1921 = vrot.slane %v1798, 1
        %v1922 = vrot.slane %v1809, 1
        %v1923 = vsel %vm617, %v1921, %v1922
        %v1924 = vrot.slane %v1800, 1
        %v1925 = vrot.slane %v1810, 1
        %v1926 = vsel %vm617, %v1924, %v1925
        %v1927 = vrot.slane %v1802, 1
        %v1928 = vrot.slane %v1811, 1
        %v1929 = vsel %vm617, %v1927, %v1928
        %v1930 = vrot.slane %v1804, 1
        %v1931 = vrot.slane %v1812, 1
        %v1932 = vsel %vm617, %v1930, %v1931
        %v1933 = vrot.slane %v1813, 1
        %v1934 = vrot.slane %v1815, 2
        %v1935 = vor.u32 %v1933, %v1934
        %v1936 = vshrl.u32 %v1805, 16
        %v1938 = vrot.slane %v1936, 1
        %v1939 = vrot.slane %v1819, 2
        %v1940 = vor.u32 %v1938, %v1939
        %v1941 = vsel %vm642, %v1935, %v1940
        %v1942 = vrot.slane %v1823, 1
        %v1943 = vrot.slane %v1825, 2
        %v1944 = vor.u32 %v1942, %v1943
        %v1945 = vshrl.u32 %v1806, 16
        %v1947 = vrot.slane %v1945, 1
        %v1948 = vrot.slane %v1829, 2
        %v1949 = vor.u32 %v1947, %v1948
        %v1950 = vsel %vm642, %v1944, %v1949
        %v1951 = vrot.slane %v1833, 1
        %v1952 = vrot.slane %v1835, 2
        %v1953 = vor.u32 %v1951, %v1952
        %v1954 = vshrl.u32 %v1807, 16
        %v1956 = vrot.slane %v1954, 1
        %v1957 = vrot.slane %v1839, 2
        %v1958 = vor.u32 %v1956, %v1957
        %v1959 = vsel %vm642, %v1953, %v1958
        %v1960 = vrot.slane %v1843, 1
        %v1961 = vrot.slane %v1845, 2
        %v1962 = vor.u32 %v1960, %v1961
        %v1963 = vshrl.u32 %v1808, 16
        %v1965 = vrot.slane %v1963, 1
        %v1966 = vrot.slane %v1849, 2
        %v1967 = vor.u32 %v1965, %v1966
        %v1968 = vsel %vm642, %v1962, %v1967
        %v1969 = vrot.slane %v1853, 1
        %v1970 = vrot.slane %v1855, 2
        %v1971 = vor.u32 %v1969, %v1970
        %v1972 = vshrl.u32 %v1809, 16
        %v1974 = vrot.slane %v1972, 1
        %v1975 = vrot.slane %v1859, 2
        %v1976 = vor.u32 %v1974, %v1975
        %v1977 = vsel %vm642, %v1971, %v1976
        %v1978 = vrot.slane %v1863, 1
        %v1979 = vrot.slane %v1865, 2
        %v1980 = vor.u32 %v1978, %v1979
        %v1981 = vshrl.u32 %v1810, 16
        %v1983 = vrot.slane %v1981, 1
        %v1984 = vrot.slane %v1869, 2
        %v1985 = vor.u32 %v1983, %v1984
        %v1986 = vsel %vm642, %v1980, %v1985
        %v1987 = vrot.slane %v1873, 1
        %v1988 = vrot.slane %v1875, 2
        %v1989 = vor.u32 %v1987, %v1988
        %v1990 = vshrl.u32 %v1811, 16
        %v1992 = vrot.slane %v1990, 1
        %v1993 = vrot.slane %v1879, 2
        %v1994 = vor.u32 %v1992, %v1993
        %v1995 = vsel %vm642, %v1989, %v1994
        %v1996 = vrot.slane %v1883, 1
        %v1997 = vrot.slane %v1885, 2
        %v1998 = vor.u32 %v1996, %v1997
        %v1999 = vshrl.u32 %v1812, 16
        %v2001 = vrot.slane %v1999, 1
        %v2002 = vrot.slane %v1889, 2
        %v2003 = vor.u32 %v2001, %v2002
        %v2004 = vsel %vm642, %v1998, %v2003
        %v2005 = vrot.slane %v1790, 2
        %v2006 = vrot.slane %v1805, 2
        %v2007 = vsel %vm715, %v2005, %v2006
        %v2008 = vrot.slane %v1792, 2
        %v2009 = vrot.slane %v1806, 2
        %v2010 = vsel %vm715, %v2008, %v2009
        %v2011 = vrot.slane %v1794, 2
        %v2012 = vrot.slane %v1807, 2
        %v2013 = vsel %vm715, %v2011, %v2012
        %v2014 = vrot.slane %v1796, 2
        %v2015 = vrot.slane %v1808, 2
        %v2016 = vsel %vm715, %v2014, %v2015
        %v2017 = vrot.slane %v1798, 2
        %v2018 = vrot.slane %v1809, 2
        %v2019 = vsel %vm715, %v2017, %v2018
        %v2020 = vrot.slane %v1800, 2
        %v2021 = vrot.slane %v1810, 2
        %v2022 = vsel %vm715, %v2020, %v2021
        %v2023 = vrot.slane %v1802, 2
        %v2024 = vrot.slane %v1811, 2
        %v2025 = vsel %vm715, %v2023, %v2024
        %v2026 = vrot.slane %v1804, 2
        %v2027 = vrot.slane %v1812, 2
        %v2028 = vsel %vm715, %v2026, %v2027
        %v2029 = vld [vmem:[#allocation2] sm:$0xf]
        %v2030 = vld [vmem:[#allocation2 + $0x4] sm:$0xf]
        %v2031 = vld [vmem:[#allocation2 + $0x8] sm:$0xf]
        %v2032 = vld [vmem:[#allocation2 + $0xc] sm:$0xf]
        %s2033 = scalar_lea.vmem [#allocation2], 16
        %v2034 = vld [vmem:[%s2033] sm:$0xf]
        %v2035 = vld [vmem:[%s2033 + $0x4] sm:$0xf]
        %v2036 = vld [vmem:[%s2033 + $0x8] sm:$0xf]
        %v2037 = vld [vmem:[%s2033 + $0xc] sm:$0xf]
        %v2042 = vunpack.c.l.b16 %v2034
        %v2043 = vunpack.c.l.b16 %v2035
        %v2044 = vunpack.c.l.b16 %v2036
        %v2045 = vunpack.c.l.b16 %v2037
        %v2046 = vpack.c.b16 %v2043, %v2042
        %v2047 = vpack.c.b16 %v2045, %v2044
        %v2051 = vsel %vm453, %v1822, 0
        %v2054 = vsel %vm453, %v1832, 0
        %v2057 = vsel %vm453, %v1842, 0
        %v2060 = vsel %vm453, %v1852, 0
        %v2063 = vsel %vm453, %v1862, 0
        %v2066 = vsel %vm453, %v1872, 0
        %v2069 = vsel %vm453, %v1882, 0
        %v2072 = vsel %vm453, %v1892, 0
        %2074 = vmatprep.subr.bf16.mxu0 0
        %2075 = vmatpush1.bf16.msra.mxu0 %v2046
        %2076 = vmatprep.subr.bf16.mxu0 0
        %2077 = vmatpush1.bf16.msra.mxu0 %v2047
        %2078 = vmatprep.subr.bf16.mxu0 0
        %2079 = vmatpush1.bf16.msra.mxu0 0
        %2080 = vmatprep.subr.bf16.mxu0 0
        %2081 = vmatpush1.bf16.msra.mxu0 0
        %2082 = vmatprep.subr.bf16.mxu0 0
        %2083 = vmatpush1.bf16.msra.mxu0 0
        %2084 = vmatprep.subr.bf16.mxu0 0
        %2085 = vmatpush1.bf16.msra.mxu0 0
        %2086 = vmatprep.subr.bf16.mxu0 0
        %2087 = vmatpush1.bf16.msra.mxu0 0
        %2088 = vmatprep.subr.bf16.mxu0 0
        %2089 = vmatpush1.bf16.msra.mxu0 0
        %2090 = vmatprep.subr.bf16.mxu0 0
        %2091 = vmatpush1.bf16.msra.mxu0 0
        %2092 = vmatprep.subr.bf16.mxu0 0
        %2093 = vmatpush1.bf16.msra.mxu0 0
        %2094 = vmatprep.subr.bf16.mxu0 0
        %2095 = vmatpush1.bf16.msra.mxu0 0
        %2096 = vmatprep.subr.bf16.mxu0 0
        %2097 = vmatpush1.bf16.msra.mxu0 0
        %2098 = vmatprep.subr.bf16.mxu0 0
        %2099 = vmatpush1.bf16.msra.mxu0 0
        %2100 = vmatprep.subr.bf16.mxu0 0
        %2101 = vmatpush1.bf16.msra.mxu0 0
        %2102 = vmatprep.subr.bf16.mxu0 0
        %2103 = vmatpush1.bf16.msra.mxu0 0
        %2104 = vmatprep.subr.bf16.mxu0 0
        %2105 = vmatpush1.bf16.msra.mxu0 0
        %2106 = vmatprep.mubr.bf16.mxu0 0
        %2107 = vmatmul.mubr.bf16.gmra.mrb[0].mxu0 %v2051
        %v2108 = vpop.f32.mrb[0].mxu0
        %v2109 = vadd.f32 0.0, %v2108
        %v2110 = vpop.f32.mrb[0].mxu0
        %v2111 = vpop.f32.mrb[0].mxu0
        %v2112 = vadd.f32 0.0, %v2111
        %v2113 = vpop.f32.mrb[0].mxu0
        %2114 = vmatprep.mubr.bf16.mxu0 0
        %2115 = vmatmul.mubr.bf16.gmra.mrb[0].mxu0 %v2054
        %v2116 = vpop.f32.mrb[0].mxu0
        %v2117 = vadd.f32 0.0, %v2116
        %v2118 = vpop.f32.mrb[0].mxu0
        %v2119 = vpop.f32.mrb[0].mxu0
        %v2120 = vadd.f32 0.0, %v2119
        %v2121 = vpop.f32.mrb[0].mxu0
        %2122 = vmatprep.mubr.bf16.mxu0 0
        %2123 = vmatmul.mubr.bf16.gmra.mrb[0].mxu0 %v2057
        %v2124 = vpop.f32.mrb[0].mxu0
        %v2125 = vadd.f32 0.0, %v2124
        %v2126 = vpop.f32.mrb[0].mxu0
        %v2127 = vpop.f32.mrb[0].mxu0
        %v2128 = vadd.f32 0.0, %v2127
        %v2129 = vpop.f32.mrb[0].mxu0
        %2130 = vmatprep.mubr.bf16.mxu0 0
        %2131 = vmatmul.mubr.bf16.gmra.mrb[0].mxu0 %v2060
        %v2132 = vpop.f32.mrb[0].mxu0
        %v2133 = vadd.f32 0.0, %v2132
        %v2134 = vpop.f32.mrb[0].mxu0
        %v2135 = vpop.f32.mrb[0].mxu0
        %v2136 = vadd.f32 0.0, %v2135
        %v2137 = vpop.f32.mrb[0].mxu0
        %2138 = vmatprep.mubr.bf16.mxu0 0
        %2139 = vmatmul.mubr.bf16.gmra.mrb[0].mxu0 %v2063
        %v2140 = vpop.f32.mrb[0].mxu0
        %v2141 = vadd.f32 0.0, %v2140
        %v2142 = vpop.f32.mrb[0].mxu0
        %v2143 = vpop.f32.mrb[0].mxu0
        %v2144 = vadd.f32 0.0, %v2143
        %v2145 = vpop.f32.mrb[0].mxu0
        %2146 = vmatprep.mubr.bf16.mxu0 0
        %2147 = vmatmul.mubr.bf16.gmra.mrb[0].mxu0 %v2066
        %v2148 = vpop.f32.mrb[0].mxu0
        %v2149 = vadd.f32 0.0, %v2148
        %v2150 = vpop.f32.mrb[0].mxu0
        %v2151 = vpop.f32.mrb[0].mxu0
        %v2152 = vadd.f32 0.0, %v2151
        %v2153 = vpop.f32.mrb[0].mxu0
        %2154 = vmatprep.mubr.bf16.mxu0 0
        %2155 = vmatmul.mubr.bf16.gmra.mrb[0].mxu0 %v2069
        %v2156 = vpop.f32.mrb[0].mxu0
        %v2157 = vadd.f32 0.0, %v2156
        %v2158 = vpop.f32.mrb[0].mxu0
        %v2159 = vpop.f32.mrb[0].mxu0
        %v2160 = vadd.f32 0.0, %v2159
        %v2161 = vpop.f32.mrb[0].mxu0
        %2162 = vmatprep.mubr.bf16.mxu0 0
        %2163 = vmatmul.mubr.bf16.gmra.mrb[0].mxu0 %v2072
        %v2164 = vpop.f32.mrb[0].mxu0
        %v2165 = vadd.f32 0.0, %v2164
        %v2166 = vpop.f32.mrb[0].mxu0
        %v2167 = vpop.f32.mrb[0].mxu0
        %v2168 = vadd.f32 0.0, %v2167
        %v2169 = vpop.f32.mrb[0].mxu0
        %2170 = vdwg.mxu0
        %v2175 = vunpack.c.l.b16 %v2029
        %v2176 = vunpack.c.l.b16 %v2030
        %v2177 = vunpack.c.l.b16 %v2031
        %v2178 = vunpack.c.l.b16 %v2032
        %v2179 = vpack.c.b16 %v2176, %v2175
        %v2180 = vpack.c.b16 %v2178, %v2177
        %v2183 = vsel %vm453, %v1790, 0
        %v2185 = vsel %vm453, %v1792, 0
        %v2187 = vsel %vm453, %v1794, 0
        %v2189 = vsel %vm453, %v1796, 0
        %v2191 = vsel %vm453, %v1798, 0
        %v2193 = vsel %vm453, %v1800, 0
        %v2195 = vsel %vm453, %v1802, 0
        %v2197 = vsel %vm453, %v1804, 0
        %2199 = vmatprep.subr.bf16.mxu0 0
        %2200 = vmatpush1.bf16.msra.mxu0 %v2179
        %2201 = vmatprep.subr.bf16.mxu0 0
        %2202 = vmatpush1.bf16.msra.mxu0 %v2180
        %2203 = vmatprep.subr.bf16.mxu0 0
        %2204 = vmatpush1.bf16.msra.mxu0 0
        %2205 = vmatprep.subr.bf16.mxu0 0
        %2206 = vmatpush1.bf16.msra.mxu0 0
        %2207 = vmatprep.subr.bf16.mxu0 0
        %2208 = vmatpush1.bf16.msra.mxu0 0
        %2209 = vmatprep.subr.bf16.mxu0 0
        %2210 = vmatpush1.bf16.msra.mxu0 0
        %2211 = vmatprep.subr.bf16.mxu0 0
        %2212 = vmatpush1.bf16.msra.mxu0 0
        %2213 = vmatprep.subr.bf16.mxu0 0
        %2214 = vmatpush1.bf16.msra.mxu0 0
        %2215 = vmatprep.subr.bf16.mxu0 0
        %2216 = vmatpush1.bf16.msra.mxu0 0
        %2217 = vmatprep.subr.bf16.mxu0 0
        %2218 = vmatpush1.bf16.msra.mxu0 0
        %2219 = vmatprep.subr.bf16.mxu0 0
        %2220 = vmatpush1.bf16.msra.mxu0 0
        %2221 = vmatprep.subr.bf16.mxu0 0
        %2222 = vmatpush1.bf16.msra.mxu0 0
        %2223 = vmatprep.subr.bf16.mxu0 0
        %2224 = vmatpush1.bf16.msra.mxu0 0
        %2225 = vmatprep.subr.bf16.mxu0 0
        %2226 = vmatpush1.bf16.msra.mxu0 0
        %2227 = vmatprep.subr.bf16.mxu0 0
        %2228 = vmatpush1.bf16.msra.mxu0 0
        %2229 = vmatprep.subr.bf16.mxu0 0
        %2230 = vmatpush1.bf16.msra.mxu0 0
        %2231 = vmatprep.mubr.bf16.mxu0 0
        %2232 = vmatmul.mubr.bf16.gmra.mrb[0].mxu0 %v2183
        %v2233 = vpop.f32.mrb[0].mxu0
        %v2234 = vadd.f32 %v2109, %v2233
        %v2235 = vpop.f32.mrb[0].mxu0
        %v2236 = vpop.f32.mrb[0].mxu0
        %v2237 = vadd.f32 %v2112, %v2236
        %v2238 = vpop.f32.mrb[0].mxu0
        %2239 = vmatprep.mubr.bf16.mxu0 0
        %2240 = vmatmul.mubr.bf16.gmra.mrb[0].mxu0 %v2185
        %v2241 = vpop.f32.mrb[0].mxu0
        %v2242 = vadd.f32 %v2117, %v2241
        %v2243 = vpop.f32.mrb[0].mxu0
        %v2244 = vpop.f32.mrb[0].mxu0
        %v2245 = vadd.f32 %v2120, %v2244
        %v2246 = vpop.f32.mrb[0].mxu0
        %2247 = vmatprep.mubr.bf16.mxu0 0
        %2248 = vmatmul.mubr.bf16.gmra.mrb[0].mxu0 %v2187
        %v2249 = vpop.f32.mrb[0].mxu0
        %v2250 = vadd.f32 %v2125, %v2249
        %v2251 = vpop.f32.mrb[0].mxu0
        %v2252 = vpop.f32.mrb[0].mxu0
        %v2253 = vadd.f32 %v2128, %v2252
        %v2254 = vpop.f32.mrb[0].mxu0
        %2255 = vmatprep.mubr.bf16.mxu0 0
        %2256 = vmatmul.mubr.bf16.gmra.mrb[0].mxu0 %v2189
        %v2257 = vpop.f32.mrb[0].mxu0
        %v2258 = vadd.f32 %v2133, %v2257
        %v2259 = vpop.f32.mrb[0].mxu0
        %v2260 = vpop.f32.mrb[0].mxu0
        %v2261 = vadd.f32 %v2136, %v2260
        %v2262 = vpop.f32.mrb[0].mxu0
        %2263 = vmatprep.mubr.bf16.mxu0 0
        %2264 = vmatmul.mubr.bf16.gmra.mrb[0].mxu0 %v2191
        %v2265 = vpop.f32.mrb[0].mxu0
        %v2266 = vadd.f32 %v2141, %v2265
        %v2267 = vpop.f32.mrb[0].mxu0
        %v2268 = vpop.f32.mrb[0].mxu0
        %v2269 = vadd.f32 %v2144, %v2268
        %v2270 = vpop.f32.mrb[0].mxu0
        %2271 = vmatprep.mubr.bf16.mxu0 0
        %2272 = vmatmul.mubr.bf16.gmra.mrb[0].mxu0 %v2193
        %v2273 = vpop.f32.mrb[0].mxu0
        %v2274 = vadd.f32 %v2149, %v2273
        %v2275 = vpop.f32.mrb[0].mxu0
        %v2276 = vpop.f32.mrb[0].mxu0
        %v2277 = vadd.f32 %v2152, %v2276
        %v2278 = vpop.f32.mrb[0].mxu0
        %2279 = vmatprep.mubr.bf16.mxu0 0
        %2280 = vmatmul.mubr.bf16.gmra.mrb[0].mxu0 %v2195
        %v2281 = vpop.f32.mrb[0].mxu0
        %v2282 = vadd.f32 %v2157, %v2281
        %v2283 = vpop.f32.mrb[0].mxu0
        %v2284 = vpop.f32.mrb[0].mxu0
        %v2285 = vadd.f32 %v2160, %v2284
        %v2286 = vpop.f32.mrb[0].mxu0
        %2287 = vmatprep.mubr.bf16.mxu0 0
        %2288 = vmatmul.mubr.bf16.gmra.mrb[0].mxu0 %v2197
        %v2289 = vpop.f32.mrb[0].mxu0
        %v2290 = vadd.f32 %v2165, %v2289
        %v2291 = vpop.f32.mrb[0].mxu0
        %v2292 = vpop.f32.mrb[0].mxu0
        %v2293 = vadd.f32 %v2168, %v2292
        %v2294 = vpop.f32.mrb[0].mxu0
        %2295 = vdwg.mxu0
        %s2296 = scalar_lea.vmem [#allocation2], 32
        %v2297 = vld [vmem:[%s2296] sm:$0xf]
        %v2298 = vld [vmem:[%s2296 + $0x4] sm:$0xf]
        %v2299 = vld [vmem:[%s2296 + $0x8] sm:$0xf]
        %v2300 = vld [vmem:[%s2296 + $0xc] sm:$0xf]
        %v2305 = vunpack.c.l.b16 %v2297
        %v2306 = vunpack.c.l.b16 %v2298
        %v2307 = vunpack.c.l.b16 %v2299
        %v2308 = vunpack.c.l.b16 %v2300
        %v2309 = vpack.c.b16 %v2306, %v2305
        %v2310 = vpack.c.b16 %v2308, %v2307
        %v2314 = vsel %vm453, %v1911, 0
        %v2317 = vsel %vm453, %v1914, 0
        %v2320 = vsel %vm453, %v1917, 0
        %v2323 = vsel %vm453, %v1920, 0
        %v2326 = vsel %vm453, %v1923, 0
        %v2329 = vsel %vm453, %v1926, 0
        %v2332 = vsel %vm453, %v1929, 0
        %v2335 = vsel %vm453, %v1932, 0
        %2337 = vmatprep.subr.bf16.mxu0 0
        %2338 = vmatpush1.bf16.msra.mxu0 %v2309
        %2339 = vmatprep.subr.bf16.mxu0 0
        %2340 = vmatpush1.bf16.msra.mxu0 %v2310
        %2341 = vmatprep.subr.bf16.mxu0 0
        %2342 = vmatpush1.bf16.msra.mxu0 0
        %2343 = vmatprep.subr.bf16.mxu0 0
        %2344 = vmatpush1.bf16.msra.mxu0 0
        %2345 = vmatprep.subr.bf16.mxu0 0
        %2346 = vmatpush1.bf16.msra.mxu0 0
        %2347 = vmatprep.subr.bf16.mxu0 0
        %2348 = vmatpush1.bf16.msra.mxu0 0
        %2349 = vmatprep.subr.bf16.mxu0 0
        %2350 = vmatpush1.bf16.msra.mxu0 0
        %2351 = vmatprep.subr.bf16.mxu0 0
        %2352 = vmatpush1.bf16.msra.mxu0 0
        %2353 = vmatprep.subr.bf16.mxu0 0
        %2354 = vmatpush1.bf16.msra.mxu0 0
        %2355 = vmatprep.subr.bf16.mxu0 0
        %2356 = vmatpush1.bf16.msra.mxu0 0
        %2357 = vmatprep.subr.bf16.mxu0 0
        %2358 = vmatpush1.bf16.msra.mxu0 0
        %2359 = vmatprep.subr.bf16.mxu0 0
        %2360 = vmatpush1.bf16.msra.mxu0 0
        %2361 = vmatprep.subr.bf16.mxu0 0
        %2362 = vmatpush1.bf16.msra.mxu0 0
        %2363 = vmatprep.subr.bf16.mxu0 0
        %2364 = vmatpush1.bf16.msra.mxu0 0
        %2365 = vmatprep.subr.bf16.mxu0 0
        %2366 = vmatpush1.bf16.msra.mxu0 0
        %2367 = vmatprep.subr.bf16.mxu0 0
        %2368 = vmatpush1.bf16.msra.mxu0 0
        %2369 = vmatprep.mubr.bf16.mxu0 0
        %2370 = vmatmul.mubr.bf16.gmra.mrb[0].mxu0 %v2314
        %v2371 = vpop.f32.mrb[0].mxu0
        %v2372 = vadd.f32 0.0, %v2371
        %v2373 = vpop.f32.mrb[0].mxu0
        %v2374 = vpop.f32.mrb[0].mxu0
        %v2375 = vadd.f32 0.0, %v2374
        %v2376 = vpop.f32.mrb[0].mxu0
        %2377 = vmatprep.mubr.bf16.mxu0 0
        %2378 = vmatmul.mubr.bf16.gmra.mrb[0].mxu0 %v2317
        %v2379 = vpop.f32.mrb[0].mxu0
        %v2380 = vadd.f32 0.0, %v2379
        %v2381 = vpop.f32.mrb[0].mxu0
        %v2382 = vpop.f32.mrb[0].mxu0
        %v2383 = vadd.f32 0.0, %v2382
        %v2384 = vpop.f32.mrb[0].mxu0
        %2385 = vmatprep.mubr.bf16.mxu0 0
        %2386 = vmatmul.mubr.bf16.gmra.mrb[0].mxu0 %v2320
        %v2387 = vpop.f32.mrb[0].mxu0
        %v2388 = vadd.f32 0.0, %v2387
        %v2389 = vpop.f32.mrb[0].mxu0
        %v2390 = vpop.f32.mrb[0].mxu0
        %v2391 = vadd.f32 0.0, %v2390
        %v2392 = vpop.f32.mrb[0].mxu0
        %2393 = vmatprep.mubr.bf16.mxu0 0
        %2394 = vmatmul.mubr.bf16.gmra.mrb[0].mxu0 %v2323
        %v2395 = vpop.f32.mrb[0].mxu0
        %v2396 = vadd.f32 0.0, %v2395
        %v2397 = vpop.f32.mrb[0].mxu0
        %v2398 = vpop.f32.mrb[0].mxu0
        %v2399 = vadd.f32 0.0, %v2398
        %v2400 = vpop.f32.mrb[0].mxu0
        %2401 = vmatprep.mubr.bf16.mxu0 0
        %2402 = vmatmul.mubr.bf16.gmra.mrb[0].mxu0 %v2326
        %v2403 = vpop.f32.mrb[0].mxu0
        %v2404 = vadd.f32 0.0, %v2403
        %v2405 = vpop.f32.mrb[0].mxu0
        %v2406 = vpop.f32.mrb[0].mxu0
        %v2407 = vadd.f32 0.0, %v2406
        %v2408 = vpop.f32.mrb[0].mxu0
        %2409 = vmatprep.mubr.bf16.mxu0 0
        %2410 = vmatmul.mubr.bf16.gmra.mrb[0].mxu0 %v2329
        %v2411 = vpop.f32.mrb[0].mxu0
        %v2412 = vadd.f32 0.0, %v2411
        %v2413 = vpop.f32.mrb[0].mxu0
        %v2414 = vpop.f32.mrb[0].mxu0
        %v2415 = vadd.f32 0.0, %v2414
        %v2416 = vpop.f32.mrb[0].mxu0
        %2417 = vmatprep.mubr.bf16.mxu0 0
        %2418 = vmatmul.mubr.bf16.gmra.mrb[0].mxu0 %v2332
        %v2419 = vpop.f32.mrb[0].mxu0
        %v2420 = vadd.f32 0.0, %v2419
        %v2421 = vpop.f32.mrb[0].mxu0
        %v2422 = vpop.f32.mrb[0].mxu0
        %v2423 = vadd.f32 0.0, %v2422
        %v2424 = vpop.f32.mrb[0].mxu0
        %2425 = vmatprep.mubr.bf16.mxu0 0
        %2426 = vmatmul.mubr.bf16.gmra.mrb[0].mxu0 %v2335
        %v2427 = vpop.f32.mrb[0].mxu0
        %v2428 = vadd.f32 0.0, %v2427
        %v2429 = vpop.f32.mrb[0].mxu0
        %v2430 = vpop.f32.mrb[0].mxu0
        %v2431 = vadd.f32 0.0, %v2430
        %v2432 = vpop.f32.mrb[0].mxu0
        %2433 = vdwg.mxu0
        %v2434 = vadd.f32 %v2234, %v2372
        %v2435 = vadd.f32 %v2237, %v2375
        %v2436 = vadd.f32 %v2242, %v2380
        %v2437 = vadd.f32 %v2245, %v2383
        %v2438 = vadd.f32 %v2250, %v2388
        %v2439 = vadd.f32 %v2253, %v2391
        %v2440 = vadd.f32 %v2258, %v2396
        %v2441 = vadd.f32 %v2261, %v2399
        %v2442 = vadd.f32 %v2266, %v2404
        %v2443 = vadd.f32 %v2269, %v2407
        %v2444 = vadd.f32 %v2274, %v2412
        %v2445 = vadd.f32 %v2277, %v2415
        %v2446 = vadd.f32 %v2282, %v2420
        %v2447 = vadd.f32 %v2285, %v2423
        %v2448 = vadd.f32 %v2290, %v2428
        %v2449 = vadd.f32 %v2293, %v2431
        %s2450 = scalar_lea.vmem [#allocation2], 48
        %v2451 = vld [vmem:[%s2450] sm:$0xf]
        %v2452 = vld [vmem:[%s2450 + $0x4] sm:$0xf]
        %v2453 = vld [vmem:[%s2450 + $0x8] sm:$0xf]
        %v2454 = vld [vmem:[%s2450 + $0xc] sm:$0xf]
        %v2459 = vunpack.c.l.b16 %v2451
        %v2460 = vunpack.c.l.b16 %v2452
        %v2461 = vunpack.c.l.b16 %v2453
        %v2462 = vunpack.c.l.b16 %v2454
        %v2463 = vpack.c.b16 %v2460, %v2459
        %v2464 = vpack.c.b16 %v2462, %v2461
        %v2468 = vsel %vm453, %v1941, 0
        %v2471 = vsel %vm453, %v1950, 0
        %v2474 = vsel %vm453, %v1959, 0
        %v2477 = vsel %vm453, %v1968, 0
        %v2480 = vsel %vm453, %v1977, 0
        %v2483 = vsel %vm453, %v1986, 0
        %v2486 = vsel %vm453, %v1995, 0
        %v2489 = vsel %vm453, %v2004, 0
        %2491 = vmatprep.subr.bf16.mxu0 0
        %2492 = vmatpush1.bf16.msra.mxu0 %v2463
        %2493 = vmatprep.subr.bf16.mxu0 0
        %2494 = vmatpush1.bf16.msra.mxu0 %v2464
        %2495 = vmatprep.subr.bf16.mxu0 0
        %2496 = vmatpush1.bf16.msra.mxu0 0
        %2497 = vmatprep.subr.bf16.mxu0 0
        %2498 = vmatpush1.bf16.msra.mxu0 0
        %2499 = vmatprep.subr.bf16.mxu0 0
        %2500 = vmatpush1.bf16.msra.mxu0 0
        %2501 = vmatprep.subr.bf16.mxu0 0
        %2502 = vmatpush1.bf16.msra.mxu0 0
        %2503 = vmatprep.subr.bf16.mxu0 0
        %2504 = vmatpush1.bf16.msra.mxu0 0
        %2505 = vmatprep.subr.bf16.mxu0 0
        %2506 = vmatpush1.bf16.msra.mxu0 0
        %2507 = vmatprep.subr.bf16.mxu0 0
        %2508 = vmatpush1.bf16.msra.mxu0 0
        %2509 = vmatprep.subr.bf16.mxu0 0
        %2510 = vmatpush1.bf16.msra.mxu0 0
        %2511 = vmatprep.subr.bf16.mxu0 0
        %2512 = vmatpush1.bf16.msra.mxu0 0
        %2513 = vmatprep.subr.bf16.mxu0 0
        %2514 = vmatpush1.bf16.msra.mxu0 0
        %2515 = vmatprep.subr.bf16.mxu0 0
        %2516 = vmatpush1.bf16.msra.mxu0 0
        %2517 = vmatprep.subr.bf16.mxu0 0
        %2518 = vmatpush1.bf16.msra.mxu0 0
        %2519 = vmatprep.subr.bf16.mxu0 0
        %2520 = vmatpush1.bf16.msra.mxu0 0
        %2521 = vmatprep.subr.bf16.mxu0 0
        %2522 = vmatpush1.bf16.msra.mxu0 0
        %2523 = vmatprep.mubr.bf16.mxu0 0
        %2524 = vmatmul.mubr.bf16.gmra.mrb[0].mxu0 %v2468
        %v2525 = vpop.f32.mrb[0].mxu0
        %v2526 = vadd.f32 0.0, %v2525
        %v2527 = vpop.f32.mrb[0].mxu0
        %v2528 = vpop.f32.mrb[0].mxu0
        %v2529 = vadd.f32 0.0, %v2528
        %v2530 = vpop.f32.mrb[0].mxu0
        %2531 = vmatprep.mubr.bf16.mxu0 0
        %2532 = vmatmul.mubr.bf16.gmra.mrb[0].mxu0 %v2471
        %v2533 = vpop.f32.mrb[0].mxu0
        %v2534 = vadd.f32 0.0, %v2533
        %v2535 = vpop.f32.mrb[0].mxu0
        %v2536 = vpop.f32.mrb[0].mxu0
        %v2537 = vadd.f32 0.0, %v2536
        %v2538 = vpop.f32.mrb[0].mxu0
        %2539 = vmatprep.mubr.bf16.mxu0 0
        %2540 = vmatmul.mubr.bf16.gmra.mrb[0].mxu0 %v2474
        %v2541 = vpop.f32.mrb[0].mxu0
        %v2542 = vadd.f32 0.0, %v2541
        %v2543 = vpop.f32.mrb[0].mxu0
        %v2544 = vpop.f32.mrb[0].mxu0
        %v2545 = vadd.f32 0.0, %v2544
        %v2546 = vpop.f32.mrb[0].mxu0
        %2547 = vmatprep.mubr.bf16.mxu0 0
        %2548 = vmatmul.mubr.bf16.gmra.mrb[0].mxu0 %v2477
        %v2549 = vpop.f32.mrb[0].mxu0
        %v2550 = vadd.f32 0.0, %v2549
        %v2551 = vpop.f32.mrb[0].mxu0
        %v2552 = vpop.f32.mrb[0].mxu0
        %v2553 = vadd.f32 0.0, %v2552
        %v2554 = vpop.f32.mrb[0].mxu0
        %2555 = vmatprep.mubr.bf16.mxu0 0
        %2556 = vmatmul.mubr.bf16.gmra.mrb[0].mxu0 %v2480
        %v2557 = vpop.f32.mrb[0].mxu0
        %v2558 = vadd.f32 0.0, %v2557
        %v2559 = vpop.f32.mrb[0].mxu0
        %v2560 = vpop.f32.mrb[0].mxu0
        %v2561 = vadd.f32 0.0, %v2560
        %v2562 = vpop.f32.mrb[0].mxu0
        %2563 = vmatprep.mubr.bf16.mxu0 0
        %2564 = vmatmul.mubr.bf16.gmra.mrb[0].mxu0 %v2483
        %v2565 = vpop.f32.mrb[0].mxu0
        %v2566 = vadd.f32 0.0, %v2565
        %v2567 = vpop.f32.mrb[0].mxu0
        %v2568 = vpop.f32.mrb[0].mxu0
        %v2569 = vadd.f32 0.0, %v2568
        %v2570 = vpop.f32.mrb[0].mxu0
        %2571 = vmatprep.mubr.bf16.mxu0 0
        %2572 = vmatmul.mubr.bf16.gmra.mrb[0].mxu0 %v2486
        %v2573 = vpop.f32.mrb[0].mxu0
        %v2574 = vadd.f32 0.0, %v2573
        %v2575 = vpop.f32.mrb[0].mxu0
        %v2576 = vpop.f32.mrb[0].mxu0
        %v2577 = vadd.f32 0.0, %v2576
        %v2578 = vpop.f32.mrb[0].mxu0
        %2579 = vmatprep.mubr.bf16.mxu0 0
        %2580 = vmatmul.mubr.bf16.gmra.mrb[0].mxu0 %v2489
        %v2581 = vpop.f32.mrb[0].mxu0
        %v2582 = vadd.f32 0.0, %v2581
        %v2583 = vpop.f32.mrb[0].mxu0
        %v2584 = vpop.f32.mrb[0].mxu0
        %v2585 = vadd.f32 0.0, %v2584
        %v2586 = vpop.f32.mrb[0].mxu0
        %2587 = vdwg.mxu0
        %v2588 = vadd.f32 %v2434, %v2526
        %v2589 = vadd.f32 %v2435, %v2529
        %v2590 = vadd.f32 %v2436, %v2534
        %v2591 = vadd.f32 %v2437, %v2537
        %v2592 = vadd.f32 %v2438, %v2542
        %v2593 = vadd.f32 %v2439, %v2545
        %v2594 = vadd.f32 %v2440, %v2550
        %v2595 = vadd.f32 %v2441, %v2553
        %v2596 = vadd.f32 %v2442, %v2558
        %v2597 = vadd.f32 %v2443, %v2561
        %v2598 = vadd.f32 %v2444, %v2566
        %v2599 = vadd.f32 %v2445, %v2569
        %v2600 = vadd.f32 %v2446, %v2574
        %v2601 = vadd.f32 %v2447, %v2577
        %v2602 = vadd.f32 %v2448, %v2582
        %v2603 = vadd.f32 %v2449, %v2585
        %s2604 = scalar_lea.vmem [#allocation2], 64
        %v2605 = vld [vmem:[%s2604] sm:$0xf]
        %v2606 = vld [vmem:[%s2604 + $0x4] sm:$0xf]
        %v2607 = vld [vmem:[%s2604 + $0x8] sm:$0xf]
        %v2608 = vld [vmem:[%s2604 + $0xc] sm:$0xf]
        %v2613 = vunpack.c.l.b16 %v2605
        %v2614 = vunpack.c.l.b16 %v2606
        %v2615 = vunpack.c.l.b16 %v2607
        %v2616 = vunpack.c.l.b16 %v2608
        %v2617 = vpack.c.b16 %v2614, %v2613
        %v2618 = vpack.c.b16 %v2616, %v2615
        %v2622 = vsel %vm453, %v2007, 0
        %v2625 = vsel %vm453, %v2010, 0
        %v2628 = vsel %vm453, %v2013, 0
        %v2631 = vsel %vm453, %v2016, 0
        %v2634 = vsel %vm453, %v2019, 0
        %v2637 = vsel %vm453, %v2022, 0
        %v2640 = vsel %vm453, %v2025, 0
        %v2643 = vsel %vm453, %v2028, 0
        %2645 = vmatprep.subr.bf16.mxu0 0
        %2646 = vmatpush1.bf16.msra.mxu0 %v2617
        %2647 = vmatprep.subr.bf16.mxu0 0
        %2648 = vmatpush1.bf16.msra.mxu0 %v2618
        %2649 = vmatprep.subr.bf16.mxu0 0
        %2650 = vmatpush1.bf16.msra.mxu0 0
        %2651 = vmatprep.subr.bf16.mxu0 0
        %2652 = vmatpush1.bf16.msra.mxu0 0
        %2653 = vmatprep.subr.bf16.mxu0 0
        %2654 = vmatpush1.bf16.msra.mxu0 0
        %2655 = vmatprep.subr.bf16.mxu0 0
        %2656 = vmatpush1.bf16.msra.mxu0 0
        %2657 = vmatprep.subr.bf16.mxu0 0
        %2658 = vmatpush1.bf16.msra.mxu0 0
        %2659 = vmatprep.subr.bf16.mxu0 0
        %2660 = vmatpush1.bf16.msra.mxu0 0
        %2661 = vmatprep.subr.bf16.mxu0 0
        %2662 = vmatpush1.bf16.msra.mxu0 0
        %2663 = vmatprep.subr.bf16.mxu0 0
        %2664 = vmatpush1.bf16.msra.mxu0 0
        %2665 = vmatprep.subr.bf16.mxu0 0
        %2666 = vmatpush1.bf16.msra.mxu0 0
        %2667 = vmatprep.subr.bf16.mxu0 0
        %2668 = vmatpush1.bf16.msra.mxu0 0
        %2669 = vmatprep.subr.bf16.mxu0 0
        %2670 = vmatpush1.bf16.msra.mxu0 0
        %2671 = vmatprep.subr.bf16.mxu0 0
        %2672 = vmatpush1.bf16.msra.mxu0 0
        %2673 = vmatprep.subr.bf16.mxu0 0
        %2674 = vmatpush1.bf16.msra.mxu0 0
        %2675 = vmatprep.subr.bf16.mxu0 0
        %2676 = vmatpush1.bf16.msra.mxu0 0
        %2677 = vmatprep.mubr.bf16.mxu0 0
        %2678 = vmatmul.mubr.bf16.gmra.mrb[0].mxu0 %v2622
        %v2679 = vpop.f32.mrb[0].mxu0
        %v2680 = vadd.f32 0.0, %v2679
        %v2681 = vpop.f32.mrb[0].mxu0
        %v2682 = vpop.f32.mrb[0].mxu0
        %v2683 = vadd.f32 0.0, %v2682
        %v2684 = vpop.f32.mrb[0].mxu0
        %2685 = vmatprep.mubr.bf16.mxu0 0
        %2686 = vmatmul.mubr.bf16.gmra.mrb[0].mxu0 %v2625
        %v2687 = vpop.f32.mrb[0].mxu0
        %v2688 = vadd.f32 0.0, %v2687
        %v2689 = vpop.f32.mrb[0].mxu0
        %v2690 = vpop.f32.mrb[0].mxu0
        %v2691 = vadd.f32 0.0, %v2690
        %v2692 = vpop.f32.mrb[0].mxu0
        %2693 = vmatprep.mubr.bf16.mxu0 0
        %2694 = vmatmul.mubr.bf16.gmra.mrb[0].mxu0 %v2628
        %v2695 = vpop.f32.mrb[0].mxu0
        %v2696 = vadd.f32 0.0, %v2695
        %v2697 = vpop.f32.mrb[0].mxu0
        %v2698 = vpop.f32.mrb[0].mxu0
        %v2699 = vadd.f32 0.0, %v2698
        %v2700 = vpop.f32.mrb[0].mxu0
        %2701 = vmatprep.mubr.bf16.mxu0 0
        %2702 = vmatmul.mubr.bf16.gmra.mrb[0].mxu0 %v2631
        %v2703 = vpop.f32.mrb[0].mxu0
        %v2704 = vadd.f32 0.0, %v2703
        %v2705 = vpop.f32.mrb[0].mxu0
        %v2706 = vpop.f32.mrb[0].mxu0
        %v2707 = vadd.f32 0.0, %v2706
        %v2708 = vpop.f32.mrb[0].mxu0
        %2709 = vmatprep.mubr.bf16.mxu0 0
        %2710 = vmatmul.mubr.bf16.gmra.mrb[0].mxu0 %v2634
        %v2711 = vpop.f32.mrb[0].mxu0
        %v2712 = vadd.f32 0.0, %v2711
        %v2713 = vpop.f32.mrb[0].mxu0
        %v2714 = vpop.f32.mrb[0].mxu0
        %v2715 = vadd.f32 0.0, %v2714
        %v2716 = vpop.f32.mrb[0].mxu0
        %2717 = vmatprep.mubr.bf16.mxu0 0
        %2718 = vmatmul.mubr.bf16.gmra.mrb[0].mxu0 %v2637
        %v2719 = vpop.f32.mrb[0].mxu0
        %v2720 = vadd.f32 0.0, %v2719
        %v2721 = vpop.f32.mrb[0].mxu0
        %v2722 = vpop.f32.mrb[0].mxu0
        %v2723 = vadd.f32 0.0, %v2722
        %v2724 = vpop.f32.mrb[0].mxu0
        %2725 = vmatprep.mubr.bf16.mxu0 0
        %2726 = vmatmul.mubr.bf16.gmra.mrb[0].mxu0 %v2640
        %v2727 = vpop.f32.mrb[0].mxu0
        %v2728 = vadd.f32 0.0, %v2727
        %v2729 = vpop.f32.mrb[0].mxu0
        %v2730 = vpop.f32.mrb[0].mxu0
        %v2731 = vadd.f32 0.0, %v2730
        %v2732 = vpop.f32.mrb[0].mxu0
        %2733 = vmatprep.mubr.bf16.mxu0 0
        %2734 = vmatmul.mubr.bf16.gmra.mrb[0].mxu0 %v2643
        %v2735 = vpop.f32.mrb[0].mxu0
        %v2736 = vadd.f32 0.0, %v2735
        %v2737 = vpop.f32.mrb[0].mxu0
        %v2738 = vpop.f32.mrb[0].mxu0
        %v2739 = vadd.f32 0.0, %v2738
        %v2740 = vpop.f32.mrb[0].mxu0
        %2741 = vdwg.mxu0
        %v2742 = vadd.f32 %v2588, %v2680
        %v2743 = vadd.f32 %v2589, %v2683
        %v2744 = vadd.f32 %v2590, %v2688
        %v2745 = vadd.f32 %v2591, %v2691
        %v2746 = vadd.f32 %v2592, %v2696
        %v2747 = vadd.f32 %v2593, %v2699
        %v2748 = vadd.f32 %v2594, %v2704
        %v2749 = vadd.f32 %v2595, %v2707
        %v2750 = vadd.f32 %v2596, %v2712
        %v2751 = vadd.f32 %v2597, %v2715
        %v2752 = vadd.f32 %v2598, %v2720
        %v2753 = vadd.f32 %v2599, %v2723
        %v2754 = vadd.f32 %v2600, %v2728
        %v2755 = vadd.f32 %v2601, %v2731
        %v2756 = vadd.f32 %v2602, %v2736
        %v2757 = vadd.f32 %v2603, %v2739
        %2774 = vrot.lane.b32.xlu0 %v1557, 64
        %v2775 = vpop.permute.xlu0 %2774
        %2776 = vrot.lane.b32.xlu0 %v1558, 64
        %v2777 = vpop.permute.xlu0 %2776
        %2778 = vrot.lane.b32.xlu0 %v1559, 64
        %v2779 = vpop.permute.xlu0 %2778
        %2780 = vrot.lane.b32.xlu0 %v1560, 64
        %v2781 = vpop.permute.xlu0 %2780
        %2782 = vrot.lane.b32.xlu0 %v1561, 64
        %v2783 = vpop.permute.xlu0 %2782
        %2784 = vrot.lane.b32.xlu0 %v1562, 64
        %v2785 = vpop.permute.xlu0 %2784
        %2786 = vrot.lane.b32.xlu0 %v1563, 64
        %v2787 = vpop.permute.xlu0 %2786
        %2788 = vrot.lane.b32.xlu0 %v1564, 64
        %v2789 = vpop.permute.xlu0 %2788
        %2790 = vrot.lane.b32.xlu0 %v1565, 64
        %v2791 = vpop.permute.xlu0 %2790
        %2792 = vrot.lane.b32.xlu0 %v1566, 64
        %v2793 = vpop.permute.xlu0 %2792
        %2794 = vrot.lane.b32.xlu0 %v1567, 64
        %v2795 = vpop.permute.xlu0 %2794
        %2796 = vrot.lane.b32.xlu0 %v1568, 64
        %v2797 = vpop.permute.xlu0 %2796
        %2798 = vrot.lane.b32.xlu0 %v1569, 64
        %v2799 = vpop.permute.xlu0 %2798
        %2800 = vrot.lane.b32.xlu0 %v1570, 64
        %v2801 = vpop.permute.xlu0 %2800
        %2802 = vrot.lane.b32.xlu0 %v1571, 64
        %v2803 = vpop.permute.xlu0 %2802
        %2804 = vrot.lane.b32.xlu0 %v1572, 64
        %v2805 = vpop.permute.xlu0 %2804
        %v2822 = vadd.f32 %v2742, %v2775
        %v2823 = vadd.f32 %v2743, %v2777
        %v2824 = vadd.f32 %v2744, %v2779
        %v2825 = vadd.f32 %v2745, %v2781
        %v2826 = vadd.f32 %v2746, %v2783
        %v2827 = vadd.f32 %v2747, %v2785
        %v2828 = vadd.f32 %v2748, %v2787
        %v2829 = vadd.f32 %v2749, %v2789
        %v2830 = vadd.f32 %v2750, %v2791
        %v2831 = vadd.f32 %v2751, %v2793
        %v2832 = vadd.f32 %v2752, %v2795
        %v2833 = vadd.f32 %v2753, %v2797
        %v2834 = vadd.f32 %v2754, %v2799
        %v2835 = vadd.f32 %v2755, %v2801
        %v2836 = vadd.f32 %v2756, %v2803
        %v2837 = vadd.f32 %v2757, %v2805
        %v2838 = vtanh.pop %v2822
        %v2839 = vtanh.pop %v2823
        %v2840 = vtanh.pop %v2824
        %v2841 = vtanh.pop %v2825
        %v2842 = vtanh.pop %v2826
        %v2843 = vtanh.pop %v2827
        %v2844 = vtanh.pop %v2828
        %v2845 = vtanh.pop %v2829
        %v2846 = vtanh.pop %v2830
        %v2847 = vtanh.pop %v2831
        %v2848 = vtanh.pop %v2832
        %v2849 = vtanh.pop %v2833
        %v2850 = vtanh.pop %v2834
        %v2851 = vtanh.pop %v2835
        %v2852 = vtanh.pop %v2836
        %v2853 = vtanh.pop %v2837
        %v2854 = vsub.f32 1.0, %v1638
        %v2855 = vsub.f32 1.0, %v1640
        %v2856 = vsub.f32 1.0, %v1642
        %v2857 = vsub.f32 1.0, %v1644
        %v2858 = vsub.f32 1.0, %v1646
        %v2859 = vsub.f32 1.0, %v1648
        %v2860 = vsub.f32 1.0, %v1650
        %v2861 = vsub.f32 1.0, %v1652
        %v2862 = vsub.f32 1.0, %v1654
        %v2863 = vsub.f32 1.0, %v1656
        %v2864 = vsub.f32 1.0, %v1658
        %v2865 = vsub.f32 1.0, %v1660
        %v2866 = vsub.f32 1.0, %v1662
        %v2867 = vsub.f32 1.0, %v1664
        %v2868 = vsub.f32 1.0, %v1666
        %v2869 = vsub.f32 1.0, %v1668
        %v2870 = vmul.f32 %v2854, %v357
        %v2871 = vmul.f32 %v2855, %v358
        %v2872 = vmul.f32 %v2856, %v359
        %v2873 = vmul.f32 %v2857, %v360
        %v2874 = vmul.f32 %v2858, %v361
        %v2875 = vmul.f32 %v2859, %v362
        %v2876 = vmul.f32 %v2860, %v363
        %v2877 = vmul.f32 %v2861, %v364
        %v2878 = vmul.f32 %v2862, %v365
        %v2879 = vmul.f32 %v2863, %v366
        %v2880 = vmul.f32 %v2864, %v367
        %v2881 = vmul.f32 %v2865, %v368
        %v2882 = vmul.f32 %v2866, %v369
        %v2883 = vmul.f32 %v2867, %v370
        %v2884 = vmul.f32 %v2868, %v371
        %v2885 = vmul.f32 %v2869, %v372
        %v2886 = vmul.f32 %v1638, %v2838
        %v2887 = vmul.f32 %v1640, %v2839
        %v2888 = vmul.f32 %v1642, %v2840
        %v2889 = vmul.f32 %v1644, %v2841
        %v2890 = vmul.f32 %v1646, %v2842
        %v2891 = vmul.f32 %v1648, %v2843
        %v2892 = vmul.f32 %v1650, %v2844
        %v2893 = vmul.f32 %v1652, %v2845
        %v2894 = vmul.f32 %v1654, %v2846
        %v2895 = vmul.f32 %v1656, %v2847
        %v2896 = vmul.f32 %v1658, %v2848
        %v2897 = vmul.f32 %v1660, %v2849
        %v2898 = vmul.f32 %v1662, %v2850
        %v2899 = vmul.f32 %v1664, %v2851
        %v2900 = vmul.f32 %v1666, %v2852
        %v2901 = vmul.f32 %v1668, %v2853
        %v2902 = vadd.f32 %v2870, %v2886
        %v2903 = vadd.f32 %v2871, %v2887
        %v2904 = vadd.f32 %v2872, %v2888
        %v2905 = vadd.f32 %v2873, %v2889
        %v2906 = vadd.f32 %v2874, %v2890
        %v2907 = vadd.f32 %v2875, %v2891
        %v2908 = vadd.f32 %v2876, %v2892
        %v2909 = vadd.f32 %v2877, %v2893
        %v2910 = vadd.f32 %v2878, %v2894
        %v2911 = vadd.f32 %v2879, %v2895
        %v2912 = vadd.f32 %v2880, %v2896
        %v2913 = vadd.f32 %v2881, %v2897
        %v2914 = vadd.f32 %v2882, %v2898
        %v2915 = vadd.f32 %v2883, %v2899
        %v2916 = vadd.f32 %v2884, %v2900
        %v2917 = vadd.f32 %v2885, %v2901
        %v2918 = vpack.c.bf16 %v2903, %v2902
        %v2919 = vpack.c.bf16 %v2905, %v2904
        %v2920 = vpack.c.bf16 %v2907, %v2906
        %v2921 = vpack.c.bf16 %v2909, %v2908
        %v2922 = vpack.c.bf16 %v2911, %v2910
        %v2923 = vpack.c.bf16 %v2913, %v2912
        %v2924 = vpack.c.bf16 %v2915, %v2914
        %v2925 = vpack.c.bf16 %v2917, %v2916
        %v2927 = vsel %vm453, %v2918, %v438
        %v2929 = vsel %vm453, %v2919, %v440
        %v2931 = vsel %vm453, %v2920, %v442
        %v2933 = vsel %vm453, %v2921, %v444
        %v2935 = vsel %vm453, %v2922, %v446
        %v2937 = vsel %vm453, %v2923, %v448
        %v2939 = vsel %vm453, %v2924, %v450
        %v2941 = vsel %vm453, %v2925, %v452
        %v2942 = vld [vmem:[%s5] sm:$0xf]
        %v2943 = vld [vmem:[%s5 + $0x4] sm:$0xf]
        %v2944 = vld [vmem:[%s5 + $0x8] sm:$0xf]
        %v2945 = vld [vmem:[%s5 + $0xc] sm:$0xf]
        %v2946 = vld [vmem:[%s5 + $0x10] sm:$0xf]
        %v2947 = vld [vmem:[%s5 + $0x14] sm:$0xf]
        %v2948 = vld [vmem:[%s5 + $0x18] sm:$0xf]
        %v2949 = vld [vmem:[%s5 + $0x1c] sm:$0xf]
        %s2950 = scalar_lea.vmem %s5, 32
        %v2951 = vld [vmem:[%s2950] sm:$0xf]
        %v2952 = vld [vmem:[%s2950 + $0x4] sm:$0xf]
        %v2953 = vld [vmem:[%s2950 + $0x8] sm:$0xf]
        %v2954 = vld [vmem:[%s2950 + $0xc] sm:$0xf]
        %v2955 = vld [vmem:[%s2950 + $0x10] sm:$0xf]
        %v2956 = vld [vmem:[%s2950 + $0x14] sm:$0xf]
        %v2957 = vld [vmem:[%s2950 + $0x18] sm:$0xf]
        %v2958 = vld [vmem:[%s2950 + $0x1c] sm:$0xf]
        %v2967 = vunpack.c.l.b16 %v2951
        %v2968 = vunpack.c.l.b16 %v2952
        %v2969 = vunpack.c.l.b16 %v2953
        %v2970 = vunpack.c.l.b16 %v2954
        %v2971 = vunpack.c.l.b16 %v2955
        %v2972 = vunpack.c.l.b16 %v2956
        %v2973 = vunpack.c.l.b16 %v2957
        %v2974 = vunpack.c.l.b16 %v2958
        %v2975 = vpack.c.b16 %v2968, %v2967
        %v2976 = vpack.c.b16 %v2970, %v2969
        %v2977 = vpack.c.b16 %v2972, %v2971
        %v2978 = vpack.c.b16 %v2974, %v2973
        %v2983 = vsel %vm781, 0, 0
        %v2985 = vsel %vm781, %v2927, 0
        %v2987 = vsel %vm781, %v2929, 0
        %v2989 = vsel %vm781, %v2931, 0
        %v2991 = vsel %vm781, %v2933, 0
        %v2993 = vsel %vm781, %v2935, 0
        %v2995 = vsel %vm781, %v2937, 0
        %v2997 = vsel %vm781, %v2939, 0
        %2999 = vmatprep.subr.bf16.mxu0 0
        %3000 = vmatpush1.bf16.msra.mxu0 %v2975
        %3001 = vmatprep.subr.bf16.mxu0 0
        %3002 = vmatpush1.bf16.msra.mxu0 %v2976
        %3003 = vmatprep.subr.bf16.mxu0 0
        %3004 = vmatpush1.bf16.msra.mxu0 %v2977
        %3005 = vmatprep.subr.bf16.mxu0 0
        %3006 = vmatpush1.bf16.msra.mxu0 %v2978
        %3007 = vmatprep.subr.bf16.mxu0 0
        %3008 = vmatpush1.bf16.msra.mxu0 0
        %3009 = vmatprep.subr.bf16.mxu0 0
        %3010 = vmatpush1.bf16.msra.mxu0 0
        %3011 = vmatprep.subr.bf16.mxu0 0
        %3012 = vmatpush1.bf16.msra.mxu0 0
        %3013 = vmatprep.subr.bf16.mxu0 0
        %3014 = vmatpush1.bf16.msra.mxu0 0
        %3015 = vmatprep.subr.bf16.mxu0 0
        %3016 = vmatpush1.bf16.msra.mxu0 0
        %3017 = vmatprep.subr.bf16.mxu0 0
        %3018 = vmatpush1.bf16.msra.mxu0 0
        %3019 = vmatprep.subr.bf16.mxu0 0
        %3020 = vmatpush1.bf16.msra.mxu0 0
        %3021 = vmatprep.subr.bf16.mxu0 0
        %3022 = vmatpush1.bf16.msra.mxu0 0
        %3023 = vmatprep.subr.bf16.mxu0 0
        %3024 = vmatpush1.bf16.msra.mxu0 0
        %3025 = vmatprep.subr.bf16.mxu0 0
        %3026 = vmatpush1.bf16.msra.mxu0 0
        %3027 = vmatprep.subr.bf16.mxu0 0
        %3028 = vmatpush1.bf16.msra.mxu0 0
        %3029 = vmatprep.subr.bf16.mxu0 0
        %3030 = vmatpush1.bf16.msra.mxu0 0
        %3031 = vmatprep.mubr.bf16.mxu0 0
        %3032 = vmatmul.mubr.bf16.gmra.mrb[0].mxu0 %v2983
        %v3033 = vpop.f32.mrb[0].mxu0
        %v3034 = vadd.f32 0.0, %v3033
        %v3035 = vpop.f32.mrb[0].mxu0
        %v3036 = vpop.f32.mrb[0].mxu0
        %v3037 = vadd.f32 0.0, %v3036
        %v3038 = vpop.f32.mrb[0].mxu0
        %3039 = vmatprep.mubr.bf16.mxu0 0
        %3040 = vmatmul.mubr.bf16.gmra.mrb[0].mxu0 %v2985
        %v3041 = vpop.f32.mrb[0].mxu0
        %v3042 = vadd.f32 0.0, %v3041
        %v3043 = vpop.f32.mrb[0].mxu0
        %v3044 = vpop.f32.mrb[0].mxu0
        %v3045 = vadd.f32 0.0, %v3044
        %v3046 = vpop.f32.mrb[0].mxu0
        %3047 = vmatprep.mubr.bf16.mxu0 0
        %3048 = vmatmul.mubr.bf16.gmra.mrb[0].mxu0 %v2987
        %v3049 = vpop.f32.mrb[0].mxu0
        %v3050 = vadd.f32 0.0, %v3049
        %v3051 = vpop.f32.mrb[0].mxu0
        %v3052 = vpop.f32.mrb[0].mxu0
        %v3053 = vadd.f32 0.0, %v3052
        %v3054 = vpop.f32.mrb[0].mxu0
        %3055 = vmatprep.mubr.bf16.mxu0 0
        %3056 = vmatmul.mubr.bf16.gmra.mrb[0].mxu0 %v2989
        %v3057 = vpop.f32.mrb[0].mxu0
        %v3058 = vadd.f32 0.0, %v3057
        %v3059 = vpop.f32.mrb[0].mxu0
        %v3060 = vpop.f32.mrb[0].mxu0
        %v3061 = vadd.f32 0.0, %v3060
        %v3062 = vpop.f32.mrb[0].mxu0
        %3063 = vmatprep.mubr.bf16.mxu0 0
        %3064 = vmatmul.mubr.bf16.gmra.mrb[0].mxu0 %v2991
        %v3065 = vpop.f32.mrb[0].mxu0
        %v3066 = vadd.f32 0.0, %v3065
        %v3067 = vpop.f32.mrb[0].mxu0
        %v3068 = vpop.f32.mrb[0].mxu0
        %v3069 = vadd.f32 0.0, %v3068
        %v3070 = vpop.f32.mrb[0].mxu0
        %3071 = vmatprep.mubr.bf16.mxu0 0
        %3072 = vmatmul.mubr.bf16.gmra.mrb[0].mxu0 %v2993
        %v3073 = vpop.f32.mrb[0].mxu0
        %v3074 = vadd.f32 0.0, %v3073
        %v3075 = vpop.f32.mrb[0].mxu0
        %v3076 = vpop.f32.mrb[0].mxu0
        %v3077 = vadd.f32 0.0, %v3076
        %v3078 = vpop.f32.mrb[0].mxu0
        %3079 = vmatprep.mubr.bf16.mxu0 0
        %3080 = vmatmul.mubr.bf16.gmra.mrb[0].mxu0 %v2995
        %v3081 = vpop.f32.mrb[0].mxu0
        %v3082 = vadd.f32 0.0, %v3081
        %v3083 = vpop.f32.mrb[0].mxu0
        %v3084 = vpop.f32.mrb[0].mxu0
        %v3085 = vadd.f32 0.0, %v3084
        %v3086 = vpop.f32.mrb[0].mxu0
        %3087 = vmatprep.mubr.bf16.mxu0 0
        %3088 = vmatmul.mubr.bf16.gmra.mrb[0].mxu0 %v2997
        %v3089 = vpop.f32.mrb[0].mxu0
        %v3090 = vadd.f32 0.0, %v3089
        %v3091 = vpop.f32.mrb[0].mxu0
        %v3092 = vpop.f32.mrb[0].mxu0
        %v3093 = vadd.f32 0.0, %v3092
        %v3094 = vpop.f32.mrb[0].mxu0
        %3095 = vdwg.mxu0
        %v3104 = vunpack.c.l.b16 %v2942
        %v3105 = vunpack.c.l.b16 %v2943
        %v3106 = vunpack.c.l.b16 %v2944
        %v3107 = vunpack.c.l.b16 %v2945
        %v3108 = vunpack.c.l.b16 %v2946
        %v3109 = vunpack.c.l.b16 %v2947
        %v3110 = vunpack.c.l.b16 %v2948
        %v3111 = vunpack.c.l.b16 %v2949
        %v3112 = vpack.c.b16 %v3105, %v3104
        %v3113 = vpack.c.b16 %v3107, %v3106
        %v3114 = vpack.c.b16 %v3109, %v3108
        %v3115 = vpack.c.b16 %v3111, %v3110
        %3120 = vmatprep.subr.bf16.mxu0 0
        %3121 = vmatpush1.bf16.msra.mxu0 %v3112
        %3122 = vmatprep.subr.bf16.mxu0 0
        %3123 = vmatpush1.bf16.msra.mxu0 %v3113
        %3124 = vmatprep.subr.bf16.mxu0 0
        %3125 = vmatpush1.bf16.msra.mxu0 %v3114
        %3126 = vmatprep.subr.bf16.mxu0 0
        %3127 = vmatpush1.bf16.msra.mxu0 %v3115
        %3128 = vmatprep.subr.bf16.mxu0 0
        %3129 = vmatpush1.bf16.msra.mxu0 0
        %3130 = vmatprep.subr.bf16.mxu0 0
        %3131 = vmatpush1.bf16.msra.mxu0 0
        %3132 = vmatprep.subr.bf16.mxu0 0
        %3133 = vmatpush1.bf16.msra.mxu0 0
        %3134 = vmatprep.subr.bf16.mxu0 0
        %3135 = vmatpush1.bf16.msra.mxu0 0
        %3136 = vmatprep.subr.bf16.mxu0 0
        %3137 = vmatpush1.bf16.msra.mxu0 0
        %3138 = vmatprep.subr.bf16.mxu0 0
        %3139 = vmatpush1.bf16.msra.mxu0 0
        %3140 = vmatprep.subr.bf16.mxu0 0
        %3141 = vmatpush1.bf16.msra.mxu0 0
        %3142 = vmatprep.subr.bf16.mxu0 0
        %3143 = vmatpush1.bf16.msra.mxu0 0
        %3144 = vmatprep.subr.bf16.mxu0 0
        %3145 = vmatpush1.bf16.msra.mxu0 0
        %3146 = vmatprep.subr.bf16.mxu0 0
        %3147 = vmatpush1.bf16.msra.mxu0 0
        %3148 = vmatprep.subr.bf16.mxu0 0
        %3149 = vmatpush1.bf16.msra.mxu0 0
        %3150 = vmatprep.subr.bf16.mxu0 0
        %3151 = vmatpush1.bf16.msra.mxu0 0
        %3152 = vmatprep.mubr.bf16.mxu0 0
        %3153 = vmatmul.mubr.bf16.gmra.mrb[0].mxu0 %v2983
        %v3154 = vpop.f32.mrb[0].mxu0
        %v3155 = vadd.f32 %v3034, %v3154
        %v3156 = vpop.f32.mrb[0].mxu0
        %v3157 = vpop.f32.mrb[0].mxu0
        %v3158 = vadd.f32 %v3037, %v3157
        %v3159 = vpop.f32.mrb[0].mxu0
        %3160 = vmatprep.mubr.bf16.mxu0 0
        %3161 = vmatmul.mubr.bf16.gmra.mrb[0].mxu0 %v2983
        %v3162 = vpop.f32.mrb[0].mxu0
        %v3163 = vadd.f32 %v3042, %v3162
        %v3164 = vpop.f32.mrb[0].mxu0
        %v3165 = vpop.f32.mrb[0].mxu0
        %v3166 = vadd.f32 %v3045, %v3165
        %v3167 = vpop.f32.mrb[0].mxu0
        %3168 = vmatprep.mubr.bf16.mxu0 0
        %3169 = vmatmul.mubr.bf16.gmra.mrb[0].mxu0 %v2985
        %v3170 = vpop.f32.mrb[0].mxu0
        %v3171 = vadd.f32 %v3050, %v3170
        %v3172 = vpop.f32.mrb[0].mxu0
        %v3173 = vpop.f32.mrb[0].mxu0
        %v3174 = vadd.f32 %v3053, %v3173
        %v3175 = vpop.f32.mrb[0].mxu0
        %3176 = vmatprep.mubr.bf16.mxu0 0
        %3177 = vmatmul.mubr.bf16.gmra.mrb[0].mxu0 %v2987
        %v3178 = vpop.f32.mrb[0].mxu0
        %v3179 = vadd.f32 %v3058, %v3178
        %v3180 = vpop.f32.mrb[0].mxu0
        %v3181 = vpop.f32.mrb[0].mxu0
        %v3182 = vadd.f32 %v3061, %v3181
        %v3183 = vpop.f32.mrb[0].mxu0
        %3184 = vmatprep.mubr.bf16.mxu0 0
        %3185 = vmatmul.mubr.bf16.gmra.mrb[0].mxu0 %v2989
        %v3186 = vpop.f32.mrb[0].mxu0
        %v3187 = vadd.f32 %v3066, %v3186
        %v3188 = vpop.f32.mrb[0].mxu0
        %v3189 = vpop.f32.mrb[0].mxu0
        %v3190 = vadd.f32 %v3069, %v3189
        %v3191 = vpop.f32.mrb[0].mxu0
        %3192 = vmatprep.mubr.bf16.mxu0 0
        %3193 = vmatmul.mubr.bf16.gmra.mrb[0].mxu0 %v2991
        %v3194 = vpop.f32.mrb[0].mxu0
        %v3195 = vadd.f32 %v3074, %v3194
        %v3196 = vpop.f32.mrb[0].mxu0
        %v3197 = vpop.f32.mrb[0].mxu0
        %v3198 = vadd.f32 %v3077, %v3197
        %v3199 = vpop.f32.mrb[0].mxu0
        %3200 = vmatprep.mubr.bf16.mxu0 0
        %3201 = vmatmul.mubr.bf16.gmra.mrb[0].mxu0 %v2993
        %v3202 = vpop.f32.mrb[0].mxu0
        %v3203 = vadd.f32 %v3082, %v3202
        %v3204 = vpop.f32.mrb[0].mxu0
        %v3205 = vpop.f32.mrb[0].mxu0
        %v3206 = vadd.f32 %v3085, %v3205
        %v3207 = vpop.f32.mrb[0].mxu0
        %3208 = vmatprep.mubr.bf16.mxu0 0
        %3209 = vmatmul.mubr.bf16.gmra.mrb[0].mxu0 %v2995
        %v3210 = vpop.f32.mrb[0].mxu0
        %v3211 = vadd.f32 %v3090, %v3210
        %v3212 = vpop.f32.mrb[0].mxu0
        %v3213 = vpop.f32.mrb[0].mxu0
        %v3214 = vadd.f32 %v3093, %v3213
        %v3215 = vpop.f32.mrb[0].mxu0
        %3216 = vdwg.mxu0
        %s3217 = scalar_lea.vmem %s5, 64
        %v3218 = vld [vmem:[%s3217] sm:$0xf]
        %v3219 = vld [vmem:[%s3217 + $0x4] sm:$0xf]
        %v3220 = vld [vmem:[%s3217 + $0x8] sm:$0xf]
        %v3221 = vld [vmem:[%s3217 + $0xc] sm:$0xf]
        %v3222 = vld [vmem:[%s3217 + $0x10] sm:$0xf]
        %v3223 = vld [vmem:[%s3217 + $0x14] sm:$0xf]
        %v3224 = vld [vmem:[%s3217 + $0x18] sm:$0xf]
        %v3225 = vld [vmem:[%s3217 + $0x1c] sm:$0xf]
        %v3234 = vunpack.c.l.b16 %v3218
        %v3235 = vunpack.c.l.b16 %v3219
        %v3236 = vunpack.c.l.b16 %v3220
        %v3237 = vunpack.c.l.b16 %v3221
        %v3238 = vunpack.c.l.b16 %v3222
        %v3239 = vunpack.c.l.b16 %v3223
        %v3240 = vunpack.c.l.b16 %v3224
        %v3241 = vunpack.c.l.b16 %v3225
        %v3242 = vpack.c.b16 %v3235, %v3234
        %v3243 = vpack.c.b16 %v3237, %v3236
        %v3244 = vpack.c.b16 %v3239, %v3238
        %v3245 = vpack.c.b16 %v3241, %v3240
        %v3250 = vsel %vm781, %v2941, 0
        %3252 = vmatprep.subr.bf16.mxu0 0
        %3253 = vmatpush1.bf16.msra.mxu0 %v3242
        %3254 = vmatprep.subr.bf16.mxu0 0
        %3255 = vmatpush1.bf16.msra.mxu0 %v3243
        %3256 = vmatprep.subr.bf16.mxu0 0
        %3257 = vmatpush1.bf16.msra.mxu0 %v3244
        %3258 = vmatprep.subr.bf16.mxu0 0
        %3259 = vmatpush1.bf16.msra.mxu0 %v3245
        %3260 = vmatprep.subr.bf16.mxu0 0
        %3261 = vmatpush1.bf16.msra.mxu0 0
        %3262 = vmatprep.subr.bf16.mxu0 0
        %3263 = vmatpush1.bf16.msra.mxu0 0
        %3264 = vmatprep.subr.bf16.mxu0 0
        %3265 = vmatpush1.bf16.msra.mxu0 0
        %3266 = vmatprep.subr.bf16.mxu0 0
        %3267 = vmatpush1.bf16.msra.mxu0 0
        %3268 = vmatprep.subr.bf16.mxu0 0
        %3269 = vmatpush1.bf16.msra.mxu0 0
        %3270 = vmatprep.subr.bf16.mxu0 0
        %3271 = vmatpush1.bf16.msra.mxu0 0
        %3272 = vmatprep.subr.bf16.mxu0 0
        %3273 = vmatpush1.bf16.msra.mxu0 0
        %3274 = vmatprep.subr.bf16.mxu0 0
        %3275 = vmatpush1.bf16.msra.mxu0 0
        %3276 = vmatprep.subr.bf16.mxu0 0
        %3277 = vmatpush1.bf16.msra.mxu0 0
        %3278 = vmatprep.subr.bf16.mxu0 0
        %3279 = vmatpush1.bf16.msra.mxu0 0
        %3280 = vmatprep.subr.bf16.mxu0 0
        %3281 = vmatpush1.bf16.msra.mxu0 0
        %3282 = vmatprep.subr.bf16.mxu0 0
        %3283 = vmatpush1.bf16.msra.mxu0 0
        %3284 = vmatprep.mubr.bf16.mxu0 0
        %3285 = vmatmul.mubr.bf16.gmra.mrb[0].mxu0 %v2985
        %v3286 = vpop.f32.mrb[0].mxu0
        %v3287 = vadd.f32 0.0, %v3286
        %v3288 = vpop.f32.mrb[0].mxu0
        %v3289 = vpop.f32.mrb[0].mxu0
        %v3290 = vadd.f32 0.0, %v3289
        %v3291 = vpop.f32.mrb[0].mxu0
        %3292 = vmatprep.mubr.bf16.mxu0 0
        %3293 = vmatmul.mubr.bf16.gmra.mrb[0].mxu0 %v2987
        %v3294 = vpop.f32.mrb[0].mxu0
        %v3295 = vadd.f32 0.0, %v3294
        %v3296 = vpop.f32.mrb[0].mxu0
        %v3297 = vpop.f32.mrb[0].mxu0
        %v3298 = vadd.f32 0.0, %v3297
        %v3299 = vpop.f32.mrb[0].mxu0
        %3300 = vmatprep.mubr.bf16.mxu0 0
        %3301 = vmatmul.mubr.bf16.gmra.mrb[0].mxu0 %v2989
        %v3302 = vpop.f32.mrb[0].mxu0
        %v3303 = vadd.f32 0.0, %v3302
        %v3304 = vpop.f32.mrb[0].mxu0
        %v3305 = vpop.f32.mrb[0].mxu0
        %v3306 = vadd.f32 0.0, %v3305
        %v3307 = vpop.f32.mrb[0].mxu0
        %3308 = vmatprep.mubr.bf16.mxu0 0
        %3309 = vmatmul.mubr.bf16.gmra.mrb[0].mxu0 %v2991
        %v3310 = vpop.f32.mrb[0].mxu0
        %v3311 = vadd.f32 0.0, %v3310
        %v3312 = vpop.f32.mrb[0].mxu0
        %v3313 = vpop.f32.mrb[0].mxu0
        %v3314 = vadd.f32 0.0, %v3313
        %v3315 = vpop.f32.mrb[0].mxu0
        %3316 = vmatprep.mubr.bf16.mxu0 0
        %3317 = vmatmul.mubr.bf16.gmra.mrb[0].mxu0 %v2993
        %v3318 = vpop.f32.mrb[0].mxu0
        %v3319 = vadd.f32 0.0, %v3318
        %v3320 = vpop.f32.mrb[0].mxu0
        %v3321 = vpop.f32.mrb[0].mxu0
        %v3322 = vadd.f32 0.0, %v3321
        %v3323 = vpop.f32.mrb[0].mxu0
        %3324 = vmatprep.mubr.bf16.mxu0 0
        %3325 = vmatmul.mubr.bf16.gmra.mrb[0].mxu0 %v2995
        %v3326 = vpop.f32.mrb[0].mxu0
        %v3327 = vadd.f32 0.0, %v3326
        %v3328 = vpop.f32.mrb[0].mxu0
        %v3329 = vpop.f32.mrb[0].mxu0
        %v3330 = vadd.f32 0.0, %v3329
        %v3331 = vpop.f32.mrb[0].mxu0
        %3332 = vmatprep.mubr.bf16.mxu0 0
        %3333 = vmatmul.mubr.bf16.gmra.mrb[0].mxu0 %v2997
        %v3334 = vpop.f32.mrb[0].mxu0
        %v3335 = vadd.f32 0.0, %v3334
        %v3336 = vpop.f32.mrb[0].mxu0
        %v3337 = vpop.f32.mrb[0].mxu0
        %v3338 = vadd.f32 0.0, %v3337
        %v3339 = vpop.f32.mrb[0].mxu0
        %3340 = vmatprep.mubr.bf16.mxu0 0
        %3341 = vmatmul.mubr.bf16.gmra.mrb[0].mxu0 %v3250
        %v3342 = vpop.f32.mrb[0].mxu0
        %v3343 = vadd.f32 0.0, %v3342
        %v3344 = vpop.f32.mrb[0].mxu0
        %v3345 = vpop.f32.mrb[0].mxu0
        %v3346 = vadd.f32 0.0, %v3345
        %v3347 = vpop.f32.mrb[0].mxu0
        %3348 = vdwg.mxu0
        %v3349 = vadd.f32 %v3155, %v3287
        %v3350 = vadd.f32 %v3158, %v3290
        %v3351 = vadd.f32 %v3163, %v3295
        %v3352 = vadd.f32 %v3166, %v3298
        %v3353 = vadd.f32 %v3171, %v3303
        %v3354 = vadd.f32 %v3174, %v3306
        %v3355 = vadd.f32 %v3179, %v3311
        %v3356 = vadd.f32 %v3182, %v3314
        %v3357 = vadd.f32 %v3187, %v3319
        %v3358 = vadd.f32 %v3190, %v3322
        %v3359 = vadd.f32 %v3195, %v3327
        %v3360 = vadd.f32 %v3198, %v3330
        %v3361 = vadd.f32 %v3203, %v3335
        %v3362 = vadd.f32 %v3206, %v3338
        %v3363 = vadd.f32 %v3211, %v3343
        %v3364 = vadd.f32 %v3214, %v3346
        %s3365 = scalar_lea.vmem %s5, 96
        %v3366 = vld [vmem:[%s3365] sm:$0xf]
        %v3367 = vld [vmem:[%s3365 + $0x4] sm:$0xf]
        %v3368 = vld [vmem:[%s3365 + $0x8] sm:$0xf]
        %v3369 = vld [vmem:[%s3365 + $0xc] sm:$0xf]
        %v3370 = vld [vmem:[%s3365 + $0x10] sm:$0xf]
        %v3371 = vld [vmem:[%s3365 + $0x14] sm:$0xf]
        %v3372 = vld [vmem:[%s3365 + $0x18] sm:$0xf]
        %v3373 = vld [vmem:[%s3365 + $0x1c] sm:$0xf]
        %v3382 = vunpack.c.l.b16 %v3366
        %v3383 = vunpack.c.l.b16 %v3367
        %v3384 = vunpack.c.l.b16 %v3368
        %v3385 = vunpack.c.l.b16 %v3369
        %v3386 = vunpack.c.l.b16 %v3370
        %v3387 = vunpack.c.l.b16 %v3371
        %v3388 = vunpack.c.l.b16 %v3372
        %v3389 = vunpack.c.l.b16 %v3373
        %v3390 = vpack.c.b16 %v3383, %v3382
        %v3391 = vpack.c.b16 %v3385, %v3384
        %v3392 = vpack.c.b16 %v3387, %v3386
        %v3393 = vpack.c.b16 %v3389, %v3388
        %3398 = vmatprep.subr.bf16.mxu0 0
        %3399 = vmatpush1.bf16.msra.mxu0 %v3390
        %3400 = vmatprep.subr.bf16.mxu0 0
        %3401 = vmatpush1.bf16.msra.mxu0 %v3391
        %3402 = vmatprep.subr.bf16.mxu0 0
        %3403 = vmatpush1.bf16.msra.mxu0 %v3392
        %3404 = vmatprep.subr.bf16.mxu0 0
        %3405 = vmatpush1.bf16.msra.mxu0 %v3393
        %3406 = vmatprep.subr.bf16.mxu0 0
        %3407 = vmatpush1.bf16.msra.mxu0 0
        %3408 = vmatprep.subr.bf16.mxu0 0
        %3409 = vmatpush1.bf16.msra.mxu0 0
        %3410 = vmatprep.subr.bf16.mxu0 0
        %3411 = vmatpush1.bf16.msra.mxu0 0
        %3412 = vmatprep.subr.bf16.mxu0 0
        %3413 = vmatpush1.bf16.msra.mxu0 0
        %3414 = vmatprep.subr.bf16.mxu0 0
        %3415 = vmatpush1.bf16.msra.mxu0 0
        %3416 = vmatprep.subr.bf16.mxu0 0
        %3417 = vmatpush1.bf16.msra.mxu0 0
        %3418 = vmatprep.subr.bf16.mxu0 0
        %3419 = vmatpush1.bf16.msra.mxu0 0
        %3420 = vmatprep.subr.bf16.mxu0 0
        %3421 = vmatpush1.bf16.msra.mxu0 0
        %3422 = vmatprep.subr.bf16.mxu0 0
        %3423 = vmatpush1.bf16.msra.mxu0 0
        %3424 = vmatprep.subr.bf16.mxu0 0
        %3425 = vmatpush1.bf16.msra.mxu0 0
        %3426 = vmatprep.subr.bf16.mxu0 0
        %3427 = vmatpush1.bf16.msra.mxu0 0
        %3428 = vmatprep.subr.bf16.mxu0 0
        %3429 = vmatpush1.bf16.msra.mxu0 0
        %3430 = vmatprep.mubr.bf16.mxu0 0
        %3431 = vmatmul.mubr.bf16.gmra.mrb[0].mxu0 %v2987
        %v3432 = vpop.f32.mrb[0].mxu0
        %v3433 = vadd.f32 0.0, %v3432
        %v3434 = vpop.f32.mrb[0].mxu0
        %v3435 = vpop.f32.mrb[0].mxu0
        %v3436 = vadd.f32 0.0, %v3435
        %v3437 = vpop.f32.mrb[0].mxu0
        %3438 = vmatprep.mubr.bf16.mxu0 0
        %3439 = vmatmul.mubr.bf16.gmra.mrb[0].mxu0 %v2989
        %v3440 = vpop.f32.mrb[0].mxu0
        %v3441 = vadd.f32 0.0, %v3440
        %v3442 = vpop.f32.mrb[0].mxu0
        %v3443 = vpop.f32.mrb[0].mxu0
        %v3444 = vadd.f32 0.0, %v3443
        %v3445 = vpop.f32.mrb[0].mxu0
        %3446 = vmatprep.mubr.bf16.mxu0 0
        %3447 = vmatmul.mubr.bf16.gmra.mrb[0].mxu0 %v2991
        %v3448 = vpop.f32.mrb[0].mxu0
        %v3449 = vadd.f32 0.0, %v3448
        %v3450 = vpop.f32.mrb[0].mxu0
        %v3451 = vpop.f32.mrb[0].mxu0
        %v3452 = vadd.f32 0.0, %v3451
        %v3453 = vpop.f32.mrb[0].mxu0
        %3454 = vmatprep.mubr.bf16.mxu0 0
        %3455 = vmatmul.mubr.bf16.gmra.mrb[0].mxu0 %v2993
        %v3456 = vpop.f32.mrb[0].mxu0
        %v3457 = vadd.f32 0.0, %v3456
        %v3458 = vpop.f32.mrb[0].mxu0
        %v3459 = vpop.f32.mrb[0].mxu0
        %v3460 = vadd.f32 0.0, %v3459
        %v3461 = vpop.f32.mrb[0].mxu0
        %3462 = vmatprep.mubr.bf16.mxu0 0
        %3463 = vmatmul.mubr.bf16.gmra.mrb[0].mxu0 %v2995
        %v3464 = vpop.f32.mrb[0].mxu0
        %v3465 = vadd.f32 0.0, %v3464
        %v3466 = vpop.f32.mrb[0].mxu0
        %v3467 = vpop.f32.mrb[0].mxu0
        %v3468 = vadd.f32 0.0, %v3467
        %v3469 = vpop.f32.mrb[0].mxu0
        %3470 = vmatprep.mubr.bf16.mxu0 0
        %3471 = vmatmul.mubr.bf16.gmra.mrb[0].mxu0 %v2997
        %v3472 = vpop.f32.mrb[0].mxu0
        %v3473 = vadd.f32 0.0, %v3472
        %v3474 = vpop.f32.mrb[0].mxu0
        %v3475 = vpop.f32.mrb[0].mxu0
        %v3476 = vadd.f32 0.0, %v3475
        %v3477 = vpop.f32.mrb[0].mxu0
        %3478 = vmatprep.mubr.bf16.mxu0 0
        %3479 = vmatmul.mubr.bf16.gmra.mrb[0].mxu0 %v3250
        %v3480 = vpop.f32.mrb[0].mxu0
        %v3481 = vadd.f32 0.0, %v3480
        %v3482 = vpop.f32.mrb[0].mxu0
        %v3483 = vpop.f32.mrb[0].mxu0
        %v3484 = vadd.f32 0.0, %v3483
        %v3485 = vpop.f32.mrb[0].mxu0
        %3486 = vmatprep.mubr.bf16.mxu0 0
        %3487 = vmatmul.mubr.bf16.gmra.mrb[0].mxu0 %v2983
        %v3488 = vpop.f32.mrb[0].mxu0
        %v3489 = vadd.f32 0.0, %v3488
        %v3490 = vpop.f32.mrb[0].mxu0
        %v3491 = vpop.f32.mrb[0].mxu0
        %v3492 = vadd.f32 0.0, %v3491
        %v3493 = vpop.f32.mrb[0].mxu0
        %3494 = vdwg.mxu0
        %v3495 = vadd.f32 %v3349, %v3433
        %v3496 = vadd.f32 %v3350, %v3436
        %v3497 = vadd.f32 %v3351, %v3441
        %v3498 = vadd.f32 %v3352, %v3444
        %v3499 = vadd.f32 %v3353, %v3449
        %v3500 = vadd.f32 %v3354, %v3452
        %v3501 = vadd.f32 %v3355, %v3457
        %v3502 = vadd.f32 %v3356, %v3460
        %v3503 = vadd.f32 %v3357, %v3465
        %v3504 = vadd.f32 %v3358, %v3468
        %v3505 = vadd.f32 %v3359, %v3473
        %v3506 = vadd.f32 %v3360, %v3476
        %v3507 = vadd.f32 %v3361, %v3481
        %v3508 = vadd.f32 %v3362, %v3484
        %v3509 = vadd.f32 %v3363, %v3489
        %v3510 = vadd.f32 %v3364, %v3492
        %s3511 = scalar_lea.vmem %s5, 128
        %v3512 = vld [vmem:[%s3511] sm:$0xf]
        %v3513 = vld [vmem:[%s3511 + $0x4] sm:$0xf]
        %v3514 = vld [vmem:[%s3511 + $0x8] sm:$0xf]
        %v3515 = vld [vmem:[%s3511 + $0xc] sm:$0xf]
        %v3516 = vld [vmem:[%s3511 + $0x10] sm:$0xf]
        %v3517 = vld [vmem:[%s3511 + $0x14] sm:$0xf]
        %v3518 = vld [vmem:[%s3511 + $0x18] sm:$0xf]
        %v3519 = vld [vmem:[%s3511 + $0x1c] sm:$0xf]
        %v3528 = vunpack.c.l.b16 %v3512
        %v3529 = vunpack.c.l.b16 %v3513
        %v3530 = vunpack.c.l.b16 %v3514
        %v3531 = vunpack.c.l.b16 %v3515
        %v3532 = vunpack.c.l.b16 %v3516
        %v3533 = vunpack.c.l.b16 %v3517
        %v3534 = vunpack.c.l.b16 %v3518
        %v3535 = vunpack.c.l.b16 %v3519
        %v3536 = vpack.c.b16 %v3529, %v3528
        %v3537 = vpack.c.b16 %v3531, %v3530
        %v3538 = vpack.c.b16 %v3533, %v3532
        %v3539 = vpack.c.b16 %v3535, %v3534
        %3544 = vmatprep.subr.bf16.mxu0 0
        %3545 = vmatpush1.bf16.msra.mxu0 %v3536
        %3546 = vmatprep.subr.bf16.mxu0 0
        %3547 = vmatpush1.bf16.msra.mxu0 %v3537
        %3548 = vmatprep.subr.bf16.mxu0 0
        %3549 = vmatpush1.bf16.msra.mxu0 %v3538
        %3550 = vmatprep.subr.bf16.mxu0 0
        %3551 = vmatpush1.bf16.msra.mxu0 %v3539
        %3552 = vmatprep.subr.bf16.mxu0 0
        %3553 = vmatpush1.bf16.msra.mxu0 0
        %3554 = vmatprep.subr.bf16.mxu0 0
        %3555 = vmatpush1.bf16.msra.mxu0 0
        %3556 = vmatprep.subr.bf16.mxu0 0
        %3557 = vmatpush1.bf16.msra.mxu0 0
        %3558 = vmatprep.subr.bf16.mxu0 0
        %3559 = vmatpush1.bf16.msra.mxu0 0
        %3560 = vmatprep.subr.bf16.mxu0 0
        %3561 = vmatpush1.bf16.msra.mxu0 0
        %3562 = vmatprep.subr.bf16.mxu0 0
        %3563 = vmatpush1.bf16.msra.mxu0 0
        %3564 = vmatprep.subr.bf16.mxu0 0
        %3565 = vmatpush1.bf16.msra.mxu0 0
        %3566 = vmatprep.subr.bf16.mxu0 0
        %3567 = vmatpush1.bf16.msra.mxu0 0
        %3568 = vmatprep.subr.bf16.mxu0 0
        %3569 = vmatpush1.bf16.msra.mxu0 0
        %3570 = vmatprep.subr.bf16.mxu0 0
        %3571 = vmatpush1.bf16.msra.mxu0 0
        %3572 = vmatprep.subr.bf16.mxu0 0
        %3573 = vmatpush1.bf16.msra.mxu0 0
        %3574 = vmatprep.subr.bf16.mxu0 0
        %3575 = vmatpush1.bf16.msra.mxu0 0
        %3576 = vmatprep.mubr.bf16.mxu0 0
        %3577 = vmatmul.mubr.bf16.gmra.mrb[0].mxu0 %v2989
        %v3578 = vpop.f32.mrb[0].mxu0
        %v3579 = vadd.f32 0.0, %v3578
        %v3580 = vpop.f32.mrb[0].mxu0
        %v3581 = vpop.f32.mrb[0].mxu0
        %v3582 = vadd.f32 0.0, %v3581
        %v3583 = vpop.f32.mrb[0].mxu0
        %3584 = vmatprep.mubr.bf16.mxu0 0
        %3585 = vmatmul.mubr.bf16.gmra.mrb[0].mxu0 %v2991
        %v3586 = vpop.f32.mrb[0].mxu0
        %v3587 = vadd.f32 0.0, %v3586
        %v3588 = vpop.f32.mrb[0].mxu0
        %v3589 = vpop.f32.mrb[0].mxu0
        %v3590 = vadd.f32 0.0, %v3589
        %v3591 = vpop.f32.mrb[0].mxu0
        %3592 = vmatprep.mubr.bf16.mxu0 0
        %3593 = vmatmul.mubr.bf16.gmra.mrb[0].mxu0 %v2993
        %v3594 = vpop.f32.mrb[0].mxu0
        %v3595 = vadd.f32 0.0, %v3594
        %v3596 = vpop.f32.mrb[0].mxu0
        %v3597 = vpop.f32.mrb[0].mxu0
        %v3598 = vadd.f32 0.0, %v3597
        %v3599 = vpop.f32.mrb[0].mxu0
        %3600 = vmatprep.mubr.bf16.mxu0 0
        %3601 = vmatmul.mubr.bf16.gmra.mrb[0].mxu0 %v2995
        %v3602 = vpop.f32.mrb[0].mxu0
        %v3603 = vadd.f32 0.0, %v3602
        %v3604 = vpop.f32.mrb[0].mxu0
        %v3605 = vpop.f32.mrb[0].mxu0
        %v3606 = vadd.f32 0.0, %v3605
        %v3607 = vpop.f32.mrb[0].mxu0
        %3608 = vmatprep.mubr.bf16.mxu0 0
        %3609 = vmatmul.mubr.bf16.gmra.mrb[0].mxu0 %v2997
        %v3610 = vpop.f32.mrb[0].mxu0
        %v3611 = vadd.f32 0.0, %v3610
        %v3612 = vpop.f32.mrb[0].mxu0
        %v3613 = vpop.f32.mrb[0].mxu0
        %v3614 = vadd.f32 0.0, %v3613
        %v3615 = vpop.f32.mrb[0].mxu0
        %3616 = vmatprep.mubr.bf16.mxu0 0
        %3617 = vmatmul.mubr.bf16.gmra.mrb[0].mxu0 %v3250
        %v3618 = vpop.f32.mrb[0].mxu0
        %v3619 = vadd.f32 0.0, %v3618
        %v3620 = vpop.f32.mrb[0].mxu0
        %v3621 = vpop.f32.mrb[0].mxu0
        %v3622 = vadd.f32 0.0, %v3621
        %v3623 = vpop.f32.mrb[0].mxu0
        %3624 = vmatprep.mubr.bf16.mxu0 0
        %3625 = vmatmul.mubr.bf16.gmra.mrb[0].mxu0 %v2983
        %v3626 = vpop.f32.mrb[0].mxu0
        %v3627 = vadd.f32 0.0, %v3626
        %v3628 = vpop.f32.mrb[0].mxu0
        %v3629 = vpop.f32.mrb[0].mxu0
        %v3630 = vadd.f32 0.0, %v3629
        %v3631 = vpop.f32.mrb[0].mxu0
        %3632 = vmatprep.mubr.bf16.mxu0 0
        %3633 = vmatmul.mubr.bf16.gmra.mrb[0].mxu0 %v2983
        %v3634 = vpop.f32.mrb[0].mxu0
        %v3635 = vadd.f32 0.0, %v3634
        %v3636 = vpop.f32.mrb[0].mxu0
        %v3637 = vpop.f32.mrb[0].mxu0
        %v3638 = vadd.f32 0.0, %v3637
        %v3639 = vpop.f32.mrb[0].mxu0
        %3640 = vdwg.mxu0
        %v3641 = vadd.f32 %v3495, %v3579
        %v3642 = vadd.f32 %v3496, %v3582
        %v3643 = vadd.f32 %v3497, %v3587
        %v3644 = vadd.f32 %v3498, %v3590
        %v3645 = vadd.f32 %v3499, %v3595
        %v3646 = vadd.f32 %v3500, %v3598
        %v3647 = vadd.f32 %v3501, %v3603
        %v3648 = vadd.f32 %v3502, %v3606
        %v3649 = vadd.f32 %v3503, %v3611
        %v3650 = vadd.f32 %v3504, %v3614
        %v3651 = vadd.f32 %v3505, %v3619
        %v3652 = vadd.f32 %v3506, %v3622
        %v3653 = vadd.f32 %v3507, %v3627
        %v3654 = vadd.f32 %v3508, %v3630
        %v3655 = vadd.f32 %v3509, %v3635
        %v3656 = vadd.f32 %v3510, %v3638
        %v3657 = vld [vmem:[%s7] sm:$0x1]
        %v3659 = vlaneseq
        %v3660 = vshrl.u32 %v3659, 7
        %v3661 = vsub.s32 0, %v3660
        %v3662 = vrot.slane %v3657, %v3661
        %v3664 = vadd.f32 %v3641, %v3662
        %v3665 = vadd.f32 %v3642, %v3662
        %v3666 = vadd.f32 %v3643, %v3662
        %v3667 = vadd.f32 %v3644, %v3662
        %v3668 = vadd.f32 %v3645, %v3662
        %v3669 = vadd.f32 %v3646, %v3662
        %v3670 = vadd.f32 %v3647, %v3662
        %v3671 = vadd.f32 %v3648, %v3662
        %v3672 = vadd.f32 %v3649, %v3662
        %v3673 = vadd.f32 %v3650, %v3662
        %v3674 = vadd.f32 %v3651, %v3662
        %v3675 = vadd.f32 %v3652, %v3662
        %v3676 = vadd.f32 %v3653, %v3662
        %v3677 = vadd.f32 %v3654, %v3662
        %v3678 = vadd.f32 %v3655, %v3662
        %v3679 = vadd.f32 %v3656, %v3662
        %v3680 = vxor.u32 %v3664, 2147483648
        %v3681 = vxor.u32 %v3665, 2147483648
        %v3682 = vxor.u32 %v3666, 2147483648
        %v3683 = vxor.u32 %v3667, 2147483648
        %v3684 = vxor.u32 %v3668, 2147483648
        %v3685 = vxor.u32 %v3669, 2147483648
        %v3686 = vxor.u32 %v3670, 2147483648
        %v3687 = vxor.u32 %v3671, 2147483648
        %v3688 = vxor.u32 %v3672, 2147483648
        %v3689 = vxor.u32 %v3673, 2147483648
        %v3690 = vxor.u32 %v3674, 2147483648
        %v3691 = vxor.u32 %v3675, 2147483648
        %v3692 = vxor.u32 %v3676, 2147483648
        %v3693 = vxor.u32 %v3677, 2147483648
        %v3694 = vxor.u32 %v3678, 2147483648
        %v3695 = vxor.u32 %v3679, 2147483648
        %v3696 = vmul.f32 %v3680, 1.442695
        %v3697 = vpow.pop %v3696
        %v3698 = vmul.f32 %v3681, 1.442695
        %v3699 = vpow.pop %v3698
        %v3700 = vmul.f32 %v3682, 1.442695
        %v3701 = vpow.pop %v3700
        %v3702 = vmul.f32 %v3683, 1.442695
        %v3703 = vpow.pop %v3702
        %v3704 = vmul.f32 %v3684, 1.442695
        %v3705 = vpow.pop %v3704
        %v3706 = vmul.f32 %v3685, 1.442695
        %v3707 = vpow.pop %v3706
        %v3708 = vmul.f32 %v3686, 1.442695
        %v3709 = vpow.pop %v3708
        %v3710 = vmul.f32 %v3687, 1.442695
        %v3711 = vpow.pop %v3710
        %v3712 = vmul.f32 %v3688, 1.442695
        %v3713 = vpow.pop %v3712
        %v3714 = vmul.f32 %v3689, 1.442695
        %v3715 = vpow.pop %v3714
        %v3716 = vmul.f32 %v3690, 1.442695
        %v3717 = vpow.pop %v3716
        %v3718 = vmul.f32 %v3691, 1.442695
        %v3719 = vpow.pop %v3718
        %v3720 = vmul.f32 %v3692, 1.442695
        %v3721 = vpow.pop %v3720
        %v3722 = vmul.f32 %v3693, 1.442695
        %v3723 = vpow.pop %v3722
        %v3724 = vmul.f32 %v3694, 1.442695
        %v3725 = vpow.pop %v3724
        %v3726 = vmul.f32 %v3695, 1.442695
        %v3727 = vpow.pop %v3726
        %v3728 = vadd.f32 %v3697, 1.0
        %v3729 = vadd.f32 %v3699, 1.0
        %v3730 = vadd.f32 %v3701, 1.0
        %v3731 = vadd.f32 %v3703, 1.0
        %v3732 = vadd.f32 %v3705, 1.0
        %v3733 = vadd.f32 %v3707, 1.0
        %v3734 = vadd.f32 %v3709, 1.0
        %v3735 = vadd.f32 %v3711, 1.0
        %v3736 = vadd.f32 %v3713, 1.0
        %v3737 = vadd.f32 %v3715, 1.0
        %v3738 = vadd.f32 %v3717, 1.0
        %v3739 = vadd.f32 %v3719, 1.0
        %v3740 = vadd.f32 %v3721, 1.0
        %v3741 = vadd.f32 %v3723, 1.0
        %v3742 = vadd.f32 %v3725, 1.0
        %v3743 = vadd.f32 %v3727, 1.0
        %v3744 = vrcp.pop %v3728
        %v3745 = vmul.f32 1.0, %v3744
        %v3746 = vrcp.pop %v3729
        %v3747 = vmul.f32 1.0, %v3746
        %v3748 = vrcp.pop %v3730
        %v3749 = vmul.f32 1.0, %v3748
        %v3750 = vrcp.pop %v3731
        %v3751 = vmul.f32 1.0, %v3750
        %v3752 = vrcp.pop %v3732
        %v3753 = vmul.f32 1.0, %v3752
        %v3754 = vrcp.pop %v3733
        %v3755 = vmul.f32 1.0, %v3754
        %v3756 = vrcp.pop %v3734
        %v3757 = vmul.f32 1.0, %v3756
        %v3758 = vrcp.pop %v3735
        %v3759 = vmul.f32 1.0, %v3758
        %v3760 = vrcp.pop %v3736
        %v3761 = vmul.f32 1.0, %v3760
        %v3762 = vrcp.pop %v3737
        %v3763 = vmul.f32 1.0, %v3762
        %v3764 = vrcp.pop %v3738
        %v3765 = vmul.f32 1.0, %v3764
        %v3766 = vrcp.pop %v3739
        %v3767 = vmul.f32 1.0, %v3766
        %v3768 = vrcp.pop %v3740
        %v3769 = vmul.f32 1.0, %v3768
        %v3770 = vrcp.pop %v3741
        %v3771 = vmul.f32 1.0, %v3770
        %v3772 = vrcp.pop %v3742
        %v3773 = vmul.f32 1.0, %v3772
        %v3774 = vrcp.pop %v3743
        %v3775 = vmul.f32 1.0, %v3774
        %3792 = vrot.lane.b32.xlu0 %v2902, 32
        %v3793 = vpop.permute.xlu0 %3792
        %3794 = vrot.lane.b32.xlu0 %v2903, 32
        %v3795 = vpop.permute.xlu0 %3794
        %3796 = vrot.lane.b32.xlu0 %v2904, 32
        %v3797 = vpop.permute.xlu0 %3796
        %3798 = vrot.lane.b32.xlu0 %v2905, 32
        %v3799 = vpop.permute.xlu0 %3798
        %3800 = vrot.lane.b32.xlu0 %v2906, 32
        %v3801 = vpop.permute.xlu0 %3800
        %3802 = vrot.lane.b32.xlu0 %v2907, 32
        %v3803 = vpop.permute.xlu0 %3802
        %3804 = vrot.lane.b32.xlu0 %v2908, 32
        %v3805 = vpop.permute.xlu0 %3804
        %3806 = vrot.lane.b32.xlu0 %v2909, 32
        %v3807 = vpop.permute.xlu0 %3806
        %3808 = vrot.lane.b32.xlu0 %v2910, 32
        %v3809 = vpop.permute.xlu0 %3808
        %3810 = vrot.lane.b32.xlu0 %v2911, 32
        %v3811 = vpop.permute.xlu0 %3810
        %3812 = vrot.lane.b32.xlu0 %v2912, 32
        %v3813 = vpop.permute.xlu0 %3812
        %3814 = vrot.lane.b32.xlu0 %v2913, 32
        %v3815 = vpop.permute.xlu0 %3814
        %3816 = vrot.lane.b32.xlu0 %v2914, 32
        %v3817 = vpop.permute.xlu0 %3816
        %3818 = vrot.lane.b32.xlu0 %v2915, 32
        %v3819 = vpop.permute.xlu0 %3818
        %3820 = vrot.lane.b32.xlu0 %v2916, 32
        %v3821 = vpop.permute.xlu0 %3820
        %3822 = vrot.lane.b32.xlu0 %v2917, 32
        %v3823 = vpop.permute.xlu0 %3822
        %v3840 = vmul.f32 %v3745, %v3793
        %v3841 = vmul.f32 %v3747, %v3795
        %v3842 = vmul.f32 %v3749, %v3797
        %v3843 = vmul.f32 %v3751, %v3799
        %v3844 = vmul.f32 %v3753, %v3801
        %v3845 = vmul.f32 %v3755, %v3803
        %v3846 = vmul.f32 %v3757, %v3805
        %v3847 = vmul.f32 %v3759, %v3807
        %v3848 = vmul.f32 %v3761, %v3809
        %v3849 = vmul.f32 %v3763, %v3811
        %v3850 = vmul.f32 %v3765, %v3813
        %v3851 = vmul.f32 %v3767, %v3815
        %v3852 = vmul.f32 %v3769, %v3817
        %v3853 = vmul.f32 %v3771, %v3819
        %v3854 = vmul.f32 %v3773, %v3821
        %v3855 = vmul.f32 %v3775, %v3823
        %v3856 = vpack.c.bf16 %v3841, %v3840
        %v3857 = vpack.c.bf16 %v3843, %v3842
        %v3858 = vpack.c.bf16 %v3845, %v3844
        %v3859 = vpack.c.bf16 %v3847, %v3846
        %v3860 = vpack.c.bf16 %v3849, %v3848
        %v3861 = vpack.c.bf16 %v3851, %v3850
        %v3862 = vpack.c.bf16 %v3853, %v3852
        %v3863 = vpack.c.bf16 %v3855, %v3854
        %3872 = vrot.lane.b32.xlu0 %v3856, 96
        %v3873 = vpop.permute.xlu0 %3872
        %3874 = vrot.lane.b32.xlu0 %v3857, 96
        %v3875 = vpop.permute.xlu0 %3874
        %3876 = vrot.lane.b32.xlu0 %v3858, 96
        %v3877 = vpop.permute.xlu0 %3876
        %3878 = vrot.lane.b32.xlu0 %v3859, 96
        %v3879 = vpop.permute.xlu0 %3878
        %3880 = vrot.lane.b32.xlu0 %v3860, 96
        %v3881 = vpop.permute.xlu0 %3880
        %3882 = vrot.lane.b32.xlu0 %v3861, 96
        %v3883 = vpop.permute.xlu0 %3882
        %3884 = vrot.lane.b32.xlu0 %v3862, 96
        %v3885 = vpop.permute.xlu0 %3884
        %3886 = vrot.lane.b32.xlu0 %v3863, 96
        %v3887 = vpop.permute.xlu0 %3886
        %v3888 = vld [vmem:[#allocation4] sm:$0xf]
        %v3889 = vld [vmem:[#allocation4 + $0x4] sm:$0xf]
        %v3890 = vld [vmem:[#allocation4 + $0x8] sm:$0xf]
        %v3891 = vld [vmem:[#allocation4 + $0xc] sm:$0xf]
        %s3892 = scalar_lea.vmem [#allocation4], 16
        %v3893 = vld [vmem:[%s3892] sm:$0xf]
        %v3894 = vld [vmem:[%s3892 + $0x4] sm:$0xf]
        %v3895 = vld [vmem:[%s3892 + $0x8] sm:$0xf]
        %v3896 = vld [vmem:[%s3892 + $0xc] sm:$0xf]
        %v3901 = vunpack.c.l.b16 %v3893
        %v3902 = vunpack.c.l.b16 %v3894
        %v3903 = vunpack.c.l.b16 %v3895
        %v3904 = vunpack.c.l.b16 %v3896
        %v3905 = vpack.c.b16 %v3902, %v3901
        %v3906 = vpack.c.b16 %v3904, %v3903
        %v3909 = vsel %vm453, 0, 0
        %v3912 = vsel %vm453, %v3873, 0
        %v3915 = vsel %vm453, %v3875, 0
        %v3918 = vsel %vm453, %v3877, 0
        %v3921 = vsel %vm453, %v3879, 0
        %v3924 = vsel %vm453, %v3881, 0
        %v3927 = vsel %vm453, %v3883, 0
        %v3930 = vsel %vm453, %v3885, 0
        %3932 = vmatprep.subr.bf16.mxu0 0
        %3933 = vmatpush1.bf16.msra.mxu0 %v3905
        %3934 = vmatprep.subr.bf16.mxu0 0
        %3935 = vmatpush1.bf16.msra.mxu0 %v3906
        %3936 = vmatprep.subr.bf16.mxu0 0
        %3937 = vmatpush1.bf16.msra.mxu0 0
        %3938 = vmatprep.subr.bf16.mxu0 0
        %3939 = vmatpush1.bf16.msra.mxu0 0
        %3940 = vmatprep.subr.bf16.mxu0 0
        %3941 = vmatpush1.bf16.msra.mxu0 0
        %3942 = vmatprep.subr.bf16.mxu0 0
        %3943 = vmatpush1.bf16.msra.mxu0 0
        %3944 = vmatprep.subr.bf16.mxu0 0
        %3945 = vmatpush1.bf16.msra.mxu0 0
        %3946 = vmatprep.subr.bf16.mxu0 0
        %3947 = vmatpush1.bf16.msra.mxu0 0
        %3948 = vmatprep.subr.bf16.mxu0 0
        %3949 = vmatpush1.bf16.msra.mxu0 0
        %3950 = vmatprep.subr.bf16.mxu0 0
        %3951 = vmatpush1.bf16.msra.mxu0 0
        %3952 = vmatprep.subr.bf16.mxu0 0
        %3953 = vmatpush1.bf16.msra.mxu0 0
        %3954 = vmatprep.subr.bf16.mxu0 0
        %3955 = vmatpush1.bf16.msra.mxu0 0
        %3956 = vmatprep.subr.bf16.mxu0 0
        %3957 = vmatpush1.bf16.msra.mxu0 0
        %3958 = vmatprep.subr.bf16.mxu0 0
        %3959 = vmatpush1.bf16.msra.mxu0 0
        %3960 = vmatprep.subr.bf16.mxu0 0
        %3961 = vmatpush1.bf16.msra.mxu0 0
        %3962 = vmatprep.subr.bf16.mxu0 0
        %3963 = vmatpush1.bf16.msra.mxu0 0
        %3964 = vmatprep.mubr.bf16.mxu0 0
        %3965 = vmatmul.mubr.bf16.gmra.mrb[0].mxu0 %v3909
        %v3966 = vpop.f32.mrb[0].mxu0
        %v3967 = vadd.f32 0.0, %v3966
        %v3968 = vpop.f32.mrb[0].mxu0
        %v3969 = vpop.f32.mrb[0].mxu0
        %v3970 = vadd.f32 0.0, %v3969
        %v3971 = vpop.f32.mrb[0].mxu0
        %3972 = vmatprep.mubr.bf16.mxu0 0
        %3973 = vmatmul.mubr.bf16.gmra.mrb[0].mxu0 %v3912
        %v3974 = vpop.f32.mrb[0].mxu0
        %v3975 = vadd.f32 0.0, %v3974
        %v3976 = vpop.f32.mrb[0].mxu0
        %v3977 = vpop.f32.mrb[0].mxu0
        %v3978 = vadd.f32 0.0, %v3977
        %v3979 = vpop.f32.mrb[0].mxu0
        %3980 = vmatprep.mubr.bf16.mxu0 0
        %3981 = vmatmul.mubr.bf16.gmra.mrb[0].mxu0 %v3915
        %v3982 = vpop.f32.mrb[0].mxu0
        %v3983 = vadd.f32 0.0, %v3982
        %v3984 = vpop.f32.mrb[0].mxu0
        %v3985 = vpop.f32.mrb[0].mxu0
        %v3986 = vadd.f32 0.0, %v3985
        %v3987 = vpop.f32.mrb[0].mxu0
        %3988 = vmatprep.mubr.bf16.mxu0 0
        %3989 = vmatmul.mubr.bf16.gmra.mrb[0].mxu0 %v3918
        %v3990 = vpop.f32.mrb[0].mxu0
        %v3991 = vadd.f32 0.0, %v3990
        %v3992 = vpop.f32.mrb[0].mxu0
        %v3993 = vpop.f32.mrb[0].mxu0
        %v3994 = vadd.f32 0.0, %v3993
        %v3995 = vpop.f32.mrb[0].mxu0
        %3996 = vmatprep.mubr.bf16.mxu0 0
        %3997 = vmatmul.mubr.bf16.gmra.mrb[0].mxu0 %v3921
        %v3998 = vpop.f32.mrb[0].mxu0
        %v3999 = vadd.f32 0.0, %v3998
        %v4000 = vpop.f32.mrb[0].mxu0
        %v4001 = vpop.f32.mrb[0].mxu0
        %v4002 = vadd.f32 0.0, %v4001
        %v4003 = vpop.f32.mrb[0].mxu0
        %4004 = vmatprep.mubr.bf16.mxu0 0
        %4005 = vmatmul.mubr.bf16.gmra.mrb[0].mxu0 %v3924
        %v4006 = vpop.f32.mrb[0].mxu0
        %v4007 = vadd.f32 0.0, %v4006
        %v4008 = vpop.f32.mrb[0].mxu0
        %v4009 = vpop.f32.mrb[0].mxu0
        %v4010 = vadd.f32 0.0, %v4009
        %v4011 = vpop.f32.mrb[0].mxu0
        %4012 = vmatprep.mubr.bf16.mxu0 0
        %4013 = vmatmul.mubr.bf16.gmra.mrb[0].mxu0 %v3927
        %v4014 = vpop.f32.mrb[0].mxu0
        %v4015 = vadd.f32 0.0, %v4014
        %v4016 = vpop.f32.mrb[0].mxu0
        %v4017 = vpop.f32.mrb[0].mxu0
        %v4018 = vadd.f32 0.0, %v4017
        %v4019 = vpop.f32.mrb[0].mxu0
        %4020 = vmatprep.mubr.bf16.mxu0 0
        %4021 = vmatmul.mubr.bf16.gmra.mrb[0].mxu0 %v3930
        %v4022 = vpop.f32.mrb[0].mxu0
        %v4023 = vadd.f32 0.0, %v4022
        %v4024 = vpop.f32.mrb[0].mxu0
        %v4025 = vpop.f32.mrb[0].mxu0
        %v4026 = vadd.f32 0.0, %v4025
        %v4027 = vpop.f32.mrb[0].mxu0
        %4028 = vdwg.mxu0
        %v4033 = vunpack.c.l.b16 %v3888
        %v4034 = vunpack.c.l.b16 %v3889
        %v4035 = vunpack.c.l.b16 %v3890
        %v4036 = vunpack.c.l.b16 %v3891
        %v4037 = vpack.c.b16 %v4034, %v4033
        %v4038 = vpack.c.b16 %v4036, %v4035
        %4041 = vmatprep.subr.bf16.mxu0 0
        %4042 = vmatpush1.bf16.msra.mxu0 %v4037
        %4043 = vmatprep.subr.bf16.mxu0 0
        %4044 = vmatpush1.bf16.msra.mxu0 %v4038
        %4045 = vmatprep.subr.bf16.mxu0 0
        %4046 = vmatpush1.bf16.msra.mxu0 0
        %4047 = vmatprep.subr.bf16.mxu0 0
        %4048 = vmatpush1.bf16.msra.mxu0 0
        %4049 = vmatprep.subr.bf16.mxu0 0
        %4050 = vmatpush1.bf16.msra.mxu0 0
        %4051 = vmatprep.subr.bf16.mxu0 0
        %4052 = vmatpush1.bf16.msra.mxu0 0
        %4053 = vmatprep.subr.bf16.mxu0 0
        %4054 = vmatpush1.bf16.msra.mxu0 0
        %4055 = vmatprep.subr.bf16.mxu0 0
        %4056 = vmatpush1.bf16.msra.mxu0 0
        %4057 = vmatprep.subr.bf16.mxu0 0
        %4058 = vmatpush1.bf16.msra.mxu0 0
        %4059 = vmatprep.subr.bf16.mxu0 0
        %4060 = vmatpush1.bf16.msra.mxu0 0
        %4061 = vmatprep.subr.bf16.mxu0 0
        %4062 = vmatpush1.bf16.msra.mxu0 0
        %4063 = vmatprep.subr.bf16.mxu0 0
        %4064 = vmatpush1.bf16.msra.mxu0 0
        %4065 = vmatprep.subr.bf16.mxu0 0
        %4066 = vmatpush1.bf16.msra.mxu0 0
        %4067 = vmatprep.subr.bf16.mxu0 0
        %4068 = vmatpush1.bf16.msra.mxu0 0
        %4069 = vmatprep.subr.bf16.mxu0 0
        %4070 = vmatpush1.bf16.msra.mxu0 0
        %4071 = vmatprep.subr.bf16.mxu0 0
        %4072 = vmatpush1.bf16.msra.mxu0 0
        %4073 = vmatprep.mubr.bf16.mxu0 0
        %4074 = vmatmul.mubr.bf16.gmra.mrb[0].mxu0 %v3909
        %v4075 = vpop.f32.mrb[0].mxu0
        %v4076 = vadd.f32 %v3967, %v4075
        %v4077 = vpop.f32.mrb[0].mxu0
        %v4078 = vpop.f32.mrb[0].mxu0
        %v4079 = vadd.f32 %v3970, %v4078
        %v4080 = vpop.f32.mrb[0].mxu0
        %4081 = vmatprep.mubr.bf16.mxu0 0
        %4082 = vmatmul.mubr.bf16.gmra.mrb[0].mxu0 %v3909
        %v4083 = vpop.f32.mrb[0].mxu0
        %v4084 = vadd.f32 %v3975, %v4083
        %v4085 = vpop.f32.mrb[0].mxu0
        %v4086 = vpop.f32.mrb[0].mxu0
        %v4087 = vadd.f32 %v3978, %v4086
        %v4088 = vpop.f32.mrb[0].mxu0
        %4089 = vmatprep.mubr.bf16.mxu0 0
        %4090 = vmatmul.mubr.bf16.gmra.mrb[0].mxu0 %v3912
        %v4091 = vpop.f32.mrb[0].mxu0
        %v4092 = vadd.f32 %v3983, %v4091
        %v4093 = vpop.f32.mrb[0].mxu0
        %v4094 = vpop.f32.mrb[0].mxu0
        %v4095 = vadd.f32 %v3986, %v4094
        %v4096 = vpop.f32.mrb[0].mxu0
        %4097 = vmatprep.mubr.bf16.mxu0 0
        %4098 = vmatmul.mubr.bf16.gmra.mrb[0].mxu0 %v3915
        %v4099 = vpop.f32.mrb[0].mxu0
        %v4100 = vadd.f32 %v3991, %v4099
        %v4101 = vpop.f32.mrb[0].mxu0
        %v4102 = vpop.f32.mrb[0].mxu0
        %v4103 = vadd.f32 %v3994, %v4102
        %v4104 = vpop.f32.mrb[0].mxu0
        %4105 = vmatprep.mubr.bf16.mxu0 0
        %4106 = vmatmul.mubr.bf16.gmra.mrb[0].mxu0 %v3918
        %v4107 = vpop.f32.mrb[0].mxu0
        %v4108 = vadd.f32 %v3999, %v4107
        %v4109 = vpop.f32.mrb[0].mxu0
        %v4110 = vpop.f32.mrb[0].mxu0
        %v4111 = vadd.f32 %v4002, %v4110
        %v4112 = vpop.f32.mrb[0].mxu0
        %4113 = vmatprep.mubr.bf16.mxu0 0
        %4114 = vmatmul.mubr.bf16.gmra.mrb[0].mxu0 %v3921
        %v4115 = vpop.f32.mrb[0].mxu0
        %v4116 = vadd.f32 %v4007, %v4115
        %v4117 = vpop.f32.mrb[0].mxu0
        %v4118 = vpop.f32.mrb[0].mxu0
        %v4119 = vadd.f32 %v4010, %v4118
        %v4120 = vpop.f32.mrb[0].mxu0
        %4121 = vmatprep.mubr.bf16.mxu0 0
        %4122 = vmatmul.mubr.bf16.gmra.mrb[0].mxu0 %v3924
        %v4123 = vpop.f32.mrb[0].mxu0
        %v4124 = vadd.f32 %v4015, %v4123
        %v4125 = vpop.f32.mrb[0].mxu0
        %v4126 = vpop.f32.mrb[0].mxu0
        %v4127 = vadd.f32 %v4018, %v4126
        %v4128 = vpop.f32.mrb[0].mxu0
        %4129 = vmatprep.mubr.bf16.mxu0 0
        %4130 = vmatmul.mubr.bf16.gmra.mrb[0].mxu0 %v3927
        %v4131 = vpop.f32.mrb[0].mxu0
        %v4132 = vadd.f32 %v4023, %v4131
        %v4133 = vpop.f32.mrb[0].mxu0
        %v4134 = vpop.f32.mrb[0].mxu0
        %v4135 = vadd.f32 %v4026, %v4134
        %v4136 = vpop.f32.mrb[0].mxu0
        %4137 = vdwg.mxu0
        %s4138 = scalar_lea.vmem [#allocation4], 32
        %v4139 = vld [vmem:[%s4138] sm:$0xf]
        %v4140 = vld [vmem:[%s4138 + $0x4] sm:$0xf]
        %v4141 = vld [vmem:[%s4138 + $0x8] sm:$0xf]
        %v4142 = vld [vmem:[%s4138 + $0xc] sm:$0xf]
        %v4147 = vunpack.c.l.b16 %v4139
        %v4148 = vunpack.c.l.b16 %v4140
        %v4149 = vunpack.c.l.b16 %v4141
        %v4150 = vunpack.c.l.b16 %v4142
        %v4151 = vpack.c.b16 %v4148, %v4147
        %v4152 = vpack.c.b16 %v4150, %v4149
        %v4156 = vsel %vm453, %v3887, 0
        %4158 = vmatprep.subr.bf16.mxu0 0
        %4159 = vmatpush1.bf16.msra.mxu0 %v4151
        %4160 = vmatprep.subr.bf16.mxu0 0
        %4161 = vmatpush1.bf16.msra.mxu0 %v4152
        %4162 = vmatprep.subr.bf16.mxu0 0
        %4163 = vmatpush1.bf16.msra.mxu0 0
        %4164 = vmatprep.subr.bf16.mxu0 0
        %4165 = vmatpush1.bf16.msra.mxu0 0
        %4166 = vmatprep.subr.bf16.mxu0 0
        %4167 = vmatpush1.bf16.msra.mxu0 0
        %4168 = vmatprep.subr.bf16.mxu0 0
        %4169 = vmatpush1.bf16.msra.mxu0 0
        %4170 = vmatprep.subr.bf16.mxu0 0
        %4171 = vmatpush1.bf16.msra.mxu0 0
        %4172 = vmatprep.subr.bf16.mxu0 0
        %4173 = vmatpush1.bf16.msra.mxu0 0
        %4174 = vmatprep.subr.bf16.mxu0 0
        %4175 = vmatpush1.bf16.msra.mxu0 0
        %4176 = vmatprep.subr.bf16.mxu0 0
        %4177 = vmatpush1.bf16.msra.mxu0 0
        %4178 = vmatprep.subr.bf16.mxu0 0
        %4179 = vmatpush1.bf16.msra.mxu0 0
        %4180 = vmatprep.subr.bf16.mxu0 0
        %4181 = vmatpush1.bf16.msra.mxu0 0
        %4182 = vmatprep.subr.bf16.mxu0 0
        %4183 = vmatpush1.bf16.msra.mxu0 0
        %4184 = vmatprep.subr.bf16.mxu0 0
        %4185 = vmatpush1.bf16.msra.mxu0 0
        %4186 = vmatprep.subr.bf16.mxu0 0
        %4187 = vmatpush1.bf16.msra.mxu0 0
        %4188 = vmatprep.subr.bf16.mxu0 0
        %4189 = vmatpush1.bf16.msra.mxu0 0
        %4190 = vmatprep.mubr.bf16.mxu0 0
        %4191 = vmatmul.mubr.bf16.gmra.mrb[0].mxu0 %v3912
        %v4192 = vpop.f32.mrb[0].mxu0
        %v4193 = vadd.f32 0.0, %v4192
        %v4194 = vpop.f32.mrb[0].mxu0
        %v4195 = vpop.f32.mrb[0].mxu0
        %v4196 = vadd.f32 0.0, %v4195
        %v4197 = vpop.f32.mrb[0].mxu0
        %4198 = vmatprep.mubr.bf16.mxu0 0
        %4199 = vmatmul.mubr.bf16.gmra.mrb[0].mxu0 %v3915
        %v4200 = vpop.f32.mrb[0].mxu0
        %v4201 = vadd.f32 0.0, %v4200
        %v4202 = vpop.f32.mrb[0].mxu0
        %v4203 = vpop.f32.mrb[0].mxu0
        %v4204 = vadd.f32 0.0, %v4203
        %v4205 = vpop.f32.mrb[0].mxu0
        %4206 = vmatprep.mubr.bf16.mxu0 0
        %4207 = vmatmul.mubr.bf16.gmra.mrb[0].mxu0 %v3918
        %v4208 = vpop.f32.mrb[0].mxu0
        %v4209 = vadd.f32 0.0, %v4208
        %v4210 = vpop.f32.mrb[0].mxu0
        %v4211 = vpop.f32.mrb[0].mxu0
        %v4212 = vadd.f32 0.0, %v4211
        %v4213 = vpop.f32.mrb[0].mxu0
        %4214 = vmatprep.mubr.bf16.mxu0 0
        %4215 = vmatmul.mubr.bf16.gmra.mrb[0].mxu0 %v3921
        %v4216 = vpop.f32.mrb[0].mxu0
        %v4217 = vadd.f32 0.0, %v4216
        %v4218 = vpop.f32.mrb[0].mxu0
        %v4219 = vpop.f32.mrb[0].mxu0
        %v4220 = vadd.f32 0.0, %v4219
        %v4221 = vpop.f32.mrb[0].mxu0
        %4222 = vmatprep.mubr.bf16.mxu0 0
        %4223 = vmatmul.mubr.bf16.gmra.mrb[0].mxu0 %v3924
        %v4224 = vpop.f32.mrb[0].mxu0
        %v4225 = vadd.f32 0.0, %v4224
        %v4226 = vpop.f32.mrb[0].mxu0
        %v4227 = vpop.f32.mrb[0].mxu0
        %v4228 = vadd.f32 0.0, %v4227
        %v4229 = vpop.f32.mrb[0].mxu0
        %4230 = vmatprep.mubr.bf16.mxu0 0
        %4231 = vmatmul.mubr.bf16.gmra.mrb[0].mxu0 %v3927
        %v4232 = vpop.f32.mrb[0].mxu0
        %v4233 = vadd.f32 0.0, %v4232
        %v4234 = vpop.f32.mrb[0].mxu0
        %v4235 = vpop.f32.mrb[0].mxu0
        %v4236 = vadd.f32 0.0, %v4235
        %v4237 = vpop.f32.mrb[0].mxu0
        %4238 = vmatprep.mubr.bf16.mxu0 0
        %4239 = vmatmul.mubr.bf16.gmra.mrb[0].mxu0 %v3930
        %v4240 = vpop.f32.mrb[0].mxu0
        %v4241 = vadd.f32 0.0, %v4240
        %v4242 = vpop.f32.mrb[0].mxu0
        %v4243 = vpop.f32.mrb[0].mxu0
        %v4244 = vadd.f32 0.0, %v4243
        %v4245 = vpop.f32.mrb[0].mxu0
        %4246 = vmatprep.mubr.bf16.mxu0 0
        %4247 = vmatmul.mubr.bf16.gmra.mrb[0].mxu0 %v4156
        %v4248 = vpop.f32.mrb[0].mxu0
        %v4249 = vadd.f32 0.0, %v4248
        %v4250 = vpop.f32.mrb[0].mxu0
        %v4251 = vpop.f32.mrb[0].mxu0
        %v4252 = vadd.f32 0.0, %v4251
        %v4253 = vpop.f32.mrb[0].mxu0
        %4254 = vdwg.mxu0
        %v4255 = vadd.f32 %v4076, %v4193
        %v4256 = vadd.f32 %v4079, %v4196
        %v4257 = vadd.f32 %v4084, %v4201
        %v4258 = vadd.f32 %v4087, %v4204
        %v4259 = vadd.f32 %v4092, %v4209
        %v4260 = vadd.f32 %v4095, %v4212
        %v4261 = vadd.f32 %v4100, %v4217
        %v4262 = vadd.f32 %v4103, %v4220
        %v4263 = vadd.f32 %v4108, %v4225
        %v4264 = vadd.f32 %v4111, %v4228
        %v4265 = vadd.f32 %v4116, %v4233
        %v4266 = vadd.f32 %v4119, %v4236
        %v4267 = vadd.f32 %v4124, %v4241
        %v4268 = vadd.f32 %v4127, %v4244
        %v4269 = vadd.f32 %v4132, %v4249
        %v4270 = vadd.f32 %v4135, %v4252
        %s4271 = scalar_lea.vmem [#allocation4], 48
        %v4272 = vld [vmem:[%s4271] sm:$0xf]
        %v4273 = vld [vmem:[%s4271 + $0x4] sm:$0xf]
        %v4274 = vld [vmem:[%s4271 + $0x8] sm:$0xf]
        %v4275 = vld [vmem:[%s4271 + $0xc] sm:$0xf]
        %v4280 = vunpack.c.l.b16 %v4272
        %v4281 = vunpack.c.l.b16 %v4273
        %v4282 = vunpack.c.l.b16 %v4274
        %v4283 = vunpack.c.l.b16 %v4275
        %v4284 = vpack.c.b16 %v4281, %v4280
        %v4285 = vpack.c.b16 %v4283, %v4282
        %4288 = vmatprep.subr.bf16.mxu0 0
        %4289 = vmatpush1.bf16.msra.mxu0 %v4284
        %4290 = vmatprep.subr.bf16.mxu0 0
        %4291 = vmatpush1.bf16.msra.mxu0 %v4285
        %4292 = vmatprep.subr.bf16.mxu0 0
        %4293 = vmatpush1.bf16.msra.mxu0 0
        %4294 = vmatprep.subr.bf16.mxu0 0
        %4295 = vmatpush1.bf16.msra.mxu0 0
        %4296 = vmatprep.subr.bf16.mxu0 0
        %4297 = vmatpush1.bf16.msra.mxu0 0
        %4298 = vmatprep.subr.bf16.mxu0 0
        %4299 = vmatpush1.bf16.msra.mxu0 0
        %4300 = vmatprep.subr.bf16.mxu0 0
        %4301 = vmatpush1.bf16.msra.mxu0 0
        %4302 = vmatprep.subr.bf16.mxu0 0
        %4303 = vmatpush1.bf16.msra.mxu0 0
        %4304 = vmatprep.subr.bf16.mxu0 0
        %4305 = vmatpush1.bf16.msra.mxu0 0
        %4306 = vmatprep.subr.bf16.mxu0 0
        %4307 = vmatpush1.bf16.msra.mxu0 0
        %4308 = vmatprep.subr.bf16.mxu0 0
        %4309 = vmatpush1.bf16.msra.mxu0 0
        %4310 = vmatprep.subr.bf16.mxu0 0
        %4311 = vmatpush1.bf16.msra.mxu0 0
        %4312 = vmatprep.subr.bf16.mxu0 0
        %4313 = vmatpush1.bf16.msra.mxu0 0
        %4314 = vmatprep.subr.bf16.mxu0 0
        %4315 = vmatpush1.bf16.msra.mxu0 0
        %4316 = vmatprep.subr.bf16.mxu0 0
        %4317 = vmatpush1.bf16.msra.mxu0 0
        %4318 = vmatprep.subr.bf16.mxu0 0
        %4319 = vmatpush1.bf16.msra.mxu0 0
        %4320 = vmatprep.mubr.bf16.mxu0 0
        %4321 = vmatmul.mubr.bf16.gmra.mrb[0].mxu0 %v3915
        %v4322 = vpop.f32.mrb[0].mxu0
        %v4323 = vadd.f32 0.0, %v4322
        %v4324 = vpop.f32.mrb[0].mxu0
        %v4325 = vpop.f32.mrb[0].mxu0
        %v4326 = vadd.f32 0.0, %v4325
        %v4327 = vpop.f32.mrb[0].mxu0
        %4328 = vmatprep.mubr.bf16.mxu0 0
        %4329 = vmatmul.mubr.bf16.gmra.mrb[0].mxu0 %v3918
        %v4330 = vpop.f32.mrb[0].mxu0
        %v4331 = vadd.f32 0.0, %v4330
        %v4332 = vpop.f32.mrb[0].mxu0
        %v4333 = vpop.f32.mrb[0].mxu0
        %v4334 = vadd.f32 0.0, %v4333
        %v4335 = vpop.f32.mrb[0].mxu0
        %4336 = vmatprep.mubr.bf16.mxu0 0
        %4337 = vmatmul.mubr.bf16.gmra.mrb[0].mxu0 %v3921
        %v4338 = vpop.f32.mrb[0].mxu0
        %v4339 = vadd.f32 0.0, %v4338
        %v4340 = vpop.f32.mrb[0].mxu0
        %v4341 = vpop.f32.mrb[0].mxu0
        %v4342 = vadd.f32 0.0, %v4341
        %v4343 = vpop.f32.mrb[0].mxu0
        %4344 = vmatprep.mubr.bf16.mxu0 0
        %4345 = vmatmul.mubr.bf16.gmra.mrb[0].mxu0 %v3924
        %v4346 = vpop.f32.mrb[0].mxu0
        %v4347 = vadd.f32 0.0, %v4346
        %v4348 = vpop.f32.mrb[0].mxu0
        %v4349 = vpop.f32.mrb[0].mxu0
        %v4350 = vadd.f32 0.0, %v4349
        %v4351 = vpop.f32.mrb[0].mxu0
        %4352 = vmatprep.mubr.bf16.mxu0 0
        %4353 = vmatmul.mubr.bf16.gmra.mrb[0].mxu0 %v3927
        %v4354 = vpop.f32.mrb[0].mxu0
        %v4355 = vadd.f32 0.0, %v4354
        %v4356 = vpop.f32.mrb[0].mxu0
        %v4357 = vpop.f32.mrb[0].mxu0
        %v4358 = vadd.f32 0.0, %v4357
        %v4359 = vpop.f32.mrb[0].mxu0
        %4360 = vmatprep.mubr.bf16.mxu0 0
        %4361 = vmatmul.mubr.bf16.gmra.mrb[0].mxu0 %v3930
        %v4362 = vpop.f32.mrb[0].mxu0
        %v4363 = vadd.f32 0.0, %v4362
        %v4364 = vpop.f32.mrb[0].mxu0
        %v4365 = vpop.f32.mrb[0].mxu0
        %v4366 = vadd.f32 0.0, %v4365
        %v4367 = vpop.f32.mrb[0].mxu0
        %4368 = vmatprep.mubr.bf16.mxu0 0
        %4369 = vmatmul.mubr.bf16.gmra.mrb[0].mxu0 %v4156
        %v4370 = vpop.f32.mrb[0].mxu0
        %v4371 = vadd.f32 0.0, %v4370
        %v4372 = vpop.f32.mrb[0].mxu0
        %v4373 = vpop.f32.mrb[0].mxu0
        %v4374 = vadd.f32 0.0, %v4373
        %v4375 = vpop.f32.mrb[0].mxu0
        %4376 = vmatprep.mubr.bf16.mxu0 0
        %4377 = vmatmul.mubr.bf16.gmra.mrb[0].mxu0 %v3909
        %v4378 = vpop.f32.mrb[0].mxu0
        %v4379 = vadd.f32 0.0, %v4378
        %v4380 = vpop.f32.mrb[0].mxu0
        %v4381 = vpop.f32.mrb[0].mxu0
        %v4382 = vadd.f32 0.0, %v4381
        %v4383 = vpop.f32.mrb[0].mxu0
        %4384 = vdwg.mxu0
        %v4385 = vadd.f32 %v4255, %v4323
        %v4386 = vadd.f32 %v4256, %v4326
        %v4387 = vadd.f32 %v4257, %v4331
        %v4388 = vadd.f32 %v4258, %v4334
        %v4389 = vadd.f32 %v4259, %v4339
        %v4390 = vadd.f32 %v4260, %v4342
        %v4391 = vadd.f32 %v4261, %v4347
        %v4392 = vadd.f32 %v4262, %v4350
        %v4393 = vadd.f32 %v4263, %v4355
        %v4394 = vadd.f32 %v4264, %v4358
        %v4395 = vadd.f32 %v4265, %v4363
        %v4396 = vadd.f32 %v4266, %v4366
        %v4397 = vadd.f32 %v4267, %v4371
        %v4398 = vadd.f32 %v4268, %v4374
        %v4399 = vadd.f32 %v4269, %v4379
        %v4400 = vadd.f32 %v4270, %v4382
        %s4401 = scalar_lea.vmem [#allocation4], 64
        %v4402 = vld [vmem:[%s4401] sm:$0xf]
        %v4403 = vld [vmem:[%s4401 + $0x4] sm:$0xf]
        %v4404 = vld [vmem:[%s4401 + $0x8] sm:$0xf]
        %v4405 = vld [vmem:[%s4401 + $0xc] sm:$0xf]
        %v4410 = vunpack.c.l.b16 %v4402
        %v4411 = vunpack.c.l.b16 %v4403
        %v4412 = vunpack.c.l.b16 %v4404
        %v4413 = vunpack.c.l.b16 %v4405
        %v4414 = vpack.c.b16 %v4411, %v4410
        %v4415 = vpack.c.b16 %v4413, %v4412
        %4418 = vmatprep.subr.bf16.mxu0 0
        %4419 = vmatpush1.bf16.msra.mxu0 %v4414
        %4420 = vmatprep.subr.bf16.mxu0 0
        %4421 = vmatpush1.bf16.msra.mxu0 %v4415
        %4422 = vmatprep.subr.bf16.mxu0 0
        %4423 = vmatpush1.bf16.msra.mxu0 0
        %4424 = vmatprep.subr.bf16.mxu0 0
        %4425 = vmatpush1.bf16.msra.mxu0 0
        %4426 = vmatprep.subr.bf16.mxu0 0
        %4427 = vmatpush1.bf16.msra.mxu0 0
        %4428 = vmatprep.subr.bf16.mxu0 0
        %4429 = vmatpush1.bf16.msra.mxu0 0
        %4430 = vmatprep.subr.bf16.mxu0 0
        %4431 = vmatpush1.bf16.msra.mxu0 0
        %4432 = vmatprep.subr.bf16.mxu0 0
        %4433 = vmatpush1.bf16.msra.mxu0 0
        %4434 = vmatprep.subr.bf16.mxu0 0
        %4435 = vmatpush1.bf16.msra.mxu0 0
        %4436 = vmatprep.subr.bf16.mxu0 0
        %4437 = vmatpush1.bf16.msra.mxu0 0
        %4438 = vmatprep.subr.bf16.mxu0 0
        %4439 = vmatpush1.bf16.msra.mxu0 0
        %4440 = vmatprep.subr.bf16.mxu0 0
        %4441 = vmatpush1.bf16.msra.mxu0 0
        %4442 = vmatprep.subr.bf16.mxu0 0
        %4443 = vmatpush1.bf16.msra.mxu0 0
        %4444 = vmatprep.subr.bf16.mxu0 0
        %4445 = vmatpush1.bf16.msra.mxu0 0
        %4446 = vmatprep.subr.bf16.mxu0 0
        %4447 = vmatpush1.bf16.msra.mxu0 0
        %4448 = vmatprep.subr.bf16.mxu0 0
        %4449 = vmatpush1.bf16.msra.mxu0 0
        %4450 = vmatprep.mubr.bf16.mxu0 0
        %4451 = vmatmul.mubr.bf16.gmra.mrb[0].mxu0 %v3918
        %v4452 = vpop.f32.mrb[0].mxu0
        %v4453 = vadd.f32 0.0, %v4452
        %v4454 = vpop.f32.mrb[0].mxu0
        %v4455 = vpop.f32.mrb[0].mxu0
        %v4456 = vadd.f32 0.0, %v4455
        %v4457 = vpop.f32.mrb[0].mxu0
        %4458 = vmatprep.mubr.bf16.mxu0 0
        %4459 = vmatmul.mubr.bf16.gmra.mrb[0].mxu0 %v3921
        %v4460 = vpop.f32.mrb[0].mxu0
        %v4461 = vadd.f32 0.0, %v4460
        %v4462 = vpop.f32.mrb[0].mxu0
        %v4463 = vpop.f32.mrb[0].mxu0
        %v4464 = vadd.f32 0.0, %v4463
        %v4465 = vpop.f32.mrb[0].mxu0
        %4466 = vmatprep.mubr.bf16.mxu0 0
        %4467 = vmatmul.mubr.bf16.gmra.mrb[0].mxu0 %v3924
        %v4468 = vpop.f32.mrb[0].mxu0
        %v4469 = vadd.f32 0.0, %v4468
        %v4470 = vpop.f32.mrb[0].mxu0
        %v4471 = vpop.f32.mrb[0].mxu0
        %v4472 = vadd.f32 0.0, %v4471
        %v4473 = vpop.f32.mrb[0].mxu0
        %4474 = vmatprep.mubr.bf16.mxu0 0
        %4475 = vmatmul.mubr.bf16.gmra.mrb[0].mxu0 %v3927
        %v4476 = vpop.f32.mrb[0].mxu0
        %v4477 = vadd.f32 0.0, %v4476
        %v4478 = vpop.f32.mrb[0].mxu0
        %v4479 = vpop.f32.mrb[0].mxu0
        %v4480 = vadd.f32 0.0, %v4479
        %v4481 = vpop.f32.mrb[0].mxu0
        %4482 = vmatprep.mubr.bf16.mxu0 0
        %4483 = vmatmul.mubr.bf16.gmra.mrb[0].mxu0 %v3930
        %v4484 = vpop.f32.mrb[0].mxu0
        %v4485 = vadd.f32 0.0, %v4484
        %v4486 = vpop.f32.mrb[0].mxu0
        %v4487 = vpop.f32.mrb[0].mxu0
        %v4488 = vadd.f32 0.0, %v4487
        %v4489 = vpop.f32.mrb[0].mxu0
        %4490 = vmatprep.mubr.bf16.mxu0 0
        %4491 = vmatmul.mubr.bf16.gmra.mrb[0].mxu0 %v4156
        %v4492 = vpop.f32.mrb[0].mxu0
        %v4493 = vadd.f32 0.0, %v4492
        %v4494 = vpop.f32.mrb[0].mxu0
        %v4495 = vpop.f32.mrb[0].mxu0
        %v4496 = vadd.f32 0.0, %v4495
        %v4497 = vpop.f32.mrb[0].mxu0
        %4498 = vmatprep.mubr.bf16.mxu0 0
        %4499 = vmatmul.mubr.bf16.gmra.mrb[0].mxu0 %v3909
        %v4500 = vpop.f32.mrb[0].mxu0
        %v4501 = vadd.f32 0.0, %v4500
        %v4502 = vpop.f32.mrb[0].mxu0
        %v4503 = vpop.f32.mrb[0].mxu0
        %v4504 = vadd.f32 0.0, %v4503
        %v4505 = vpop.f32.mrb[0].mxu0
        %4506 = vmatprep.mubr.bf16.mxu0 0
        %4507 = vmatmul.mubr.bf16.gmra.mrb[0].mxu0 %v3909
        %v4508 = vpop.f32.mrb[0].mxu0
        %v4509 = vadd.f32 0.0, %v4508
        %v4510 = vpop.f32.mrb[0].mxu0
        %v4511 = vpop.f32.mrb[0].mxu0
        %v4512 = vadd.f32 0.0, %v4511
        %v4513 = vpop.f32.mrb[0].mxu0
        %4514 = vdwg.mxu0
        %v4515 = vadd.f32 %v4385, %v4453
        %v4516 = vadd.f32 %v4386, %v4456
        %v4517 = vadd.f32 %v4387, %v4461
        %v4518 = vadd.f32 %v4388, %v4464
        %v4519 = vadd.f32 %v4389, %v4469
        %v4520 = vadd.f32 %v4390, %v4472
        %v4521 = vadd.f32 %v4391, %v4477
        %v4522 = vadd.f32 %v4392, %v4480
        %v4523 = vadd.f32 %v4393, %v4485
        %v4524 = vadd.f32 %v4394, %v4488
        %v4525 = vadd.f32 %v4395, %v4493
        %v4526 = vadd.f32 %v4396, %v4496
        %v4527 = vadd.f32 %v4397, %v4501
        %v4528 = vadd.f32 %v4398, %v4504
        %v4529 = vadd.f32 %v4399, %v4509
        %v4530 = vadd.f32 %v4400, %v4512
        %4547 = vrot.lane.b32.xlu0 %v3664, 64
        %v4548 = vpop.permute.xlu0 %4547
        %4549 = vrot.lane.b32.xlu0 %v3665, 64
        %v4550 = vpop.permute.xlu0 %4549
        %4551 = vrot.lane.b32.xlu0 %v3666, 64
        %v4552 = vpop.permute.xlu0 %4551
        %4553 = vrot.lane.b32.xlu0 %v3667, 64
        %v4554 = vpop.permute.xlu0 %4553
        %4555 = vrot.lane.b32.xlu0 %v3668, 64
        %v4556 = vpop.permute.xlu0 %4555
        %4557 = vrot.lane.b32.xlu0 %v3669, 64
        %v4558 = vpop.permute.xlu0 %4557
        %4559 = vrot.lane.b32.xlu0 %v3670, 64
        %v4560 = vpop.permute.xlu0 %4559
        %4561 = vrot.lane.b32.xlu0 %v3671, 64
        %v4562 = vpop.permute.xlu0 %4561
        %4563 = vrot.lane.b32.xlu0 %v3672, 64
        %v4564 = vpop.permute.xlu0 %4563
        %4565 = vrot.lane.b32.xlu0 %v3673, 64
        %v4566 = vpop.permute.xlu0 %4565
        %4567 = vrot.lane.b32.xlu0 %v3674, 64
        %v4568 = vpop.permute.xlu0 %4567
        %4569 = vrot.lane.b32.xlu0 %v3675, 64
        %v4570 = vpop.permute.xlu0 %4569
        %4571 = vrot.lane.b32.xlu0 %v3676, 64
        %v4572 = vpop.permute.xlu0 %4571
        %4573 = vrot.lane.b32.xlu0 %v3677, 64
        %v4574 = vpop.permute.xlu0 %4573
        %4575 = vrot.lane.b32.xlu0 %v3678, 64
        %v4576 = vpop.permute.xlu0 %4575
        %4577 = vrot.lane.b32.xlu0 %v3679, 64
        %v4578 = vpop.permute.xlu0 %4577
        %v4595 = vadd.f32 %v4515, %v4548
        %v4596 = vadd.f32 %v4516, %v4550
        %v4597 = vadd.f32 %v4517, %v4552
        %v4598 = vadd.f32 %v4518, %v4554
        %v4599 = vadd.f32 %v4519, %v4556
        %v4600 = vadd.f32 %v4520, %v4558
        %v4601 = vadd.f32 %v4521, %v4560
        %v4602 = vadd.f32 %v4522, %v4562
        %v4603 = vadd.f32 %v4523, %v4564
        %v4604 = vadd.f32 %v4524, %v4566
        %v4605 = vadd.f32 %v4525, %v4568
        %v4606 = vadd.f32 %v4526, %v4570
        %v4607 = vadd.f32 %v4527, %v4572
        %v4608 = vadd.f32 %v4528, %v4574
        %v4609 = vadd.f32 %v4529, %v4576
        %v4610 = vadd.f32 %v4530, %v4578
        %v4611 = vtanh.pop %v4595
        %v4612 = vtanh.pop %v4596
        %v4613 = vtanh.pop %v4597
        %v4614 = vtanh.pop %v4598
        %v4615 = vtanh.pop %v4599
        %v4616 = vtanh.pop %v4600
        %v4617 = vtanh.pop %v4601
        %v4618 = vtanh.pop %v4602
        %v4619 = vtanh.pop %v4603
        %v4620 = vtanh.pop %v4604
        %v4621 = vtanh.pop %v4605
        %v4622 = vtanh.pop %v4606
        %v4623 = vtanh.pop %v4607
        %v4624 = vtanh.pop %v4608
        %v4625 = vtanh.pop %v4609
        %v4626 = vtanh.pop %v4610
        %v4627 = vsub.f32 1.0, %v3745
        %v4628 = vsub.f32 1.0, %v3747
        %v4629 = vsub.f32 1.0, %v3749
        %v4630 = vsub.f32 1.0, %v3751
        %v4631 = vsub.f32 1.0, %v3753
        %v4632 = vsub.f32 1.0, %v3755
        %v4633 = vsub.f32 1.0, %v3757
        %v4634 = vsub.f32 1.0, %v3759
        %v4635 = vsub.f32 1.0, %v3761
        %v4636 = vsub.f32 1.0, %v3763
        %v4637 = vsub.f32 1.0, %v3765
        %v4638 = vsub.f32 1.0, %v3767
        %v4639 = vsub.f32 1.0, %v3769
        %v4640 = vsub.f32 1.0, %v3771
        %v4641 = vsub.f32 1.0, %v3773
        %v4642 = vsub.f32 1.0, %v3775
        %v4643 = vmul.f32 %v4627, %v2902
        %v4644 = vmul.f32 %v4628, %v2903
        %v4645 = vmul.f32 %v4629, %v2904
        %v4646 = vmul.f32 %v4630, %v2905
        %v4647 = vmul.f32 %v4631, %v2906
        %v4648 = vmul.f32 %v4632, %v2907
        %v4649 = vmul.f32 %v4633, %v2908
        %v4650 = vmul.f32 %v4634, %v2909
        %v4651 = vmul.f32 %v4635, %v2910
        %v4652 = vmul.f32 %v4636, %v2911
        %v4653 = vmul.f32 %v4637, %v2912
        %v4654 = vmul.f32 %v4638, %v2913
        %v4655 = vmul.f32 %v4639, %v2914
        %v4656 = vmul.f32 %v4640, %v2915
        %v4657 = vmul.f32 %v4641, %v2916
        %v4658 = vmul.f32 %v4642, %v2917
        %v4659 = vmul.f32 %v3745, %v4611
        %v4660 = vmul.f32 %v3747, %v4612
        %v4661 = vmul.f32 %v3749, %v4613
        %v4662 = vmul.f32 %v3751, %v4614
        %v4663 = vmul.f32 %v3753, %v4615
        %v4664 = vmul.f32 %v3755, %v4616
        %v4665 = vmul.f32 %v3757, %v4617
        %v4666 = vmul.f32 %v3759, %v4618
        %v4667 = vmul.f32 %v3761, %v4619
        %v4668 = vmul.f32 %v3763, %v4620
        %v4669 = vmul.f32 %v3765, %v4621
        %v4670 = vmul.f32 %v3767, %v4622
        %v4671 = vmul.f32 %v3769, %v4623
        %v4672 = vmul.f32 %v3771, %v4624
        %v4673 = vmul.f32 %v3773, %v4625
        %v4674 = vmul.f32 %v3775, %v4626
        %v4675 = vadd.f32 %v4643, %v4659
        %v4676 = vadd.f32 %v4644, %v4660
        %v4677 = vadd.f32 %v4645, %v4661
        %v4678 = vadd.f32 %v4646, %v4662
        %v4679 = vadd.f32 %v4647, %v4663
        %v4680 = vadd.f32 %v4648, %v4664
        %v4681 = vadd.f32 %v4649, %v4665
        %v4682 = vadd.f32 %v4650, %v4666
        %v4683 = vadd.f32 %v4651, %v4667
        %v4684 = vadd.f32 %v4652, %v4668
        %v4685 = vadd.f32 %v4653, %v4669
        %v4686 = vadd.f32 %v4654, %v4670
        %v4687 = vadd.f32 %v4655, %v4671
        %v4688 = vadd.f32 %v4656, %v4672
        %v4689 = vadd.f32 %v4657, %v4673
        %v4690 = vadd.f32 %v4658, %v4674
        %vm4691 = vcmp.ne.f32.partialorder %v4675, %v4675
        %vm4692 = vcmp.ne.f32.partialorder %v4676, %v4676
        %vm4693 = vcmp.ne.f32.partialorder %v4677, %v4677
        %vm4694 = vcmp.ne.f32.partialorder %v4678, %v4678
        %vm4695 = vcmp.ne.f32.partialorder %v4679, %v4679
        %vm4696 = vcmp.ne.f32.partialorder %v4680, %v4680
        %vm4697 = vcmp.ne.f32.partialorder %v4681, %v4681
        %vm4698 = vcmp.ne.f32.partialorder %v4682, %v4682
        %vm4699 = vcmp.ne.f32.partialorder %v4683, %v4683
        %vm4700 = vcmp.ne.f32.partialorder %v4684, %v4684
        %vm4701 = vcmp.ne.f32.partialorder %v4685, %v4685
        %vm4702 = vcmp.ne.f32.partialorder %v4686, %v4686
        %vm4703 = vcmp.ne.f32.partialorder %v4687, %v4687
        %vm4704 = vcmp.ne.f32.partialorder %v4688, %v4688
        %vm4705 = vcmp.ne.f32.partialorder %v4689, %v4689
        %vm4706 = vcmp.ne.f32.partialorder %v4690, %v4690
        %v4707 = vsel %vm4691, 0.0, %v4675
        %v4708 = vsel %vm4692, 0.0, %v4676
        %v4709 = vsel %vm4693, 0.0, %v4677
        %v4710 = vsel %vm4694, 0.0, %v4678
        %v4711 = vsel %vm4695, 0.0, %v4679
        %v4712 = vsel %vm4696, 0.0, %v4680
        %v4713 = vsel %vm4697, 0.0, %v4681
        %v4714 = vsel %vm4698, 0.0, %v4682
        %v4715 = vsel %vm4699, 0.0, %v4683
        %v4716 = vsel %vm4700, 0.0, %v4684
        %v4717 = vsel %vm4701, 0.0, %v4685
        %v4718 = vsel %vm4702, 0.0, %v4686
        %v4719 = vsel %vm4703, 0.0, %v4687
        %v4720 = vsel %vm4704, 0.0, %v4688
        %v4721 = vsel %vm4705, 0.0, %v4689
        %v4722 = vsel %vm4706, 0.0, %v4690
        %vm4723 = vcmp.eq.f32.partialorder %v4707, inf
        %vm4724 = vcmp.eq.f32.partialorder %v4708, inf
        %vm4725 = vcmp.eq.f32.partialorder %v4709, inf
        %vm4726 = vcmp.eq.f32.partialorder %v4710, inf
        %vm4727 = vcmp.eq.f32.partialorder %v4711, inf
        %vm4728 = vcmp.eq.f32.partialorder %v4712, inf
        %vm4729 = vcmp.eq.f32.partialorder %v4713, inf
        %vm4730 = vcmp.eq.f32.partialorder %v4714, inf
        %vm4731 = vcmp.eq.f32.partialorder %v4715, inf
        %vm4732 = vcmp.eq.f32.partialorder %v4716, inf
        %vm4733 = vcmp.eq.f32.partialorder %v4717, inf
        %vm4734 = vcmp.eq.f32.partialorder %v4718, inf
        %vm4735 = vcmp.eq.f32.partialorder %v4719, inf
        %vm4736 = vcmp.eq.f32.partialorder %v4720, inf
        %vm4737 = vcmp.eq.f32.partialorder %v4721, inf
        %vm4738 = vcmp.eq.f32.partialorder %v4722, inf
        %v4739 = vsel %vm4723, 3.4028235e+38, %v4707
        %v4740 = vsel %vm4724, 3.4028235e+38, %v4708
        %v4741 = vsel %vm4725, 3.4028235e+38, %v4709
        %v4742 = vsel %vm4726, 3.4028235e+38, %v4710
        %v4743 = vsel %vm4727, 3.4028235e+38, %v4711
        %v4744 = vsel %vm4728, 3.4028235e+38, %v4712
        %v4745 = vsel %vm4729, 3.4028235e+38, %v4713
        %v4746 = vsel %vm4730, 3.4028235e+38, %v4714
        %v4747 = vsel %vm4731, 3.4028235e+38, %v4715
        %v4748 = vsel %vm4732, 3.4028235e+38, %v4716
        %v4749 = vsel %vm4733, 3.4028235e+38, %v4717
        %v4750 = vsel %vm4734, 3.4028235e+38, %v4718
        %v4751 = vsel %vm4735, 3.4028235e+38, %v4719
        %v4752 = vsel %vm4736, 3.4028235e+38, %v4720
        %v4753 = vsel %vm4737, 3.4028235e+38, %v4721
        %v4754 = vsel %vm4738, 3.4028235e+38, %v4722
        %vm4755 = vcmp.eq.f32.partialorder %v4739, -inf
        %vm4756 = vcmp.eq.f32.partialorder %v4740, -inf
        %vm4757 = vcmp.eq.f32.partialorder %v4741, -inf
        %vm4758 = vcmp.eq.f32.partialorder %v4742, -inf
        %vm4759 = vcmp.eq.f32.partialorder %v4743, -inf
        %vm4760 = vcmp.eq.f32.partialorder %v4744, -inf
        %vm4761 = vcmp.eq.f32.partialorder %v4745, -inf
        %vm4762 = vcmp.eq.f32.partialorder %v4746, -inf
        %vm4763 = vcmp.eq.f32.partialorder %v4747, -inf
        %vm4764 = vcmp.eq.f32.partialorder %v4748, -inf
        %vm4765 = vcmp.eq.f32.partialorder %v4749, -inf
        %vm4766 = vcmp.eq.f32.partialorder %v4750, -inf
        %vm4767 = vcmp.eq.f32.partialorder %v4751, -inf
        %vm4768 = vcmp.eq.f32.partialorder %v4752, -inf
        %vm4769 = vcmp.eq.f32.partialorder %v4753, -inf
        %vm4770 = vcmp.eq.f32.partialorder %v4754, -inf
        %v4771 = vsel %vm4755, -3.4028235e+38, %v4739
        %v4772 = vsel %vm4756, -3.4028235e+38, %v4740
        %v4773 = vsel %vm4757, -3.4028235e+38, %v4741
        %v4774 = vsel %vm4758, -3.4028235e+38, %v4742
        %v4775 = vsel %vm4759, -3.4028235e+38, %v4743
        %v4776 = vsel %vm4760, -3.4028235e+38, %v4744
        %v4777 = vsel %vm4761, -3.4028235e+38, %v4745
        %v4778 = vsel %vm4762, -3.4028235e+38, %v4746
        %v4779 = vsel %vm4763, -3.4028235e+38, %v4747
        %v4780 = vsel %vm4764, -3.4028235e+38, %v4748
        %v4781 = vsel %vm4765, -3.4028235e+38, %v4749
        %v4782 = vsel %vm4766, -3.4028235e+38, %v4750
        %v4783 = vsel %vm4767, -3.4028235e+38, %v4751
        %v4784 = vsel %vm4768, -3.4028235e+38, %v4752
        %v4785 = vsel %vm4769, -3.4028235e+38, %v4753
        %v4786 = vsel %vm4770, -3.4028235e+38, %v4754
        %4787 = vst.msk [vmem:[%s355] sm:$0xff] %vm453, %v4771
        %4788 = vst.msk [vmem:[%s355 + $0x8] sm:$0xff] %vm453, %v4772
        %4789 = vst.msk [vmem:[%s355 + $0x10] sm:$0xff] %vm453, %v4773
        %4790 = vst.msk [vmem:[%s355 + $0x18] sm:$0xff] %vm453, %v4774
        %4791 = vst.msk [vmem:[%s355 + $0x20] sm:$0xff] %vm453, %v4775
        %4792 = vst.msk [vmem:[%s355 + $0x28] sm:$0xff] %vm453, %v4776
        %4793 = vst.msk [vmem:[%s355 + $0x30] sm:$0xff] %vm453, %v4777
        %4794 = vst.msk [vmem:[%s355 + $0x38] sm:$0xff] %vm453, %v4778
        %4795 = vst.msk [vmem:[%s355 + $0x40] sm:$0xff] %vm453, %v4779
        %4796 = vst.msk [vmem:[%s355 + $0x48] sm:$0xff] %vm453, %v4780
        %4797 = vst.msk [vmem:[%s355 + $0x50] sm:$0xff] %vm453, %v4781
        %4798 = vst.msk [vmem:[%s355 + $0x58] sm:$0xff] %vm453, %v4782
        %4799 = vst.msk [vmem:[%s355 + $0x60] sm:$0xff] %vm453, %v4783
        %4800 = vst.msk [vmem:[%s355 + $0x68] sm:$0xff] %vm453, %v4784
        %4801 = vst.msk [vmem:[%s355 + $0x70] sm:$0xff] %vm453, %v4785
        %4802 = vst.msk [vmem:[%s355 + $0x78] sm:$0xff] %vm453, %v4786
        %p4803 = scmp.lt.s32.totalorder %s21, 1
        %s4804 = scalar_select %p4803, %s21, 1
        %s4805 = smul.addr %s4804, 16
        %s4806 = smul.addr %s4805, 8
        %s4807 = scalar_lea.vmem %s8, %s4806
        // Predicated region
        $region61: #{gru2d_pallas.1} parent=51 // pred_check
          %p4808 = pneg %p217
        $region62: #{gru2d_pallas.1} parent=51 // pred_check_branch
          %4810 = sbr.rel (%p4808) target = $region64
        $region63: #{gru2d_pallas.1} parent=51 // pred_region
          _
        $region64: #{gru2d_pallas.1} parent=51 // pred_fallthru
          _
      $region52: #{gru2d_pallas.1} parent=5 // pred_fallthru
        _
      %p4811 = scmp.le.s32.totalorder 2, %s16
      // Predicated region
      $region65: #{gru2d_pallas.1} parent=5 // pred_check
        %p4812 = pneg %p4811
      $region66: #{gru2d_pallas.1} parent=5 // pred_check_branch
        %4814 = sbr.rel (%p4812) target = $region68
      $region67: #{gru2d_pallas.1} parent=5 // pred_region
        %s4815 = ssub.s32 %s16, 2
        // Predicated region
        $region69: #{gru2d_pallas.1} parent=67 // pred_check
          %p4816 = pneg %p223
        $region70: #{gru2d_pallas.1} parent=67 // pred_check_branch
          %4818 = sbr.rel (%p4816) target = $region72
        $region71: #{gru2d_pallas.1} parent=67 // pred_region
          %p4819 = scmp.lt.s32.totalorder %s22, 1
          %s4820 = scalar_select %p4819, %s22, 1
          %s4821 = smul.addr %s4820, 16
          %s4822 = smul.addr %s4821, 8
          %s4823 = scalar_lea.vmem %s8, %s4822
        $region72: #{gru2d_pallas.1} parent=67 // pred_fallthru
          _
      $region68: #{gru2d_pallas.1} parent=5 // pred_fallthru
        _
    $region6: #{gru2d_pallas.1} parent=1 // loop_footer
      %s20 = sadd.s32 1, %s16
    $region7: #{gru2d_pallas.1} parent=1 // loop_footer_branch
      %15 = sbr.rel target = $region3
    $region8: #{gru2d_pallas.1} parent=1 // loop_exit
      _
    %4824 = vsyncpa [#allocation3], 1
    %s4825 = scalar_lea.sflag [#allocation3], 1
    %4826 = vsyncpa %s4825, 1
    %4827 = vsyncpa [#allocation5], 1

</llo_original>
